<compile_context>
chip_gen: v5e
topology: v5e:2x2
jax: 0.10.0
libtpu: 0.0.40
codegen_flags: <defaults>
</compile_context>

<pallas_src>
import functools

import jax
import jax.numpy as jnp
from jax.experimental import pallas as pl
from jax.experimental.pallas import tpu as pltpu

OUT_PAD = 128                 # final Linear(256 -> 1) padded to one full 128-lane vreg
_MIB = 1024 * 1024
_LOWERING_ERR = getattr(pltpu, "LoweringException", ValueError)


def _leaky_relu(x, slope=0.2):
    return jnp.where(x > 0, x, slope * x)


def discriminator_kernel(x_ref, w0_ref, b0_ref, w1_ref, b1_ref,
                         w2_ref, b2_ref, w3_ref, b3_ref, o_ref):
    """Fused 4-layer MLP: (Linear + LeakyReLU[+Dropout-as-identity]) x3 + Linear + Sigmoid.

    x arrives f32 straight from HBM; the f32->bf16 cast happens in-kernel so the wrapper
    does not burn a separate HBM pass on it.  All matmuls accumulate in f32 on the MXU;
    the sigmoid runs on the EUP (exp + approximate reciprocal).
    """
    h = x_ref[...].astype(jnp.bfloat16)
    # hidden0: Linear(input_size -> 1024) + LeakyReLU(0.2)
    # TODO(synk): Dropout(0.3) is stochastic; implemented as identity (eval-mode semantics).
    h = _leaky_relu(
        jnp.dot(h, w0_ref[...], preferred_element_type=jnp.float32) + b0_ref[...]
    ).astype(jnp.bfloat16)
    # hidden1: Linear(1024 -> 512) + LeakyReLU(0.2)
    h = _leaky_relu(
        jnp.dot(h, w1_ref[...], preferred_element_type=jnp.float32) + b1_ref[...]
    ).astype(jnp.bfloat16)
    # hidden2: Linear(512 -> 256) + LeakyReLU(0.2)
    h = _leaky_relu(
        jnp.dot(h, w2_ref[...], preferred_element_type=jnp.float32) + b2_ref[...]
    ).astype(jnp.bfloat16)
    # out: Linear(256 -> 1) + Sigmoid (out dim padded to 128 lanes; sliced in wrapper).
    logits = jnp.dot(h, w3_ref[...], preferred_element_type=jnp.float32) + b3_ref[...]
    probs = pl.reciprocal(1.0 + jnp.exp(-logits), approx=True)
    o_ref[...] = probs.astype(o_ref.dtype)   # bf16 writeback halves output HBM traffic


@functools.lru_cache(maxsize=None)
def _tpu_vmem_capacity_bytes():
    try:
        return int(pltpu.get_tpu_info().vmem_capacity_bytes)
    except Exception:              # no hardware info available -> assume smallest (v7x) VMEM
        return 64 * _MIB


@functools.lru_cache(maxsize=None)
def _vmem_limit_bytes():
    # Leave ~16 MiB headroom for compiler-internal scratch / pipeline buffers.
    return max(32 * _MIB, _tpu_vmem_capacity_bytes() - 16 * _MIB)


def _round_up(n, m):
    return ((n + m - 1) // m) * m


def _pick_batch_tile(B, vmem_cap_bytes):
    """Per-chip batch tile.

    v5e/v6e (128 MiB VMEM): up to 512 rows -- single-buffered weights + two f32 x buffers
    fit easily, and fewer grid steps amortize the ~0.35us/step pipeline overhead.
    v7x-class (64 MiB/TC): cap at 128 rows (x blocks stay f32 in VMEM since the bf16 cast
    is in-kernel), and split mid-size batches into >=2 tiles so the 'parallel' grid axis
    can be sharded across both TensorCores.
    """
    large_vmem = vmem_cap_bytes >= 100 * _MIB
    if large_vmem:
        for t in (512, 256, 128):
            if B >= t:
                return t
        return B                       # single full-batch tile (block == full dim)
    if B >= 256:
        return 128
    if B >= 16:
        return _round_up((B + 1) // 2, 8)   # two parallel tiles -> both TensorCores
    return B


def prepare_params(params):
    """One-time prep (call outside the forward hot path): pad the final layer to 128
    output lanes and cast weights to bf16 (biases stay f32)."""
    w0, b0, w1, b1, w2, b2, w3, b3 = params
    w3p = jnp.zeros((w3.shape[0], OUT_PAD), w3.dtype).at[:, :w3.shape[1]].set(w3)
    b3p = jnp.zeros((1, OUT_PAD), b3.dtype).at[:, :b3.shape[1]].set(b3)
    # TODO(synk): fp8 (v7x) / int8 (v5e/v6e) per-output-channel weight quantization of W0-W2
    # would halve the weight DMA that dominates small-batch latency; kept bf16 for parity.
    bf16 = lambda w: w.astype(jnp.bfloat16)
    f32 = lambda b: b.astype(jnp.float32)
    return (bf16(w0), f32(b0), bf16(w1), f32(b1), bf16(w2), f32(b2), bf16(w3p), f32(b3p))


def _build_and_run(x_flat, weights, tile, single_buffer_weights):
    B, D = x_flat.shape
    n_steps = pl.cdiv(B, tile)
    b_pad = n_steps * tile
    xin = x_flat if b_pad == B else jnp.pad(x_flat, ((0, b_pad - B), (0, 0)))

    flops = 2 * b_pad * (D * 1024 + 1024 * 512 + 512 * 256 + 256 * OUT_PAD)
    bytes_accessed = (
        xin.size * xin.dtype.itemsize
        + sum(int(p.size) * p.dtype.itemsize for p in weights)
        + b_pad * OUT_PAD * 2
    )
    cost = pl.CostEstimate(flops=flops,
                           transcendentals=b_pad * OUT_PAD,
                           bytes_accessed=bytes_accessed)

    # Weight/bias blocks ride constant index_maps (never change across grid steps) ->
    # single-buffer them so only one copy lives in VMEM.
    wkw = {"pipeline_mode": pl.Buffered(1)} if single_buffer_weights else {}
    in_specs = [pl.BlockSpec((tile, D), lambda i: (i, 0))]          # x tile (f32)
    for p in weights:                                               # W0..b3 (padded)
        in_specs.append(pl.BlockSpec(p.shape, lambda i: (0, 0), **wkw))

    # TODO(synk): for very large input_size a K-split of layer 0 (second 'arbitrary' grid
    # axis over D-chunks of W0 + f32 accumulator scratch) would cap VMEM independent of
    # image size; unnecessary at these shapes.
    return pl.pallas_call(
        discriminator_kernel,
        out_shape=jax.ShapeDtypeStruct((b_pad, OUT_PAD), jnp.bfloat16),
        grid=(n_steps,),
        in_specs=in_specs,
        out_specs=pl.BlockSpec((tile, OUT_PAD), lambda i: (i, 0)),
        compiler_params=pltpu.CompilerParams(
            dimension_semantics=("parallel",),
            vmem_limit_bytes=_vmem_limit_bytes(),
        ),
        cost_estimate=cost,
    )(xin, *weights)


def discriminator_forward(x, prepared_params, *, batch_tile=None):
    """x: (B, C, H, W) float32 NCHW. Returns (B, 1) sigmoid probabilities (float32)."""
    weights = tuple(prepared_params)
    B = x.shape[0]
    x_flat = x.reshape(B, -1)     # metadata-only reshape (matches torch .view); cast in-kernel

    if batch_tile is None:
        batch_tile = _pick_batch_tile(B, _tpu_vmem_capacity_bytes())
    batch_tile = max(1, min(batch_tile, B))

    # TODO(synk): for latency-critical small batches, start the weight HBM->VMEM DMA in a
    # preceding pallas_call and consume (semaphore, VMEM ref) futures here (P10); weights
    # are currently (re)loaded inside every call.
    try:
        out = _build_and_run(x_flat, weights, batch_tile, single_buffer_weights=True)
    except (TypeError, NotImplementedError, _LOWERING_ERR, ValueError):
        # pl.Buffered(1) rejected by this jax version.  Do NOT silently keep the same tile
        # with double-buffered weights (strictly larger VMEM footprint) -- halve the batch
        # tile instead so the VMEM budget still holds.
        fb_tile = batch_tile if batch_tile <= 8 else max(8, batch_tile // 2)
        out = _build_and_run(x_flat, weights, fb_tile, single_buffer_weights=False)

    return out[:B, :1].astype(jnp.float32)


def discriminator_reference(x, prepared_params):
    """Pure-JAX reference with the same bf16/f32 mixed precision as the kernel."""
    w0, b0, w1, b1, w2, b2, w3p, b3p = prepared_params
    B = x.shape[0]
    h = x.reshape(B, -1).astype(jnp.bfloat16)
    h = _leaky_relu(jnp.dot(h, w0, preferred_element_type=jnp.float32) + b0).astype(jnp.bfloat16)
    h = _leaky_relu(jnp.dot(h, w1, preferred_element_type=jnp.float32) + b1).astype(jnp.bfloat16)
    h = _leaky_relu(jnp.dot(h, w2, preferred_element_type=jnp.float32) + b2).astype(jnp.bfloat16)
    logits = jnp.dot(h, w3p, preferred_element_type=jnp.float32) + b3p
    return jax.nn.sigmoid(logits)[:, :1]


def init_params(key, input_size):
    """Deterministic PyTorch-style Linear init: U(-1/sqrt(fan_in), 1/sqrt(fan_in))."""
    dims = [(input_size, 1024), (1024, 512), (512, 256), (256, 1)]
    params = []
    for i, (fan_in, fan_out) in enumerate(dims):
        kw, kb = jax.random.split(jax.random.fold_in(key, i))
        bound = 1.0 / (fan_in ** 0.5)
        w = jax.random.uniform(kw, (fan_in, fan_out), jnp.float32, -bound, bound)
        b = jax.random.uniform(kb, (1, fan_out), jnp.float32, -bound, bound)
        params += [w, b]
    return params


if __name__ == "__main__":
    # Small shapes consistent with the module: img_size=16, img_channels=4, batch=2
    # (the real module defaults to 64x64x3; only input_size changes).
    B, IMG_CH, IMG_SIZE = 2, 4, 16
    input_size = IMG_SIZE * IMG_SIZE * IMG_CH  # 1024

    key = jax.random.PRNGKey(0)
    kx, kp = jax.random.split(key)
    x = jax.random.normal(kx, (B, IMG_CH, IMG_SIZE, IMG_SIZE), jnp.float32)  # NCHW
    params = init_params(kp, input_size)
    prepared = prepare_params(params)   # hoisted out of the per-call hot path

    y = discriminator_forward(x, prepared)
    jax.block_until_ready(y)

    y_ref = discriminator_reference(x, prepared)
    assert y.shape == (B, 1), y.shape
    assert bool(jnp.all(jnp.isfinite(y)))
    assert bool(jnp.all((y >= -1e-3) & (y <= 1.0 + 1e-3)))
    assert bool(jnp.allclose(y, y_ref, atol=2e-2)), (y, y_ref)
    print("KERNEL_OK")
</pallas_src>

<mosaic_0001>
module attributes {stable_mosaic.version = 11 : i64} {
  func.func @discriminator_kernel(%arg0: i32, %arg1: memref<2x1024xf32, #tpu.memory_space<vmem>>, %arg2: memref<1024x1024xbf16, #tpu.memory_space<vmem>>, %arg3: memref<1x1024xf32, #tpu.memory_space<vmem>>, %arg4: memref<1024x512xbf16, #tpu.memory_space<vmem>>, %arg5: memref<1x512xf32, #tpu.memory_space<vmem>>, %arg6: memref<512x256xbf16, #tpu.memory_space<vmem>>, %arg7: memref<1x256xf32, #tpu.memory_space<vmem>>, %arg8: memref<256x128xbf16, #tpu.memory_space<vmem>>, %arg9: memref<1x128xf32, #tpu.memory_space<vmem>>, %arg10: memref<2x128xbf16, #tpu.memory_space<vmem>>) attributes {dimension_semantics = [#tpu.dimension_semantics<parallel>], iteration_bounds = array<i64: 1>, scalar_prefetch = 0 : i64, scratch_operands = 0 : i64, tpu.core_type = #tpu.core_type<tc>, window_params = [{transform_indices = @transform_0, window_bounds = array<i64: 2, 1024>}, {pipeline_mode = #tpu.pipeline_mode<synchronous>, transform_indices = @transform_1, window_bounds = array<i64: 1024, 1024>}, {pipeline_mode = #tpu.pipeline_mode<synchronous>, transform_indices = @transform_2, window_bounds = array<i64: 1, 1024>}, {pipeline_mode = #tpu.pipeline_mode<synchronous>, transform_indices = @transform_3, window_bounds = array<i64: 1024, 512>}, {pipeline_mode = #tpu.pipeline_mode<synchronous>, transform_indices = @transform_4, window_bounds = array<i64: 1, 512>}, {pipeline_mode = #tpu.pipeline_mode<synchronous>, transform_indices = @transform_5, window_bounds = array<i64: 512, 256>}, {pipeline_mode = #tpu.pipeline_mode<synchronous>, transform_indices = @transform_6, window_bounds = array<i64: 1, 256>}, {pipeline_mode = #tpu.pipeline_mode<synchronous>, transform_indices = @transform_7, window_bounds = array<i64: 256, 128>}, {pipeline_mode = #tpu.pipeline_mode<synchronous>, transform_indices = @transform_8, window_bounds = array<i64: 1, 128>}, {transform_indices = @transform_9, window_bounds = array<i64: 2, 128>}]} {
    %c0 = arith.constant 0 : index
    %c0_0 = arith.constant 0 : index
    %0 = vector.load %arg1[%c0, %c0_0] : memref<2x1024xf32, #tpu.memory_space<vmem>>, vector<2x1024xf32>
    %1 = arith.truncf %0 : vector<2x1024xf32> to vector<2x1024xbf16>
    %c0_1 = arith.constant 0 : index
    %c0_2 = arith.constant 0 : index
    %2 = vector.load %arg2[%c0_1, %c0_2] : memref<1024x1024xbf16, #tpu.memory_space<vmem>>, vector<1024x1024xbf16>
    %cst = arith.constant dense<0.000000e+00> : vector<2x1024xf32>
    %3 = tpu.matmul %1, %2, %cst {dimension_numbers = #tpu.dot_dimension_numbers<[1], [0], [0], [1], [0, 0, 1, 1], [], []>} : vector<2x1024xbf16>, vector<1024x1024xbf16>, vector<2x1024xf32> -> vector<2x1024xf32>
    %c0_3 = arith.constant 0 : index
    %c0_4 = arith.constant 0 : index
    %4 = vector.load %arg3[%c0_3, %c0_4] : memref<1x1024xf32, #tpu.memory_space<vmem>>, vector<1x1024xf32>
    %5 = vector.broadcast %4 : vector<1x1024xf32> to vector<2x1024xf32>
    %6 = arith.addf %3, %5 : vector<2x1024xf32>
    %cst_5 = arith.constant 0.000000e+00 : f32
    %7 = vector.broadcast %cst_5 : f32 to vector<2x1024xf32>
    %8 = arith.cmpf ogt, %6, %7 : vector<2x1024xf32>
    %cst_6 = arith.constant 2.000000e-01 : f32
    %9 = vector.broadcast %cst_6 : f32 to vector<2x1024xf32>
    %10 = arith.mulf %9, %6 : vector<2x1024xf32>
    %11 = arith.select %8, %6, %10 : vector<2x1024xi1>, vector<2x1024xf32>
    %12 = arith.truncf %11 : vector<2x1024xf32> to vector<2x1024xbf16>
    %c0_7 = arith.constant 0 : index
    %c0_8 = arith.constant 0 : index
    %13 = vector.load %arg4[%c0_7, %c0_8] : memref<1024x512xbf16, #tpu.memory_space<vmem>>, vector<1024x512xbf16>
    %cst_9 = arith.constant dense<0.000000e+00> : vector<2x512xf32>
    %14 = tpu.matmul %12, %13, %cst_9 {dimension_numbers = #tpu.dot_dimension_numbers<[1], [0], [0], [1], [0, 0, 1, 1], [], []>} : vector<2x1024xbf16>, vector<1024x512xbf16>, vector<2x512xf32> -> vector<2x512xf32>
    %c0_10 = arith.constant 0 : index
    %c0_11 = arith.constant 0 : index
    %15 = vector.load %arg5[%c0_10, %c0_11] : memref<1x512xf32, #tpu.memory_space<vmem>>, vector<1x512xf32>
    %16 = vector.broadcast %15 : vector<1x512xf32> to vector<2x512xf32>
    %17 = arith.addf %14, %16 : vector<2x512xf32>
    %cst_12 = arith.constant 0.000000e+00 : f32
    %18 = vector.broadcast %cst_12 : f32 to vector<2x512xf32>
    %19 = arith.cmpf ogt, %17, %18 : vector<2x512xf32>
    %cst_13 = arith.constant 2.000000e-01 : f32
    %20 = vector.broadcast %cst_13 : f32 to vector<2x512xf32>
    %21 = arith.mulf %20, %17 : vector<2x512xf32>
    %22 = arith.select %19, %17, %21 : vector<2x512xi1>, vector<2x512xf32>
    %23 = arith.truncf %22 : vector<2x512xf32> to vector<2x512xbf16>
    %c0_14 = arith.constant 0 : index
    %c0_15 = arith.constant 0 : index
    %24 = vector.load %arg6[%c0_14, %c0_15] : memref<512x256xbf16, #tpu.memory_space<vmem>>, vector<512x256xbf16>
    %cst_16 = arith.constant dense<0.000000e+00> : vector<2x256xf32>
    %25 = tpu.matmul %23, %24, %cst_16 {dimension_numbers = #tpu.dot_dimension_numbers<[1], [0], [0], [1], [0, 0, 1, 1], [], []>} : vector<2x512xbf16>, vector<512x256xbf16>, vector<2x256xf32> -> vector<2x256xf32>
    %c0_17 = arith.constant 0 : index
    %c0_18 = arith.constant 0 : index
    %26 = vector.load %arg7[%c0_17, %c0_18] : memref<1x256xf32, #tpu.memory_space<vmem>>, vector<1x256xf32>
    %27 = vector.broadcast %26 : vector<1x256xf32> to vector<2x256xf32>
    %28 = arith.addf %25, %27 : vector<2x256xf32>
    %cst_19 = arith.constant 0.000000e+00 : f32
    %29 = vector.broadcast %cst_19 : f32 to vector<2x256xf32>
    %30 = arith.cmpf ogt, %28, %29 : vector<2x256xf32>
    %cst_20 = arith.constant 2.000000e-01 : f32
    %31 = vector.broadcast %cst_20 : f32 to vector<2x256xf32>
    %32 = arith.mulf %31, %28 : vector<2x256xf32>
    %33 = arith.select %30, %28, %32 : vector<2x256xi1>, vector<2x256xf32>
    %34 = arith.truncf %33 : vector<2x256xf32> to vector<2x256xbf16>
    %c0_21 = arith.constant 0 : index
    %c0_22 = arith.constant 0 : index
    %35 = vector.load %arg8[%c0_21, %c0_22] : memref<256x128xbf16, #tpu.memory_space<vmem>>, vector<256x128xbf16>
    %cst_23 = arith.constant dense<0.000000e+00> : vector<2x128xf32>
    %36 = tpu.matmul %34, %35, %cst_23 {dimension_numbers = #tpu.dot_dimension_numbers<[1], [0], [0], [1], [0, 0, 1, 1], [], []>} : vector<2x256xbf16>, vector<256x128xbf16>, vector<2x128xf32> -> vector<2x128xf32>
    %c0_24 = arith.constant 0 : index
    %c0_25 = arith.constant 0 : index
    %37 = vector.load %arg9[%c0_24, %c0_25] : memref<1x128xf32, #tpu.memory_space<vmem>>, vector<1x128xf32>
    %38 = vector.broadcast %37 : vector<1x128xf32> to vector<2x128xf32>
    %39 = arith.addf %36, %38 : vector<2x128xf32>
    %cst_26 = arith.constant 0.000000e+00 : f32
    %40 = vector.broadcast %cst_26 : f32 to vector<2x128xf32>
    %41 = arith.subf %40, %39 : vector<2x128xf32>
    %42 = math.exp %41 : vector<2x128xf32>
    %cst_27 = arith.constant 1.000000e+00 : f32
    %43 = vector.broadcast %cst_27 : f32 to vector<2x128xf32>
    %44 = arith.addf %43, %42 : vector<2x128xf32>
    %45 = tpu.reciprocal %44 {approx = true} : vector<2x128xf32> -> vector<2x128xf32>
    %46 = arith.truncf %45 : vector<2x128xf32> to vector<2x128xbf16>
    %c0_28 = arith.constant 0 : index
    %c0_29 = arith.constant 0 : index
    %47 = vector.load %arg10[%c0_28, %c0_29] : memref<2x128xbf16, #tpu.memory_space<vmem>>, vector<2x128xbf16>
    tpu.vector_store %arg10[%c0_28, %c0_29], %46 {strides = array<i32>} : memref<2x128xbf16, #tpu.memory_space<vmem>>, vector<2x128xbf16>,
    return
  }
  func.func @transform_0(%arg0: i32) -> (i32, i32) {
    %c0_i32 = arith.constant 0 : i32
    %c0_i32_0 = arith.constant 0 : i32
    return %arg0, %c0_i32 : i32, i32
  }
  func.func @transform_1(%arg0: i32) -> (i32, i32) {
    %c0_i32 = arith.constant 0 : i32
    %c0_i32_0 = arith.constant 0 : i32
    %c0_i32_1 = arith.constant 0 : i32
    return %c0_i32, %c0_i32_0 : i32, i32
  }
  func.func @transform_2(%arg0: i32) -> (i32, i32) {
    %c0_i32 = arith.constant 0 : i32
    %c0_i32_0 = arith.constant 0 : i32
    %c0_i32_1 = arith.constant 0 : i32
    return %c0_i32, %c0_i32_0 : i32, i32
  }
  func.func @transform_3(%arg0: i32) -> (i32, i32) {
    %c0_i32 = arith.constant 0 : i32
    %c0_i32_0 = arith.constant 0 : i32
    %c0_i32_1 = arith.constant 0 : i32
    return %c0_i32, %c0_i32_0 : i32, i32
  }
  func.func @transform_4(%arg0: i32) -> (i32, i32) {
    %c0_i32 = arith.constant 0 : i32
    %c0_i32_0 = arith.constant 0 : i32
    %c0_i32_1 = arith.constant 0 : i32
    return %c0_i32, %c0_i32_0 : i32, i32
  }
  func.func @transform_5(%arg0: i32) -> (i32, i32) {
    %c0_i32 = arith.constant 0 : i32
    %c0_i32_0 = arith.constant 0 : i32
    %c0_i32_1 = arith.constant 0 : i32
    return %c0_i32, %c0_i32_0 : i32, i32
  }
  func.func @transform_6(%arg0: i32) -> (i32, i32) {
    %c0_i32 = arith.constant 0 : i32
    %c0_i32_0 = arith.constant 0 : i32
    %c0_i32_1 = arith.constant 0 : i32
    return %c0_i32, %c0_i32_0 : i32, i32
  }
  func.func @transform_7(%arg0: i32) -> (i32, i32) {
    %c0_i32 = arith.constant 0 : i32
    %c0_i32_0 = arith.constant 0 : i32
    %c0_i32_1 = arith.constant 0 : i32
    return %c0_i32, %c0_i32_0 : i32, i32
  }
  func.func @transform_8(%arg0: i32) -> (i32, i32) {
    %c0_i32 = arith.constant 0 : i32
    %c0_i32_0 = arith.constant 0 : i32
    %c0_i32_1 = arith.constant 0 : i32
    return %c0_i32, %c0_i32_0 : i32, i32
  }
  func.func @transform_9(%arg0: i32) -> (i32, i32) {
    %c0_i32 = arith.constant 0 : i32
    %c0_i32_0 = arith.constant 0 : i32
    return %arg0, %c0_i32 : i32, i32
  }
}

</mosaic_0001>

<llo_original>
// kernel: tpu_custom_call.1
$region0: #{tpu_custom_call.1}
  #allocation0 [shape = 'u32[]', space=smem, size = 0x4, offset = 0x4, fixed_abs, tag = 'smem constant byte address 0x4 - core index']
  #allocation1 [shape = 'u32[72,128]{1,0:T(1,128)}', space=vmem, size = 0x9000, scoped, tag = 'internal scratch']
  %s0 = inlined_call_operand.hbm [shape: f32[2,1024], index: 0, kind: input, shape index: {}]
  %s1 = inlined_call_operand.hbm [shape: bf16[1024,1024], index: 1, kind: input, shape index: {}]
  %s2 = inlined_call_operand.hbm [shape: f32[1,1024], index: 2, kind: input, shape index: {}]
  %s3 = inlined_call_operand.hbm [shape: bf16[1024,512], index: 3, kind: input, shape index: {}]
  %s4 = inlined_call_operand.hbm [shape: f32[1,512], index: 4, kind: input, shape index: {}]
  %s5 = inlined_call_operand.hbm [shape: bf16[512,256], index: 5, kind: input, shape index: {}]
  %s6 = inlined_call_operand.hbm [shape: f32[1,256], index: 6, kind: input, shape index: {}]
  %s7 = inlined_call_operand.hbm [shape: bf16[256,128], index: 7, kind: input, shape index: {}]
  %s8 = inlined_call_operand.hbm [shape: f32[1,128], index: 8, kind: input, shape index: {}]
  %s9 = inlined_call_operand.hbm [shape: bf16[2,128], index: 9, kind: output, shape index: {}]
  %s10 = sld [smem:[#allocation0]]
  $region82: #{tpu_custom_call.1} parent=0
    _
  %s12 = ssub.s32 1, %s10
  %s13 = scalar_select 0, %s12, %s10
  $region1: #{tpu_custom_call.1} parent=0
    #allocation2 [shape = 'u8[8192]{0}', space=vmem, size = 0x2000, scoped, tag = 'input window, operand 0, single buffered']
    #allocation3 [shape = 's32[1]{0}', space=sflag, size = 0x4, scoped, tag = 'scoped memory for tpu_custom_call.1']
    #allocation4 [shape = 's32[1]{0}', space=sflag, size = 0x4, scoped, tag = 'scoped memory for tpu_custom_call.1']
    #allocation5 [shape = 'u8[2097152]{0}', space=vmem, size = 0x200000, scoped, tag = 'input window, operand 1, single buffered']
    #allocation6 [shape = 's32[1]{0}', space=sflag, size = 0x4, scoped, tag = 'scoped memory for tpu_custom_call.1']
    #allocation7 [shape = 'u8[4096]{0}', space=vmem, size = 0x1000, scoped, tag = 'input window, operand 2, single buffered']
    #allocation8 [shape = 'u8[1048576]{0}', space=vmem, size = 0x100000, scoped, tag = 'input window, operand 3, single buffered']
    #allocation9 [shape = 's32[1]{0}', space=sflag, size = 0x4, scoped, tag = 'scoped memory for tpu_custom_call.1']
    #allocation10 [shape = 'u8[2048]{0}', space=vmem, size = 0x800, scoped, tag = 'input window, operand 4, single buffered']
    #allocation11 [shape = 'u8[262144]{0}', space=vmem, size = 0x40000, scoped, tag = 'input window, operand 5, single buffered']
    #allocation12 [shape = 's32[1]{0}', space=sflag, size = 0x4, scoped, tag = 'scoped memory for tpu_custom_call.1']
    #allocation13 [shape = 'u8[1024]{0}', space=vmem, size = 0x400, scoped, tag = 'input window, operand 6, single buffered']
    #allocation14 [shape = 'u8[65536]{0}', space=vmem, size = 0x10000, scoped, tag = 'input window, operand 7, single buffered']
    #allocation15 [shape = 's32[1]{0}', space=sflag, size = 0x4, scoped, tag = 'scoped memory for tpu_custom_call.1']
    #allocation16 [shape = 'u8[512]{0}', space=vmem, size = 0x400, scoped, tag = 'input window, operand 8, single buffered']
    #allocation17 [shape = 'u8[512]{0}', space=vmem, size = 0x400, scoped, tag = 'output window, operand 0, single buffered']
    %14 = vsyncpa [#allocation3], 0
    %15 = vsyncpa [#allocation6], 0
    %16 = vsyncpa [#allocation9], 0
    %17 = vsyncpa [#allocation12], 0
    %18 = vsyncpa [#allocation15], 0
    %19 = vsyncpa [#allocation4], 0
    // Predicated region
    $region2: #{tpu_custom_call.1} parent=1 // pred_check
      _
    $region3: #{tpu_custom_call.1} parent=1 // pred_check_branch
      %21 = sbr.rel (0) target = $region5
    $region4: #{tpu_custom_call.1} parent=1 // pred_region
      %23 = vsyncadd [#allocation3], 0
      %s25 = sshll.u32 %s0, 4
      %s26 = int_to_ptr.hbm [resolvable:$true] %s25
      %s27 = sshll.u32 [#allocation2], 4
      %s28 = int_to_ptr.vmem [resolvable:$true] %s27
      %30 = dma.hbm_to_vmem [thread:$0]  %s26, 256, %s28, [#allocation3]
    $region5: #{tpu_custom_call.1} parent=1 // pred_fallthru
      _
    // Predicated region
    $region6: #{tpu_custom_call.1} parent=1 // pred_check
      _
    $region7: #{tpu_custom_call.1} parent=1 // pred_check_branch
      %32 = sbr.rel (0) target = $region9
    $region8: #{tpu_custom_call.1} parent=1 // pred_region
      %34 = vsyncadd [#allocation6], 0
      %s35 = sshll.u32 %s1, 4
      %s36 = int_to_ptr.hbm [resolvable:$true] %s35
      %s37 = sshll.u32 [#allocation5], 4
      %s38 = int_to_ptr.vmem [resolvable:$true] %s37
      %43 = dma.hbm_to_vmem [thread:$0]  %s36, 65536, %s38, [#allocation6], 512, 512, 32
    $region9: #{tpu_custom_call.1} parent=1 // pred_fallthru
      _
    // Predicated region
    $region10: #{tpu_custom_call.1} parent=1 // pred_check
      _
    $region11: #{tpu_custom_call.1} parent=1 // pred_check_branch
      %45 = sbr.rel (0) target = $region13
    $region12: #{tpu_custom_call.1} parent=1 // pred_region
      %47 = vsyncadd [#allocation6], 0
      %s49 = sshll.u32 %s2, 4
      %s50 = int_to_ptr.hbm [resolvable:$true] %s49
      %s51 = sshll.u32 [#allocation7], 4
      %s52 = int_to_ptr.vmem [resolvable:$true] %s51
      %54 = dma.hbm_to_vmem [thread:$0]  %s50, 128, %s52, [#allocation6]
    $region13: #{tpu_custom_call.1} parent=1 // pred_fallthru
      _
    // Predicated region
    $region14: #{tpu_custom_call.1} parent=1 // pred_check
      _
    $region15: #{tpu_custom_call.1} parent=1 // pred_check_branch
      %56 = sbr.rel (0) target = $region17
    $region16: #{tpu_custom_call.1} parent=1 // pred_region
      %58 = vsyncadd [#allocation9], 0
      %s59 = sshll.u32 %s3, 4
      %s60 = int_to_ptr.hbm [resolvable:$true] %s59
      %s61 = sshll.u32 [#allocation8], 4
      %s62 = int_to_ptr.vmem [resolvable:$true] %s61
      %67 = dma.hbm_to_vmem [thread:$0]  %s60, 32768, %s62, [#allocation9], 256, 256, 16
    $region17: #{tpu_custom_call.1} parent=1 // pred_fallthru
      _
    // Predicated region
    $region18: #{tpu_custom_call.1} parent=1 // pred_check
      _
    $region19: #{tpu_custom_call.1} parent=1 // pred_check_branch
      %69 = sbr.rel (0) target = $region21
    $region20: #{tpu_custom_call.1} parent=1 // pred_region
      %71 = vsyncadd [#allocation9], 0
      %s73 = sshll.u32 %s4, 4
      %s74 = int_to_ptr.hbm [resolvable:$true] %s73
      %s75 = sshll.u32 [#allocation10], 4
      %s76 = int_to_ptr.vmem [resolvable:$true] %s75
      %78 = dma.hbm_to_vmem [thread:$0]  %s74, 64, %s76, [#allocation9]
    $region21: #{tpu_custom_call.1} parent=1 // pred_fallthru
      _
    // Predicated region
    $region22: #{tpu_custom_call.1} parent=1 // pred_check
      _
    $region23: #{tpu_custom_call.1} parent=1 // pred_check_branch
      %80 = sbr.rel (0) target = $region25
    $region24: #{tpu_custom_call.1} parent=1 // pred_region
      %82 = vsyncadd [#allocation12], 0
      %s83 = sshll.u32 %s5, 4
      %s84 = int_to_ptr.hbm [resolvable:$true] %s83
      %s85 = sshll.u32 [#allocation11], 4
      %s86 = int_to_ptr.vmem [resolvable:$true] %s85
      %91 = dma.hbm_to_vmem [thread:$0]  %s84, 8192, %s86, [#allocation12], 128, 128, 8
    $region25: #{tpu_custom_call.1} parent=1 // pred_fallthru
      _
    // Predicated region
    $region26: #{tpu_custom_call.1} parent=1 // pred_check
      _
    $region27: #{tpu_custom_call.1} parent=1 // pred_check_branch
      %93 = sbr.rel (0) target = $region29
    $region28: #{tpu_custom_call.1} parent=1 // pred_region
      %95 = vsyncadd [#allocation12], 0
      %s97 = sshll.u32 %s6, 4
      %s98 = int_to_ptr.hbm [resolvable:$true] %s97
      %s99 = sshll.u32 [#allocation13], 4
      %s100 = int_to_ptr.vmem [resolvable:$true] %s99
      %102 = dma.hbm_to_vmem [thread:$0]  %s98, 32, %s100, [#allocation12]
    $region29: #{tpu_custom_call.1} parent=1 // pred_fallthru
      _
    // Predicated region
    $region30: #{tpu_custom_call.1} parent=1 // pred_check
      _
    $region31: #{tpu_custom_call.1} parent=1 // pred_check_branch
      %104 = sbr.rel (0) target = $region33
    $region32: #{tpu_custom_call.1} parent=1 // pred_region
      %106 = vsyncadd [#allocation15], 0
      %s107 = sshll.u32 %s7, 4
      %s108 = int_to_ptr.hbm [resolvable:$true] %s107
      %s109 = sshll.u32 [#allocation14], 4
      %s110 = int_to_ptr.vmem [resolvable:$true] %s109
      %115 = dma.hbm_to_vmem [thread:$0]  %s108, 2048, %s110, [#allocation15], 64, 64, 4
    $region33: #{tpu_custom_call.1} parent=1 // pred_fallthru
      _
    // Predicated region
    $region34: #{tpu_custom_call.1} parent=1 // pred_check
      _
    $region35: #{tpu_custom_call.1} parent=1 // pred_check_branch
      %117 = sbr.rel (0) target = $region37
    $region36: #{tpu_custom_call.1} parent=1 // pred_region
      %119 = vsyncadd [#allocation15], 0
      %s121 = sshll.u32 %s8, 4
      %s122 = int_to_ptr.hbm [resolvable:$true] %s121
      %s123 = sshll.u32 [#allocation16], 4
      %s124 = int_to_ptr.vmem [resolvable:$true] %s123
      %126 = dma.hbm_to_vmem [thread:$0]  %s122, 16, %s124, [#allocation15]
    $region37: #{tpu_custom_call.1} parent=1 // pred_fallthru
      _
    // Predicated region
    $region38: #{tpu_custom_call.1} parent=1 // pred_check
      _
    $region39: #{tpu_custom_call.1} parent=1 // pred_check_branch
      %128 = sbr.rel (0) target = $region41
    $region40: #{tpu_custom_call.1} parent=1 // pred_region
      %130 = dma.done [#allocation3], 256
    $region41: #{tpu_custom_call.1} parent=1 // pred_fallthru
      _
    // Predicated region
    $region42: #{tpu_custom_call.1} parent=1 // pred_check
      _
    $region43: #{tpu_custom_call.1} parent=1 // pred_check_branch
      %132 = sbr.rel (0) target = $region45
    $region44: #{tpu_custom_call.1} parent=1 // pred_region
      %134 = dma.done [#allocation6], 65536
    $region45: #{tpu_custom_call.1} parent=1 // pred_fallthru
      _
    // Predicated region
    $region46: #{tpu_custom_call.1} parent=1 // pred_check
      _
    $region47: #{tpu_custom_call.1} parent=1 // pred_check_branch
      %136 = sbr.rel (0) target = $region49
    $region48: #{tpu_custom_call.1} parent=1 // pred_region
      %138 = dma.done [#allocation6], 128
    $region49: #{tpu_custom_call.1} parent=1 // pred_fallthru
      _
    // Predicated region
    $region50: #{tpu_custom_call.1} parent=1 // pred_check
      _
    $region51: #{tpu_custom_call.1} parent=1 // pred_check_branch
      %140 = sbr.rel (0) target = $region53
    $region52: #{tpu_custom_call.1} parent=1 // pred_region
      %142 = dma.done [#allocation9], 32768
    $region53: #{tpu_custom_call.1} parent=1 // pred_fallthru
      _
    // Predicated region
    $region54: #{tpu_custom_call.1} parent=1 // pred_check
      _
    $region55: #{tpu_custom_call.1} parent=1 // pred_check_branch
      %144 = sbr.rel (0) target = $region57
    $region56: #{tpu_custom_call.1} parent=1 // pred_region
      %146 = dma.done [#allocation9], 64
    $region57: #{tpu_custom_call.1} parent=1 // pred_fallthru
      _
    // Predicated region
    $region58: #{tpu_custom_call.1} parent=1 // pred_check
      _
    $region59: #{tpu_custom_call.1} parent=1 // pred_check_branch
      %148 = sbr.rel (0) target = $region61
    $region60: #{tpu_custom_call.1} parent=1 // pred_region
      %150 = dma.done [#allocation12], 8192
    $region61: #{tpu_custom_call.1} parent=1 // pred_fallthru
      _
    // Predicated region
    $region62: #{tpu_custom_call.1} parent=1 // pred_check
      _
    $region63: #{tpu_custom_call.1} parent=1 // pred_check_branch
      %152 = sbr.rel (0) target = $region65
    $region64: #{tpu_custom_call.1} parent=1 // pred_region
      %154 = dma.done [#allocation12], 32
    $region65: #{tpu_custom_call.1} parent=1 // pred_fallthru
      _
    // Predicated region
    $region66: #{tpu_custom_call.1} parent=1 // pred_check
      _
    $region67: #{tpu_custom_call.1} parent=1 // pred_check_branch
      %156 = sbr.rel (0) target = $region69
    $region68: #{tpu_custom_call.1} parent=1 // pred_region
      %158 = dma.done [#allocation15], 2048
    $region69: #{tpu_custom_call.1} parent=1 // pred_fallthru
      _
    // Predicated region
    $region70: #{tpu_custom_call.1} parent=1 // pred_check
      _
    $region71: #{tpu_custom_call.1} parent=1 // pred_check_branch
      %160 = sbr.rel (0) target = $region73
    $region72: #{tpu_custom_call.1} parent=1 // pred_region
      %162 = dma.done [#allocation15], 16
    $region73: #{tpu_custom_call.1} parent=1 // pred_fallthru
      _
    %v163 = vld [vmem:[#allocation2] sm:$0xff]
    %v164 = vld [vmem:[#allocation2 + $0x8] sm:$0xff]
    %167 = vst [vmem:[#allocation1] ss:$4 sm:$0xff] %v163
    %s168 = scalar_lea.vmem [#allocation1], 32
    %169 = vst [vmem:[%s168] ss:$4 sm:$0xff] %v164
    %v170 = vld.sshfl [vmem:[#allocation1] sm:$0xff pattern:$0x73625140]
    %v171 = vld.sshfl [vmem:[#allocation1 + $0x8] sm:$0xff pattern:$0x73625140]
    %v172 = vld.sshfl [vmem:[#allocation1 + $0x10] sm:$0xff pattern:$0x73625140]
    %v173 = vld.sshfl [vmem:[#allocation1 + $0x18] sm:$0xff pattern:$0x73625140]
    %v174 = vld.sshfl [vmem:[#allocation1 + $0x20] sm:$0xff pattern:$0x73625140]
    %v175 = vld.sshfl [vmem:[#allocation1 + $0x28] sm:$0xff pattern:$0x73625140]
    %v176 = vld.sshfl [vmem:[#allocation1 + $0x30] sm:$0xff pattern:$0x73625140]
    %v177 = vld.sshfl [vmem:[#allocation1 + $0x38] sm:$0xff pattern:$0x73625140]
    %v186 = vpack.c.bf16 %v170, %v170
    %v187 = vpack.c.bf16 %v171, %v171
    %v188 = vpack.c.bf16 %v172, %v172
    %v189 = vpack.c.bf16 %v173, %v173
    %v190 = vpack.c.bf16 %v174, %v174
    %v191 = vpack.c.bf16 %v175, %v175
    %v192 = vpack.c.bf16 %v176, %v176
    %v193 = vpack.c.bf16 %v177, %v177
    %v194 = vld [vmem:[#allocation5] sm:$0xff]
    %v195 = vld [vmem:[#allocation5 + $0x8] sm:$0xff]
    %v196 = vld [vmem:[#allocation5 + $0x10] sm:$0xff]
    %v197 = vld [vmem:[#allocation5 + $0x18] sm:$0xff]
    %v198 = vld [vmem:[#allocation5 + $0x20] sm:$0xff]
    %v199 = vld [vmem:[#allocation5 + $0x28] sm:$0xff]
    %v200 = vld [vmem:[#allocation5 + $0x30] sm:$0xff]
    %v201 = vld [vmem:[#allocation5 + $0x38] sm:$0xff]
    %v202 = vld [vmem:[#allocation5 + $0x40] sm:$0xff]
    %v203 = vld [vmem:[#allocation5 + $0x48] sm:$0xff]
    %v204 = vld [vmem:[#allocation5 + $0x50] sm:$0xff]
    %v205 = vld [vmem:[#allocation5 + $0x58] sm:$0xff]
    %v206 = vld [vmem:[#allocation5 + $0x60] sm:$0xff]
    %v207 = vld [vmem:[#allocation5 + $0x68] sm:$0xff]
    %v208 = vld [vmem:[#allocation5 + $0x70] sm:$0xff]
    %v209 = vld [vmem:[#allocation5 + $0x78] sm:$0xff]
    %v210 = vld [vmem:[#allocation5 + $0x80] sm:$0xff]
    %v211 = vld [vmem:[#allocation5 + $0x88] sm:$0xff]
    %v212 = vld [vmem:[#allocation5 + $0x90] sm:$0xff]
    %v213 = vld [vmem:[#allocation5 + $0x98] sm:$0xff]
    %v214 = vld [vmem:[#allocation5 + $0xa0] sm:$0xff]
    %v215 = vld [vmem:[#allocation5 + $0xa8] sm:$0xff]
    %v216 = vld [vmem:[#allocation5 + $0xb0] sm:$0xff]
    %v217 = vld [vmem:[#allocation5 + $0xb8] sm:$0xff]
    %v218 = vld [vmem:[#allocation5 + $0xc0] sm:$0xff]
    %v219 = vld [vmem:[#allocation5 + $0xc8] sm:$0xff]
    %v220 = vld [vmem:[#allocation5 + $0xd0] sm:$0xff]
    %v221 = vld [vmem:[#allocation5 + $0xd8] sm:$0xff]
    %v222 = vld [vmem:[#allocation5 + $0xe0] sm:$0xff]
    %v223 = vld [vmem:[#allocation5 + $0xe8] sm:$0xff]
    %v224 = vld [vmem:[#allocation5 + $0xf0] sm:$0xff]
    %v225 = vld [vmem:[#allocation5 + $0xf8] sm:$0xff]
    %v226 = vld [vmem:[#allocation5 + $0x100] sm:$0xff]
    %v227 = vld [vmem:[#allocation5 + $0x108] sm:$0xff]
    %v228 = vld [vmem:[#allocation5 + $0x110] sm:$0xff]
    %v229 = vld [vmem:[#allocation5 + $0x118] sm:$0xff]
    %v230 = vld [vmem:[#allocation5 + $0x120] sm:$0xff]
    %v231 = vld [vmem:[#allocation5 + $0x128] sm:$0xff]
    %v232 = vld [vmem:[#allocation5 + $0x130] sm:$0xff]
    %v233 = vld [vmem:[#allocation5 + $0x138] sm:$0xff]
    %v234 = vld [vmem:[#allocation5 + $0x140] sm:$0xff]
    %v235 = vld [vmem:[#allocation5 + $0x148] sm:$0xff]
    %v236 = vld [vmem:[#allocation5 + $0x150] sm:$0xff]
    %v237 = vld [vmem:[#allocation5 + $0x158] sm:$0xff]
    %v238 = vld [vmem:[#allocation5 + $0x160] sm:$0xff]
    %v239 = vld [vmem:[#allocation5 + $0x168] sm:$0xff]
    %v240 = vld [vmem:[#allocation5 + $0x170] sm:$0xff]
    %v241 = vld [vmem:[#allocation5 + $0x178] sm:$0xff]
    %v242 = vld [vmem:[#allocation5 + $0x180] sm:$0xff]
    %v243 = vld [vmem:[#allocation5 + $0x188] sm:$0xff]
    %v244 = vld [vmem:[#allocation5 + $0x190] sm:$0xff]
    %v245 = vld [vmem:[#allocation5 + $0x198] sm:$0xff]
    %v246 = vld [vmem:[#allocation5 + $0x1a0] sm:$0xff]
    %v247 = vld [vmem:[#allocation5 + $0x1a8] sm:$0xff]
    %v248 = vld [vmem:[#allocation5 + $0x1b0] sm:$0xff]
    %v249 = vld [vmem:[#allocation5 + $0x1b8] sm:$0xff]
    %v250 = vld [vmem:[#allocation5 + $0x1c0] sm:$0xff]
    %v251 = vld [vmem:[#allocation5 + $0x1c8] sm:$0xff]
    %v252 = vld [vmem:[#allocation5 + $0x1d0] sm:$0xff]
    %v253 = vld [vmem:[#allocation5 + $0x1d8] sm:$0xff]
    %v254 = vld [vmem:[#allocation5 + $0x1e0] sm:$0xff]
    %v255 = vld [vmem:[#allocation5 + $0x1e8] sm:$0xff]
    %v256 = vld [vmem:[#allocation5 + $0x1f0] sm:$0xff]
    %v257 = vld [vmem:[#allocation5 + $0x1f8] sm:$0xff]
    %v258 = vld [vmem:[#allocation5 + $0x200] sm:$0xff]
    %v259 = vld [vmem:[#allocation5 + $0x208] sm:$0xff]
    %v260 = vld [vmem:[#allocation5 + $0x210] sm:$0xff]
    %v261 = vld [vmem:[#allocation5 + $0x218] sm:$0xff]
    %v262 = vld [vmem:[#allocation5 + $0x220] sm:$0xff]
    %v263 = vld [vmem:[#allocation5 + $0x228] sm:$0xff]
    %v264 = vld [vmem:[#allocation5 + $0x230] sm:$0xff]
    %v265 = vld [vmem:[#allocation5 + $0x238] sm:$0xff]
    %v266 = vld [vmem:[#allocation5 + $0x240] sm:$0xff]
    %v267 = vld [vmem:[#allocation5 + $0x248] sm:$0xff]
    %v268 = vld [vmem:[#allocation5 + $0x250] sm:$0xff]
    %v269 = vld [vmem:[#allocation5 + $0x258] sm:$0xff]
    %v270 = vld [vmem:[#allocation5 + $0x260] sm:$0xff]
    %v271 = vld [vmem:[#allocation5 + $0x268] sm:$0xff]
    %v272 = vld [vmem:[#allocation5 + $0x270] sm:$0xff]
    %v273 = vld [vmem:[#allocation5 + $0x278] sm:$0xff]
    %v274 = vld [vmem:[#allocation5 + $0x280] sm:$0xff]
    %v275 = vld [vmem:[#allocation5 + $0x288] sm:$0xff]
    %v276 = vld [vmem:[#allocation5 + $0x290] sm:$0xff]
    %v277 = vld [vmem:[#allocation5 + $0x298] sm:$0xff]
    %v278 = vld [vmem:[#allocation5 + $0x2a0] sm:$0xff]
    %v279 = vld [vmem:[#allocation5 + $0x2a8] sm:$0xff]
    %v280 = vld [vmem:[#allocation5 + $0x2b0] sm:$0xff]
    %v281 = vld [vmem:[#allocation5 + $0x2b8] sm:$0xff]
    %v282 = vld [vmem:[#allocation5 + $0x2c0] sm:$0xff]
    %v283 = vld [vmem:[#allocation5 + $0x2c8] sm:$0xff]
    %v284 = vld [vmem:[#allocation5 + $0x2d0] sm:$0xff]
    %v285 = vld [vmem:[#allocation5 + $0x2d8] sm:$0xff]
    %v286 = vld [vmem:[#allocation5 + $0x2e0] sm:$0xff]
    %v287 = vld [vmem:[#allocation5 + $0x2e8] sm:$0xff]
    %v288 = vld [vmem:[#allocation5 + $0x2f0] sm:$0xff]
    %v289 = vld [vmem:[#allocation5 + $0x2f8] sm:$0xff]
    %v290 = vld [vmem:[#allocation5 + $0x300] sm:$0xff]
    %v291 = vld [vmem:[#allocation5 + $0x308] sm:$0xff]
    %v292 = vld [vmem:[#allocation5 + $0x310] sm:$0xff]
    %v293 = vld [vmem:[#allocation5 + $0x318] sm:$0xff]
    %v294 = vld [vmem:[#allocation5 + $0x320] sm:$0xff]
    %v295 = vld [vmem:[#allocation5 + $0x328] sm:$0xff]
    %v296 = vld [vmem:[#allocation5 + $0x330] sm:$0xff]
    %v297 = vld [vmem:[#allocation5 + $0x338] sm:$0xff]
    %v298 = vld [vmem:[#allocation5 + $0x340] sm:$0xff]
    %v299 = vld [vmem:[#allocation5 + $0x348] sm:$0xff]
    %v300 = vld [vmem:[#allocation5 + $0x350] sm:$0xff]
    %v301 = vld [vmem:[#allocation5 + $0x358] sm:$0xff]
    %v302 = vld [vmem:[#allocation5 + $0x360] sm:$0xff]
    %v303 = vld [vmem:[#allocation5 + $0x368] sm:$0xff]
    %v304 = vld [vmem:[#allocation5 + $0x370] sm:$0xff]
    %v305 = vld [vmem:[#allocation5 + $0x378] sm:$0xff]
    %v306 = vld [vmem:[#allocation5 + $0x380] sm:$0xff]
    %v307 = vld [vmem:[#allocation5 + $0x388] sm:$0xff]
    %v308 = vld [vmem:[#allocation5 + $0x390] sm:$0xff]
    %v309 = vld [vmem:[#allocation5 + $0x398] sm:$0xff]
    %v310 = vld [vmem:[#allocation5 + $0x3a0] sm:$0xff]
    %v311 = vld [vmem:[#allocation5 + $0x3a8] sm:$0xff]
    %v312 = vld [vmem:[#allocation5 + $0x3b0] sm:$0xff]
    %v313 = vld [vmem:[#allocation5 + $0x3b8] sm:$0xff]
    %v314 = vld [vmem:[#allocation5 + $0x3c0] sm:$0xff]
    %v315 = vld [vmem:[#allocation5 + $0x3c8] sm:$0xff]
    %v316 = vld [vmem:[#allocation5 + $0x3d0] sm:$0xff]
    %v317 = vld [vmem:[#allocation5 + $0x3d8] sm:$0xff]
    %v318 = vld [vmem:[#allocation5 + $0x3e0] sm:$0xff]
    %v319 = vld [vmem:[#allocation5 + $0x3e8] sm:$0xff]
    %v320 = vld [vmem:[#allocation5 + $0x3f0] sm:$0xff]
    %v321 = vld [vmem:[#allocation5 + $0x3f8] sm:$0xff]
    %v322 = vld [vmem:[#allocation5 + $0x400] sm:$0xff]
    %v323 = vld [vmem:[#allocation5 + $0x408] sm:$0xff]
    %v324 = vld [vmem:[#allocation5 + $0x410] sm:$0xff]
    %v325 = vld [vmem:[#allocation5 + $0x418] sm:$0xff]
    %v326 = vld [vmem:[#allocation5 + $0x420] sm:$0xff]
    %v327 = vld [vmem:[#allocation5 + $0x428] sm:$0xff]
    %v328 = vld [vmem:[#allocation5 + $0x430] sm:$0xff]
    %v329 = vld [vmem:[#allocation5 + $0x438] sm:$0xff]
    %v330 = vld [vmem:[#allocation5 + $0x440] sm:$0xff]
    %v331 = vld [vmem:[#allocation5 + $0x448] sm:$0xff]
    %v332 = vld [vmem:[#allocation5 + $0x450] sm:$0xff]
    %v333 = vld [vmem:[#allocation5 + $0x458] sm:$0xff]
    %v334 = vld [vmem:[#allocation5 + $0x460] sm:$0xff]
    %v335 = vld [vmem:[#allocation5 + $0x468] sm:$0xff]
    %v336 = vld [vmem:[#allocation5 + $0x470] sm:$0xff]
    %v337 = vld [vmem:[#allocation5 + $0x478] sm:$0xff]
    %v338 = vld [vmem:[#allocation5 + $0x480] sm:$0xff]
    %v339 = vld [vmem:[#allocation5 + $0x488] sm:$0xff]
    %v340 = vld [vmem:[#allocation5 + $0x490] sm:$0xff]
    %v341 = vld [vmem:[#allocation5 + $0x498] sm:$0xff]
    %v342 = vld [vmem:[#allocation5 + $0x4a0] sm:$0xff]
    %v343 = vld [vmem:[#allocation5 + $0x4a8] sm:$0xff]
    %v344 = vld [vmem:[#allocation5 + $0x4b0] sm:$0xff]
    %v345 = vld [vmem:[#allocation5 + $0x4b8] sm:$0xff]
    %v346 = vld [vmem:[#allocation5 + $0x4c0] sm:$0xff]
    %v347 = vld [vmem:[#allocation5 + $0x4c8] sm:$0xff]
    %v348 = vld [vmem:[#allocation5 + $0x4d0] sm:$0xff]
    %v349 = vld [vmem:[#allocation5 + $0x4d8] sm:$0xff]
    %v350 = vld [vmem:[#allocation5 + $0x4e0] sm:$0xff]
    %v351 = vld [vmem:[#allocation5 + $0x4e8] sm:$0xff]
    %v352 = vld [vmem:[#allocation5 + $0x4f0] sm:$0xff]
    %v353 = vld [vmem:[#allocation5 + $0x4f8] sm:$0xff]
    %v354 = vld [vmem:[#allocation5 + $0x500] sm:$0xff]
    %v355 = vld [vmem:[#allocation5 + $0x508] sm:$0xff]
    %v356 = vld [vmem:[#allocation5 + $0x510] sm:$0xff]
    %v357 = vld [vmem:[#allocation5 + $0x518] sm:$0xff]
    %v358 = vld [vmem:[#allocation5 + $0x520] sm:$0xff]
    %v359 = vld [vmem:[#allocation5 + $0x528] sm:$0xff]
    %v360 = vld [vmem:[#allocation5 + $0x530] sm:$0xff]
    %v361 = vld [vmem:[#allocation5 + $0x538] sm:$0xff]
    %v362 = vld [vmem:[#allocation5 + $0x540] sm:$0xff]
    %v363 = vld [vmem:[#allocation5 + $0x548] sm:$0xff]
    %v364 = vld [vmem:[#allocation5 + $0x550] sm:$0xff]
    %v365 = vld [vmem:[#allocation5 + $0x558] sm:$0xff]
    %v366 = vld [vmem:[#allocation5 + $0x560] sm:$0xff]
    %v367 = vld [vmem:[#allocation5 + $0x568] sm:$0xff]
    %v368 = vld [vmem:[#allocation5 + $0x570] sm:$0xff]
    %v369 = vld [vmem:[#allocation5 + $0x578] sm:$0xff]
    %v370 = vld [vmem:[#allocation5 + $0x580] sm:$0xff]
    %v371 = vld [vmem:[#allocation5 + $0x588] sm:$0xff]
    %v372 = vld [vmem:[#allocation5 + $0x590] sm:$0xff]
    %v373 = vld [vmem:[#allocation5 + $0x598] sm:$0xff]
    %v374 = vld [vmem:[#allocation5 + $0x5a0] sm:$0xff]
    %v375 = vld [vmem:[#allocation5 + $0x5a8] sm:$0xff]
    %v376 = vld [vmem:[#allocation5 + $0x5b0] sm:$0xff]
    %v377 = vld [vmem:[#allocation5 + $0x5b8] sm:$0xff]
    %v378 = vld [vmem:[#allocation5 + $0x5c0] sm:$0xff]
    %v379 = vld [vmem:[#allocation5 + $0x5c8] sm:$0xff]
    %v380 = vld [vmem:[#allocation5 + $0x5d0] sm:$0xff]
    %v381 = vld [vmem:[#allocation5 + $0x5d8] sm:$0xff]
    %v382 = vld [vmem:[#allocation5 + $0x5e0] sm:$0xff]
    %v383 = vld [vmem:[#allocation5 + $0x5e8] sm:$0xff]
    %v384 = vld [vmem:[#allocation5 + $0x5f0] sm:$0xff]
    %v385 = vld [vmem:[#allocation5 + $0x5f8] sm:$0xff]
    %v386 = vld [vmem:[#allocation5 + $0x600] sm:$0xff]
    %v387 = vld [vmem:[#allocation5 + $0x608] sm:$0xff]
    %v388 = vld [vmem:[#allocation5 + $0x610] sm:$0xff]
    %v389 = vld [vmem:[#allocation5 + $0x618] sm:$0xff]
    %v390 = vld [vmem:[#allocation5 + $0x620] sm:$0xff]
    %v391 = vld [vmem:[#allocation5 + $0x628] sm:$0xff]
    %v392 = vld [vmem:[#allocation5 + $0x630] sm:$0xff]
    %v393 = vld [vmem:[#allocation5 + $0x638] sm:$0xff]
    %v394 = vld [vmem:[#allocation5 + $0x640] sm:$0xff]
    %v395 = vld [vmem:[#allocation5 + $0x648] sm:$0xff]
    %v396 = vld [vmem:[#allocation5 + $0x650] sm:$0xff]
    %v397 = vld [vmem:[#allocation5 + $0x658] sm:$0xff]
    %v398 = vld [vmem:[#allocation5 + $0x660] sm:$0xff]
    %v399 = vld [vmem:[#allocation5 + $0x668] sm:$0xff]
    %v400 = vld [vmem:[#allocation5 + $0x670] sm:$0xff]
    %v401 = vld [vmem:[#allocation5 + $0x678] sm:$0xff]
    %v402 = vld [vmem:[#allocation5 + $0x680] sm:$0xff]
    %v403 = vld [vmem:[#allocation5 + $0x688] sm:$0xff]
    %v404 = vld [vmem:[#allocation5 + $0x690] sm:$0xff]
    %v405 = vld [vmem:[#allocation5 + $0x698] sm:$0xff]
    %v406 = vld [vmem:[#allocation5 + $0x6a0] sm:$0xff]
    %v407 = vld [vmem:[#allocation5 + $0x6a8] sm:$0xff]
    %v408 = vld [vmem:[#allocation5 + $0x6b0] sm:$0xff]
    %v409 = vld [vmem:[#allocation5 + $0x6b8] sm:$0xff]
    %v410 = vld [vmem:[#allocation5 + $0x6c0] sm:$0xff]
    %v411 = vld [vmem:[#allocation5 + $0x6c8] sm:$0xff]
    %v412 = vld [vmem:[#allocation5 + $0x6d0] sm:$0xff]
    %v413 = vld [vmem:[#allocation5 + $0x6d8] sm:$0xff]
    %v414 = vld [vmem:[#allocation5 + $0x6e0] sm:$0xff]
    %v415 = vld [vmem:[#allocation5 + $0x6e8] sm:$0xff]
    %v416 = vld [vmem:[#allocation5 + $0x6f0] sm:$0xff]
    %v417 = vld [vmem:[#allocation5 + $0x6f8] sm:$0xff]
    %v418 = vld [vmem:[#allocation5 + $0x700] sm:$0xff]
    %v419 = vld [vmem:[#allocation5 + $0x708] sm:$0xff]
    %v420 = vld [vmem:[#allocation5 + $0x710] sm:$0xff]
    %v421 = vld [vmem:[#allocation5 + $0x718] sm:$0xff]
    %v422 = vld [vmem:[#allocation5 + $0x720] sm:$0xff]
    %v423 = vld [vmem:[#allocation5 + $0x728] sm:$0xff]
    %v424 = vld [vmem:[#allocation5 + $0x730] sm:$0xff]
    %v425 = vld [vmem:[#allocation5 + $0x738] sm:$0xff]
    %v426 = vld [vmem:[#allocation5 + $0x740] sm:$0xff]
    %v427 = vld [vmem:[#allocation5 + $0x748] sm:$0xff]
    %v428 = vld [vmem:[#allocation5 + $0x750] sm:$0xff]
    %v429 = vld [vmem:[#allocation5 + $0x758] sm:$0xff]
    %v430 = vld [vmem:[#allocation5 + $0x760] sm:$0xff]
    %v431 = vld [vmem:[#allocation5 + $0x768] sm:$0xff]
    %v432 = vld [vmem:[#allocation5 + $0x770] sm:$0xff]
    %v433 = vld [vmem:[#allocation5 + $0x778] sm:$0xff]
    %v434 = vld [vmem:[#allocation5 + $0x780] sm:$0xff]
    %v435 = vld [vmem:[#allocation5 + $0x788] sm:$0xff]
    %v436 = vld [vmem:[#allocation5 + $0x790] sm:$0xff]
    %v437 = vld [vmem:[#allocation5 + $0x798] sm:$0xff]
    %v438 = vld [vmem:[#allocation5 + $0x7a0] sm:$0xff]
    %v439 = vld [vmem:[#allocation5 + $0x7a8] sm:$0xff]
    %v440 = vld [vmem:[#allocation5 + $0x7b0] sm:$0xff]
    %v441 = vld [vmem:[#allocation5 + $0x7b8] sm:$0xff]
    %v442 = vld [vmem:[#allocation5 + $0x7c0] sm:$0xff]
    %v443 = vld [vmem:[#allocation5 + $0x7c8] sm:$0xff]
    %v444 = vld [vmem:[#allocation5 + $0x7d0] sm:$0xff]
    %v445 = vld [vmem:[#allocation5 + $0x7d8] sm:$0xff]
    %v446 = vld [vmem:[#allocation5 + $0x7e0] sm:$0xff]
    %v447 = vld [vmem:[#allocation5 + $0x7e8] sm:$0xff]
    %v448 = vld [vmem:[#allocation5 + $0x7f0] sm:$0xff]
    %v449 = vld [vmem:[#allocation5 + $0x7f8] sm:$0xff]
    %v450 = vld [vmem:[#allocation5 + $0x800] sm:$0xff]
    %v451 = vld [vmem:[#allocation5 + $0x808] sm:$0xff]
    %v452 = vld [vmem:[#allocation5 + $0x810] sm:$0xff]
    %v453 = vld [vmem:[#allocation5 + $0x818] sm:$0xff]
    %v454 = vld [vmem:[#allocation5 + $0x820] sm:$0xff]
    %v455 = vld [vmem:[#allocation5 + $0x828] sm:$0xff]
    %v456 = vld [vmem:[#allocation5 + $0x830] sm:$0xff]
    %v457 = vld [vmem:[#allocation5 + $0x838] sm:$0xff]
    %v458 = vld [vmem:[#allocation5 + $0x840] sm:$0xff]
    %v459 = vld [vmem:[#allocation5 + $0x848] sm:$0xff]
    %v460 = vld [vmem:[#allocation5 + $0x850] sm:$0xff]
    %v461 = vld [vmem:[#allocation5 + $0x858] sm:$0xff]
    %v462 = vld [vmem:[#allocation5 + $0x860] sm:$0xff]
    %v463 = vld [vmem:[#allocation5 + $0x868] sm:$0xff]
    %v464 = vld [vmem:[#allocation5 + $0x870] sm:$0xff]
    %v465 = vld [vmem:[#allocation5 + $0x878] sm:$0xff]
    %v466 = vld [vmem:[#allocation5 + $0x880] sm:$0xff]
    %v467 = vld [vmem:[#allocation5 + $0x888] sm:$0xff]
    %v468 = vld [vmem:[#allocation5 + $0x890] sm:$0xff]
    %v469 = vld [vmem:[#allocation5 + $0x898] sm:$0xff]
    %v470 = vld [vmem:[#allocation5 + $0x8a0] sm:$0xff]
    %v471 = vld [vmem:[#allocation5 + $0x8a8] sm:$0xff]
    %v472 = vld [vmem:[#allocation5 + $0x8b0] sm:$0xff]
    %v473 = vld [vmem:[#allocation5 + $0x8b8] sm:$0xff]
    %v474 = vld [vmem:[#allocation5 + $0x8c0] sm:$0xff]
    %v475 = vld [vmem:[#allocation5 + $0x8c8] sm:$0xff]
    %v476 = vld [vmem:[#allocation5 + $0x8d0] sm:$0xff]
    %v477 = vld [vmem:[#allocation5 + $0x8d8] sm:$0xff]
    %v478 = vld [vmem:[#allocation5 + $0x8e0] sm:$0xff]
    %v479 = vld [vmem:[#allocation5 + $0x8e8] sm:$0xff]
    %v480 = vld [vmem:[#allocation5 + $0x8f0] sm:$0xff]
    %v481 = vld [vmem:[#allocation5 + $0x8f8] sm:$0xff]
    %v482 = vld [vmem:[#allocation5 + $0x900] sm:$0xff]
    %v483 = vld [vmem:[#allocation5 + $0x908] sm:$0xff]
    %v484 = vld [vmem:[#allocation5 + $0x910] sm:$0xff]
    %v485 = vld [vmem:[#allocation5 + $0x918] sm:$0xff]
    %v486 = vld [vmem:[#allocation5 + $0x920] sm:$0xff]
    %v487 = vld [vmem:[#allocation5 + $0x928] sm:$0xff]
    %v488 = vld [vmem:[#allocation5 + $0x930] sm:$0xff]
    %v489 = vld [vmem:[#allocation5 + $0x938] sm:$0xff]
    %v490 = vld [vmem:[#allocation5 + $0x940] sm:$0xff]
    %v491 = vld [vmem:[#allocation5 + $0x948] sm:$0xff]
    %v492 = vld [vmem:[#allocation5 + $0x950] sm:$0xff]
    %v493 = vld [vmem:[#allocation5 + $0x958] sm:$0xff]
    %v494 = vld [vmem:[#allocation5 + $0x960] sm:$0xff]
    %v495 = vld [vmem:[#allocation5 + $0x968] sm:$0xff]
    %v496 = vld [vmem:[#allocation5 + $0x970] sm:$0xff]
    %v497 = vld [vmem:[#allocation5 + $0x978] sm:$0xff]
    %v498 = vld [vmem:[#allocation5 + $0x980] sm:$0xff]
    %v499 = vld [vmem:[#allocation5 + $0x988] sm:$0xff]
    %v500 = vld [vmem:[#allocation5 + $0x990] sm:$0xff]
    %v501 = vld [vmem:[#allocation5 + $0x998] sm:$0xff]
    %v502 = vld [vmem:[#allocation5 + $0x9a0] sm:$0xff]
    %v503 = vld [vmem:[#allocation5 + $0x9a8] sm:$0xff]
    %v504 = vld [vmem:[#allocation5 + $0x9b0] sm:$0xff]
    %v505 = vld [vmem:[#allocation5 + $0x9b8] sm:$0xff]
    %v506 = vld [vmem:[#allocation5 + $0x9c0] sm:$0xff]
    %v507 = vld [vmem:[#allocation5 + $0x9c8] sm:$0xff]
    %v508 = vld [vmem:[#allocation5 + $0x9d0] sm:$0xff]
    %v509 = vld [vmem:[#allocation5 + $0x9d8] sm:$0xff]
    %v510 = vld [vmem:[#allocation5 + $0x9e0] sm:$0xff]
    %v511 = vld [vmem:[#allocation5 + $0x9e8] sm:$0xff]
    %v512 = vld [vmem:[#allocation5 + $0x9f0] sm:$0xff]
    %v513 = vld [vmem:[#allocation5 + $0x9f8] sm:$0xff]
    %v514 = vld [vmem:[#allocation5 + $0xa00] sm:$0xff]
    %v515 = vld [vmem:[#allocation5 + $0xa08] sm:$0xff]
    %v516 = vld [vmem:[#allocation5 + $0xa10] sm:$0xff]
    %v517 = vld [vmem:[#allocation5 + $0xa18] sm:$0xff]
    %v518 = vld [vmem:[#allocation5 + $0xa20] sm:$0xff]
    %v519 = vld [vmem:[#allocation5 + $0xa28] sm:$0xff]
    %v520 = vld [vmem:[#allocation5 + $0xa30] sm:$0xff]
    %v521 = vld [vmem:[#allocation5 + $0xa38] sm:$0xff]
    %v522 = vld [vmem:[#allocation5 + $0xa40] sm:$0xff]
    %v523 = vld [vmem:[#allocation5 + $0xa48] sm:$0xff]
    %v524 = vld [vmem:[#allocation5 + $0xa50] sm:$0xff]
    %v525 = vld [vmem:[#allocation5 + $0xa58] sm:$0xff]
    %v526 = vld [vmem:[#allocation5 + $0xa60] sm:$0xff]
    %v527 = vld [vmem:[#allocation5 + $0xa68] sm:$0xff]
    %v528 = vld [vmem:[#allocation5 + $0xa70] sm:$0xff]
    %v529 = vld [vmem:[#allocation5 + $0xa78] sm:$0xff]
    %v530 = vld [vmem:[#allocation5 + $0xa80] sm:$0xff]
    %v531 = vld [vmem:[#allocation5 + $0xa88] sm:$0xff]
    %v532 = vld [vmem:[#allocation5 + $0xa90] sm:$0xff]
    %v533 = vld [vmem:[#allocation5 + $0xa98] sm:$0xff]
    %v534 = vld [vmem:[#allocation5 + $0xaa0] sm:$0xff]
    %v535 = vld [vmem:[#allocation5 + $0xaa8] sm:$0xff]
    %v536 = vld [vmem:[#allocation5 + $0xab0] sm:$0xff]
    %v537 = vld [vmem:[#allocation5 + $0xab8] sm:$0xff]
    %v538 = vld [vmem:[#allocation5 + $0xac0] sm:$0xff]
    %v539 = vld [vmem:[#allocation5 + $0xac8] sm:$0xff]
    %v540 = vld [vmem:[#allocation5 + $0xad0] sm:$0xff]
    %v541 = vld [vmem:[#allocation5 + $0xad8] sm:$0xff]
    %v542 = vld [vmem:[#allocation5 + $0xae0] sm:$0xff]
    %v543 = vld [vmem:[#allocation5 + $0xae8] sm:$0xff]
    %v544 = vld [vmem:[#allocation5 + $0xaf0] sm:$0xff]
    %v545 = vld [vmem:[#allocation5 + $0xaf8] sm:$0xff]
    %v546 = vld [vmem:[#allocation5 + $0xb00] sm:$0xff]
    %v547 = vld [vmem:[#allocation5 + $0xb08] sm:$0xff]
    %v548 = vld [vmem:[#allocation5 + $0xb10] sm:$0xff]
    %v549 = vld [vmem:[#allocation5 + $0xb18] sm:$0xff]
    %v550 = vld [vmem:[#allocation5 + $0xb20] sm:$0xff]
    %v551 = vld [vmem:[#allocation5 + $0xb28] sm:$0xff]
    %v552 = vld [vmem:[#allocation5 + $0xb30] sm:$0xff]
    %v553 = vld [vmem:[#allocation5 + $0xb38] sm:$0xff]
    %v554 = vld [vmem:[#allocation5 + $0xb40] sm:$0xff]
    %v555 = vld [vmem:[#allocation5 + $0xb48] sm:$0xff]
    %v556 = vld [vmem:[#allocation5 + $0xb50] sm:$0xff]
    %v557 = vld [vmem:[#allocation5 + $0xb58] sm:$0xff]
    %v558 = vld [vmem:[#allocation5 + $0xb60] sm:$0xff]
    %v559 = vld [vmem:[#allocation5 + $0xb68] sm:$0xff]
    %v560 = vld [vmem:[#allocation5 + $0xb70] sm:$0xff]
    %v561 = vld [vmem:[#allocation5 + $0xb78] sm:$0xff]
    %v562 = vld [vmem:[#allocation5 + $0xb80] sm:$0xff]
    %v563 = vld [vmem:[#allocation5 + $0xb88] sm:$0xff]
    %v564 = vld [vmem:[#allocation5 + $0xb90] sm:$0xff]
    %v565 = vld [vmem:[#allocation5 + $0xb98] sm:$0xff]
    %v566 = vld [vmem:[#allocation5 + $0xba0] sm:$0xff]
    %v567 = vld [vmem:[#allocation5 + $0xba8] sm:$0xff]
    %v568 = vld [vmem:[#allocation5 + $0xbb0] sm:$0xff]
    %v569 = vld [vmem:[#allocation5 + $0xbb8] sm:$0xff]
    %v570 = vld [vmem:[#allocation5 + $0xbc0] sm:$0xff]
    %v571 = vld [vmem:[#allocation5 + $0xbc8] sm:$0xff]
    %v572 = vld [vmem:[#allocation5 + $0xbd0] sm:$0xff]
    %v573 = vld [vmem:[#allocation5 + $0xbd8] sm:$0xff]
    %v574 = vld [vmem:[#allocation5 + $0xbe0] sm:$0xff]
    %v575 = vld [vmem:[#allocation5 + $0xbe8] sm:$0xff]
    %v576 = vld [vmem:[#allocation5 + $0xbf0] sm:$0xff]
    %v577 = vld [vmem:[#allocation5 + $0xbf8] sm:$0xff]
    %v578 = vld [vmem:[#allocation5 + $0xc00] sm:$0xff]
    %v579 = vld [vmem:[#allocation5 + $0xc08] sm:$0xff]
    %v580 = vld [vmem:[#allocation5 + $0xc10] sm:$0xff]
    %v581 = vld [vmem:[#allocation5 + $0xc18] sm:$0xff]
    %v582 = vld [vmem:[#allocation5 + $0xc20] sm:$0xff]
    %v583 = vld [vmem:[#allocation5 + $0xc28] sm:$0xff]
    %v584 = vld [vmem:[#allocation5 + $0xc30] sm:$0xff]
    %v585 = vld [vmem:[#allocation5 + $0xc38] sm:$0xff]
    %v586 = vld [vmem:[#allocation5 + $0xc40] sm:$0xff]
    %v587 = vld [vmem:[#allocation5 + $0xc48] sm:$0xff]
    %v588 = vld [vmem:[#allocation5 + $0xc50] sm:$0xff]
    %v589 = vld [vmem:[#allocation5 + $0xc58] sm:$0xff]
    %v590 = vld [vmem:[#allocation5 + $0xc60] sm:$0xff]
    %v591 = vld [vmem:[#allocation5 + $0xc68] sm:$0xff]
    %v592 = vld [vmem:[#allocation5 + $0xc70] sm:$0xff]
    %v593 = vld [vmem:[#allocation5 + $0xc78] sm:$0xff]
    %v594 = vld [vmem:[#allocation5 + $0xc80] sm:$0xff]
    %v595 = vld [vmem:[#allocation5 + $0xc88] sm:$0xff]
    %v596 = vld [vmem:[#allocation5 + $0xc90] sm:$0xff]
    %v597 = vld [vmem:[#allocation5 + $0xc98] sm:$0xff]
    %v598 = vld [vmem:[#allocation5 + $0xca0] sm:$0xff]
    %v599 = vld [vmem:[#allocation5 + $0xca8] sm:$0xff]
    %v600 = vld [vmem:[#allocation5 + $0xcb0] sm:$0xff]
    %v601 = vld [vmem:[#allocation5 + $0xcb8] sm:$0xff]
    %v602 = vld [vmem:[#allocation5 + $0xcc0] sm:$0xff]
    %v603 = vld [vmem:[#allocation5 + $0xcc8] sm:$0xff]
    %v604 = vld [vmem:[#allocation5 + $0xcd0] sm:$0xff]
    %v605 = vld [vmem:[#allocation5 + $0xcd8] sm:$0xff]
    %v606 = vld [vmem:[#allocation5 + $0xce0] sm:$0xff]
    %v607 = vld [vmem:[#allocation5 + $0xce8] sm:$0xff]
    %v608 = vld [vmem:[#allocation5 + $0xcf0] sm:$0xff]
    %v609 = vld [vmem:[#allocation5 + $0xcf8] sm:$0xff]
    %v610 = vld [vmem:[#allocation5 + $0xd00] sm:$0xff]
    %v611 = vld [vmem:[#allocation5 + $0xd08] sm:$0xff]
    %v612 = vld [vmem:[#allocation5 + $0xd10] sm:$0xff]
    %v613 = vld [vmem:[#allocation5 + $0xd18] sm:$0xff]
    %v614 = vld [vmem:[#allocation5 + $0xd20] sm:$0xff]
    %v615 = vld [vmem:[#allocation5 + $0xd28] sm:$0xff]
    %v616 = vld [vmem:[#allocation5 + $0xd30] sm:$0xff]
    %v617 = vld [vmem:[#allocation5 + $0xd38] sm:$0xff]
    %v618 = vld [vmem:[#allocation5 + $0xd40] sm:$0xff]
    %v619 = vld [vmem:[#allocation5 + $0xd48] sm:$0xff]
    %v620 = vld [vmem:[#allocation5 + $0xd50] sm:$0xff]
    %v621 = vld [vmem:[#allocation5 + $0xd58] sm:$0xff]
    %v622 = vld [vmem:[#allocation5 + $0xd60] sm:$0xff]
    %v623 = vld [vmem:[#allocation5 + $0xd68] sm:$0xff]
    %v624 = vld [vmem:[#allocation5 + $0xd70] sm:$0xff]
    %v625 = vld [vmem:[#allocation5 + $0xd78] sm:$0xff]
    %v626 = vld [vmem:[#allocation5 + $0xd80] sm:$0xff]
    %v627 = vld [vmem:[#allocation5 + $0xd88] sm:$0xff]
    %v628 = vld [vmem:[#allocation5 + $0xd90] sm:$0xff]
    %v629 = vld [vmem:[#allocation5 + $0xd98] sm:$0xff]
    %v630 = vld [vmem:[#allocation5 + $0xda0] sm:$0xff]
    %v631 = vld [vmem:[#allocation5 + $0xda8] sm:$0xff]
    %v632 = vld [vmem:[#allocation5 + $0xdb0] sm:$0xff]
    %v633 = vld [vmem:[#allocation5 + $0xdb8] sm:$0xff]
    %v634 = vld [vmem:[#allocation5 + $0xdc0] sm:$0xff]
    %v635 = vld [vmem:[#allocation5 + $0xdc8] sm:$0xff]
    %v636 = vld [vmem:[#allocation5 + $0xdd0] sm:$0xff]
    %v637 = vld [vmem:[#allocation5 + $0xdd8] sm:$0xff]
    %v638 = vld [vmem:[#allocation5 + $0xde0] sm:$0xff]
    %v639 = vld [vmem:[#allocation5 + $0xde8] sm:$0xff]
    %v640 = vld [vmem:[#allocation5 + $0xdf0] sm:$0xff]
    %v641 = vld [vmem:[#allocation5 + $0xdf8] sm:$0xff]
    %v642 = vld [vmem:[#allocation5 + $0xe00] sm:$0xff]
    %v643 = vld [vmem:[#allocation5 + $0xe08] sm:$0xff]
    %v644 = vld [vmem:[#allocation5 + $0xe10] sm:$0xff]
    %v645 = vld [vmem:[#allocation5 + $0xe18] sm:$0xff]
    %v646 = vld [vmem:[#allocation5 + $0xe20] sm:$0xff]
    %v647 = vld [vmem:[#allocation5 + $0xe28] sm:$0xff]
    %v648 = vld [vmem:[#allocation5 + $0xe30] sm:$0xff]
    %v649 = vld [vmem:[#allocation5 + $0xe38] sm:$0xff]
    %v650 = vld [vmem:[#allocation5 + $0xe40] sm:$0xff]
    %v651 = vld [vmem:[#allocation5 + $0xe48] sm:$0xff]
    %v652 = vld [vmem:[#allocation5 + $0xe50] sm:$0xff]
    %v653 = vld [vmem:[#allocation5 + $0xe58] sm:$0xff]
    %v654 = vld [vmem:[#allocation5 + $0xe60] sm:$0xff]
    %v655 = vld [vmem:[#allocation5 + $0xe68] sm:$0xff]
    %v656 = vld [vmem:[#allocation5 + $0xe70] sm:$0xff]
    %v657 = vld [vmem:[#allocation5 + $0xe78] sm:$0xff]
    %v658 = vld [vmem:[#allocation5 + $0xe80] sm:$0xff]
    %v659 = vld [vmem:[#allocation5 + $0xe88] sm:$0xff]
    %v660 = vld [vmem:[#allocation5 + $0xe90] sm:$0xff]
    %v661 = vld [vmem:[#allocation5 + $0xe98] sm:$0xff]
    %v662 = vld [vmem:[#allocation5 + $0xea0] sm:$0xff]
    %v663 = vld [vmem:[#allocation5 + $0xea8] sm:$0xff]
    %v664 = vld [vmem:[#allocation5 + $0xeb0] sm:$0xff]
    %v665 = vld [vmem:[#allocation5 + $0xeb8] sm:$0xff]
    %v666 = vld [vmem:[#allocation5 + $0xec0] sm:$0xff]
    %v667 = vld [vmem:[#allocation5 + $0xec8] sm:$0xff]
    %v668 = vld [vmem:[#allocation5 + $0xed0] sm:$0xff]
    %v669 = vld [vmem:[#allocation5 + $0xed8] sm:$0xff]
    %v670 = vld [vmem:[#allocation5 + $0xee0] sm:$0xff]
    %v671 = vld [vmem:[#allocation5 + $0xee8] sm:$0xff]
    %v672 = vld [vmem:[#allocation5 + $0xef0] sm:$0xff]
    %v673 = vld [vmem:[#allocation5 + $0xef8] sm:$0xff]
    %v674 = vld [vmem:[#allocation5 + $0xf00] sm:$0xff]
    %v675 = vld [vmem:[#allocation5 + $0xf08] sm:$0xff]
    %v676 = vld [vmem:[#allocation5 + $0xf10] sm:$0xff]
    %v677 = vld [vmem:[#allocation5 + $0xf18] sm:$0xff]
    %v678 = vld [vmem:[#allocation5 + $0xf20] sm:$0xff]
    %v679 = vld [vmem:[#allocation5 + $0xf28] sm:$0xff]
    %v680 = vld [vmem:[#allocation5 + $0xf30] sm:$0xff]
    %v681 = vld [vmem:[#allocation5 + $0xf38] sm:$0xff]
    %v682 = vld [vmem:[#allocation5 + $0xf40] sm:$0xff]
    %v683 = vld [vmem:[#allocation5 + $0xf48] sm:$0xff]
    %v684 = vld [vmem:[#allocation5 + $0xf50] sm:$0xff]
    %v685 = vld [vmem:[#allocation5 + $0xf58] sm:$0xff]
    %v686 = vld [vmem:[#allocation5 + $0xf60] sm:$0xff]
    %v687 = vld [vmem:[#allocation5 + $0xf68] sm:$0xff]
    %v688 = vld [vmem:[#allocation5 + $0xf70] sm:$0xff]
    %v689 = vld [vmem:[#allocation5 + $0xf78] sm:$0xff]
    %v690 = vld [vmem:[#allocation5 + $0xf80] sm:$0xff]
    %v691 = vld [vmem:[#allocation5 + $0xf88] sm:$0xff]
    %v692 = vld [vmem:[#allocation5 + $0xf90] sm:$0xff]
    %v693 = vld [vmem:[#allocation5 + $0xf98] sm:$0xff]
    %v694 = vld [vmem:[#allocation5 + $0xfa0] sm:$0xff]
    %v695 = vld [vmem:[#allocation5 + $0xfa8] sm:$0xff]
    %v696 = vld [vmem:[#allocation5 + $0xfb0] sm:$0xff]
    %v697 = vld [vmem:[#allocation5 + $0xfb8] sm:$0xff]
    %v698 = vld [vmem:[#allocation5 + $0xfc0] sm:$0xff]
    %v699 = vld [vmem:[#allocation5 + $0xfc8] sm:$0xff]
    %v700 = vld [vmem:[#allocation5 + $0xfd0] sm:$0xff]
    %v701 = vld [vmem:[#allocation5 + $0xfd8] sm:$0xff]
    %v702 = vld [vmem:[#allocation5 + $0xfe0] sm:$0xff]
    %v703 = vld [vmem:[#allocation5 + $0xfe8] sm:$0xff]
    %v704 = vld [vmem:[#allocation5 + $0xff0] sm:$0xff]
    %v705 = vld [vmem:[#allocation5 + $0xff8] sm:$0xff]
    %v706 = vld [vmem:[#allocation7] sm:$0xff]
    %v708 = vperm.slane %v706, 0
    %v709 = vperm.slane %v706, 1
    %v710 = vperm.slane %v706, 2
    %v711 = vperm.slane %v706, 3
    %v712 = vperm.slane %v706, 4
    %v713 = vperm.slane %v706, 5
    %v714 = vperm.slane %v706, 6
    %v715 = vperm.slane %v706, 7
    %v1236 = vunpack.c.l.b16 %v194
    %v1237 = vunpack.c.h.b16 %v194
    %v1238 = vunpack.c.l.b16 %v195
    %v1239 = vunpack.c.h.b16 %v195
    %v1240 = vunpack.c.l.b16 %v196
    %v1241 = vunpack.c.h.b16 %v196
    %v1242 = vunpack.c.l.b16 %v197
    %v1243 = vunpack.c.h.b16 %v197
    %v1244 = vunpack.c.l.b16 %v198
    %v1245 = vunpack.c.h.b16 %v198
    %v1246 = vunpack.c.l.b16 %v199
    %v1247 = vunpack.c.h.b16 %v199
    %v1248 = vunpack.c.l.b16 %v200
    %v1249 = vunpack.c.h.b16 %v200
    %v1250 = vunpack.c.l.b16 %v201
    %v1251 = vunpack.c.h.b16 %v201
    %v1252 = vunpack.c.l.b16 %v202
    %v1253 = vunpack.c.h.b16 %v202
    %v1254 = vunpack.c.l.b16 %v203
    %v1255 = vunpack.c.h.b16 %v203
    %v1256 = vunpack.c.l.b16 %v204
    %v1257 = vunpack.c.h.b16 %v204
    %v1258 = vunpack.c.l.b16 %v205
    %v1259 = vunpack.c.h.b16 %v205
    %v1260 = vunpack.c.l.b16 %v206
    %v1261 = vunpack.c.h.b16 %v206
    %v1262 = vunpack.c.l.b16 %v207
    %v1263 = vunpack.c.h.b16 %v207
    %v1264 = vunpack.c.l.b16 %v208
    %v1265 = vunpack.c.h.b16 %v208
    %v1266 = vunpack.c.l.b16 %v209
    %v1267 = vunpack.c.h.b16 %v209
    %v1268 = vunpack.c.l.b16 %v210
    %v1269 = vunpack.c.h.b16 %v210
    %v1270 = vunpack.c.l.b16 %v211
    %v1271 = vunpack.c.h.b16 %v211
    %v1272 = vunpack.c.l.b16 %v212
    %v1273 = vunpack.c.h.b16 %v212
    %v1274 = vunpack.c.l.b16 %v213
    %v1275 = vunpack.c.h.b16 %v213
    %v1276 = vunpack.c.l.b16 %v214
    %v1277 = vunpack.c.h.b16 %v214
    %v1278 = vunpack.c.l.b16 %v215
    %v1279 = vunpack.c.h.b16 %v215
    %v1280 = vunpack.c.l.b16 %v216
    %v1281 = vunpack.c.h.b16 %v216
    %v1282 = vunpack.c.l.b16 %v217
    %v1283 = vunpack.c.h.b16 %v217
    %v1284 = vunpack.c.l.b16 %v218
    %v1285 = vunpack.c.h.b16 %v218
    %v1286 = vunpack.c.l.b16 %v219
    %v1287 = vunpack.c.h.b16 %v219
    %v1288 = vunpack.c.l.b16 %v220
    %v1289 = vunpack.c.h.b16 %v220
    %v1290 = vunpack.c.l.b16 %v221
    %v1291 = vunpack.c.h.b16 %v221
    %v1292 = vunpack.c.l.b16 %v222
    %v1293 = vunpack.c.h.b16 %v222
    %v1294 = vunpack.c.l.b16 %v223
    %v1295 = vunpack.c.h.b16 %v223
    %v1296 = vunpack.c.l.b16 %v224
    %v1297 = vunpack.c.h.b16 %v224
    %v1298 = vunpack.c.l.b16 %v225
    %v1299 = vunpack.c.h.b16 %v225
    %v1300 = vunpack.c.l.b16 %v226
    %v1301 = vunpack.c.h.b16 %v226
    %v1302 = vunpack.c.l.b16 %v227
    %v1303 = vunpack.c.h.b16 %v227
    %v1304 = vunpack.c.l.b16 %v228
    %v1305 = vunpack.c.h.b16 %v228
    %v1306 = vunpack.c.l.b16 %v229
    %v1307 = vunpack.c.h.b16 %v229
    %v1308 = vunpack.c.l.b16 %v230
    %v1309 = vunpack.c.h.b16 %v230
    %v1310 = vunpack.c.l.b16 %v231
    %v1311 = vunpack.c.h.b16 %v231
    %v1312 = vunpack.c.l.b16 %v232
    %v1313 = vunpack.c.h.b16 %v232
    %v1314 = vunpack.c.l.b16 %v233
    %v1315 = vunpack.c.h.b16 %v233
    %v1316 = vunpack.c.l.b16 %v234
    %v1317 = vunpack.c.h.b16 %v234
    %v1318 = vunpack.c.l.b16 %v235
    %v1319 = vunpack.c.h.b16 %v235
    %v1320 = vunpack.c.l.b16 %v236
    %v1321 = vunpack.c.h.b16 %v236
    %v1322 = vunpack.c.l.b16 %v237
    %v1323 = vunpack.c.h.b16 %v237
    %v1324 = vunpack.c.l.b16 %v238
    %v1325 = vunpack.c.h.b16 %v238
    %v1326 = vunpack.c.l.b16 %v239
    %v1327 = vunpack.c.h.b16 %v239
    %v1328 = vunpack.c.l.b16 %v240
    %v1329 = vunpack.c.h.b16 %v240
    %v1330 = vunpack.c.l.b16 %v241
    %v1331 = vunpack.c.h.b16 %v241
    %v1332 = vunpack.c.l.b16 %v242
    %v1333 = vunpack.c.h.b16 %v242
    %v1334 = vunpack.c.l.b16 %v243
    %v1335 = vunpack.c.h.b16 %v243
    %v1336 = vunpack.c.l.b16 %v244
    %v1337 = vunpack.c.h.b16 %v244
    %v1338 = vunpack.c.l.b16 %v245
    %v1339 = vunpack.c.h.b16 %v245
    %v1340 = vunpack.c.l.b16 %v246
    %v1341 = vunpack.c.h.b16 %v246
    %v1342 = vunpack.c.l.b16 %v247
    %v1343 = vunpack.c.h.b16 %v247
    %v1344 = vunpack.c.l.b16 %v248
    %v1345 = vunpack.c.h.b16 %v248
    %v1346 = vunpack.c.l.b16 %v249
    %v1347 = vunpack.c.h.b16 %v249
    %v1348 = vunpack.c.l.b16 %v250
    %v1349 = vunpack.c.h.b16 %v250
    %v1350 = vunpack.c.l.b16 %v251
    %v1351 = vunpack.c.h.b16 %v251
    %v1352 = vunpack.c.l.b16 %v252
    %v1353 = vunpack.c.h.b16 %v252
    %v1354 = vunpack.c.l.b16 %v253
    %v1355 = vunpack.c.h.b16 %v253
    %v1356 = vunpack.c.l.b16 %v254
    %v1357 = vunpack.c.h.b16 %v254
    %v1358 = vunpack.c.l.b16 %v255
    %v1359 = vunpack.c.h.b16 %v255
    %v1360 = vunpack.c.l.b16 %v256
    %v1361 = vunpack.c.h.b16 %v256
    %v1362 = vunpack.c.l.b16 %v257
    %v1363 = vunpack.c.h.b16 %v257
    %v1364 = vunpack.c.l.b16 %v258
    %v1365 = vunpack.c.h.b16 %v258
    %v1366 = vunpack.c.l.b16 %v259
    %v1367 = vunpack.c.h.b16 %v259
    %v1368 = vunpack.c.l.b16 %v260
    %v1369 = vunpack.c.h.b16 %v260
    %v1370 = vunpack.c.l.b16 %v261
    %v1371 = vunpack.c.h.b16 %v261
    %v1372 = vunpack.c.l.b16 %v262
    %v1373 = vunpack.c.h.b16 %v262
    %v1374 = vunpack.c.l.b16 %v263
    %v1375 = vunpack.c.h.b16 %v263
    %v1376 = vunpack.c.l.b16 %v264
    %v1377 = vunpack.c.h.b16 %v264
    %v1378 = vunpack.c.l.b16 %v265
    %v1379 = vunpack.c.h.b16 %v265
    %v1380 = vunpack.c.l.b16 %v266
    %v1381 = vunpack.c.h.b16 %v266
    %v1382 = vunpack.c.l.b16 %v267
    %v1383 = vunpack.c.h.b16 %v267
    %v1384 = vunpack.c.l.b16 %v268
    %v1385 = vunpack.c.h.b16 %v268
    %v1386 = vunpack.c.l.b16 %v269
    %v1387 = vunpack.c.h.b16 %v269
    %v1388 = vunpack.c.l.b16 %v270
    %v1389 = vunpack.c.h.b16 %v270
    %v1390 = vunpack.c.l.b16 %v271
    %v1391 = vunpack.c.h.b16 %v271
    %v1392 = vunpack.c.l.b16 %v272
    %v1393 = vunpack.c.h.b16 %v272
    %v1394 = vunpack.c.l.b16 %v273
    %v1395 = vunpack.c.h.b16 %v273
    %v1396 = vunpack.c.l.b16 %v274
    %v1397 = vunpack.c.h.b16 %v274
    %v1398 = vunpack.c.l.b16 %v275
    %v1399 = vunpack.c.h.b16 %v275
    %v1400 = vunpack.c.l.b16 %v276
    %v1401 = vunpack.c.h.b16 %v276
    %v1402 = vunpack.c.l.b16 %v277
    %v1403 = vunpack.c.h.b16 %v277
    %v1404 = vunpack.c.l.b16 %v278
    %v1405 = vunpack.c.h.b16 %v278
    %v1406 = vunpack.c.l.b16 %v279
    %v1407 = vunpack.c.h.b16 %v279
    %v1408 = vunpack.c.l.b16 %v280
    %v1409 = vunpack.c.h.b16 %v280
    %v1410 = vunpack.c.l.b16 %v281
    %v1411 = vunpack.c.h.b16 %v281
    %v1412 = vunpack.c.l.b16 %v282
    %v1413 = vunpack.c.h.b16 %v282
    %v1414 = vunpack.c.l.b16 %v283
    %v1415 = vunpack.c.h.b16 %v283
    %v1416 = vunpack.c.l.b16 %v284
    %v1417 = vunpack.c.h.b16 %v284
    %v1418 = vunpack.c.l.b16 %v285
    %v1419 = vunpack.c.h.b16 %v285
    %v1420 = vunpack.c.l.b16 %v286
    %v1421 = vunpack.c.h.b16 %v286
    %v1422 = vunpack.c.l.b16 %v287
    %v1423 = vunpack.c.h.b16 %v287
    %v1424 = vunpack.c.l.b16 %v288
    %v1425 = vunpack.c.h.b16 %v288
    %v1426 = vunpack.c.l.b16 %v289
    %v1427 = vunpack.c.h.b16 %v289
    %v1428 = vunpack.c.l.b16 %v290
    %v1429 = vunpack.c.h.b16 %v290
    %v1430 = vunpack.c.l.b16 %v291
    %v1431 = vunpack.c.h.b16 %v291
    %v1432 = vunpack.c.l.b16 %v292
    %v1433 = vunpack.c.h.b16 %v292
    %v1434 = vunpack.c.l.b16 %v293
    %v1435 = vunpack.c.h.b16 %v293
    %v1436 = vunpack.c.l.b16 %v294
    %v1437 = vunpack.c.h.b16 %v294
    %v1438 = vunpack.c.l.b16 %v295
    %v1439 = vunpack.c.h.b16 %v295
    %v1440 = vunpack.c.l.b16 %v296
    %v1441 = vunpack.c.h.b16 %v296
    %v1442 = vunpack.c.l.b16 %v297
    %v1443 = vunpack.c.h.b16 %v297
    %v1444 = vunpack.c.l.b16 %v298
    %v1445 = vunpack.c.h.b16 %v298
    %v1446 = vunpack.c.l.b16 %v299
    %v1447 = vunpack.c.h.b16 %v299
    %v1448 = vunpack.c.l.b16 %v300
    %v1449 = vunpack.c.h.b16 %v300
    %v1450 = vunpack.c.l.b16 %v301
    %v1451 = vunpack.c.h.b16 %v301
    %v1452 = vunpack.c.l.b16 %v302
    %v1453 = vunpack.c.h.b16 %v302
    %v1454 = vunpack.c.l.b16 %v303
    %v1455 = vunpack.c.h.b16 %v303
    %v1456 = vunpack.c.l.b16 %v304
    %v1457 = vunpack.c.h.b16 %v304
    %v1458 = vunpack.c.l.b16 %v305
    %v1459 = vunpack.c.h.b16 %v305
    %v1460 = vunpack.c.l.b16 %v306
    %v1461 = vunpack.c.h.b16 %v306
    %v1462 = vunpack.c.l.b16 %v307
    %v1463 = vunpack.c.h.b16 %v307
    %v1464 = vunpack.c.l.b16 %v308
    %v1465 = vunpack.c.h.b16 %v308
    %v1466 = vunpack.c.l.b16 %v309
    %v1467 = vunpack.c.h.b16 %v309
    %v1468 = vunpack.c.l.b16 %v310
    %v1469 = vunpack.c.h.b16 %v310
    %v1470 = vunpack.c.l.b16 %v311
    %v1471 = vunpack.c.h.b16 %v311
    %v1472 = vunpack.c.l.b16 %v312
    %v1473 = vunpack.c.h.b16 %v312
    %v1474 = vunpack.c.l.b16 %v313
    %v1475 = vunpack.c.h.b16 %v313
    %v1476 = vunpack.c.l.b16 %v314
    %v1477 = vunpack.c.h.b16 %v314
    %v1478 = vunpack.c.l.b16 %v315
    %v1479 = vunpack.c.h.b16 %v315
    %v1480 = vunpack.c.l.b16 %v316
    %v1481 = vunpack.c.h.b16 %v316
    %v1482 = vunpack.c.l.b16 %v317
    %v1483 = vunpack.c.h.b16 %v317
    %v1484 = vunpack.c.l.b16 %v318
    %v1485 = vunpack.c.h.b16 %v318
    %v1486 = vunpack.c.l.b16 %v319
    %v1487 = vunpack.c.h.b16 %v319
    %v1488 = vunpack.c.l.b16 %v320
    %v1489 = vunpack.c.h.b16 %v320
    %v1490 = vunpack.c.l.b16 %v321
    %v1491 = vunpack.c.h.b16 %v321
    %v1492 = vunpack.c.l.b16 %v322
    %v1493 = vunpack.c.h.b16 %v322
    %v1494 = vunpack.c.l.b16 %v323
    %v1495 = vunpack.c.h.b16 %v323
    %v1496 = vunpack.c.l.b16 %v324
    %v1497 = vunpack.c.h.b16 %v324
    %v1498 = vunpack.c.l.b16 %v325
    %v1499 = vunpack.c.h.b16 %v325
    %v1500 = vunpack.c.l.b16 %v326
    %v1501 = vunpack.c.h.b16 %v326
    %v1502 = vunpack.c.l.b16 %v327
    %v1503 = vunpack.c.h.b16 %v327
    %v1504 = vunpack.c.l.b16 %v328
    %v1505 = vunpack.c.h.b16 %v328
    %v1506 = vunpack.c.l.b16 %v329
    %v1507 = vunpack.c.h.b16 %v329
    %v1508 = vunpack.c.l.b16 %v330
    %v1509 = vunpack.c.h.b16 %v330
    %v1510 = vunpack.c.l.b16 %v331
    %v1511 = vunpack.c.h.b16 %v331
    %v1512 = vunpack.c.l.b16 %v332
    %v1513 = vunpack.c.h.b16 %v332
    %v1514 = vunpack.c.l.b16 %v333
    %v1515 = vunpack.c.h.b16 %v333
    %v1516 = vunpack.c.l.b16 %v334
    %v1517 = vunpack.c.h.b16 %v334
    %v1518 = vunpack.c.l.b16 %v335
    %v1519 = vunpack.c.h.b16 %v335
    %v1520 = vunpack.c.l.b16 %v336
    %v1521 = vunpack.c.h.b16 %v336
    %v1522 = vunpack.c.l.b16 %v337
    %v1523 = vunpack.c.h.b16 %v337
    %v1524 = vunpack.c.l.b16 %v338
    %v1525 = vunpack.c.h.b16 %v338
    %v1526 = vunpack.c.l.b16 %v339
    %v1527 = vunpack.c.h.b16 %v339
    %v1528 = vunpack.c.l.b16 %v340
    %v1529 = vunpack.c.h.b16 %v340
    %v1530 = vunpack.c.l.b16 %v341
    %v1531 = vunpack.c.h.b16 %v341
    %v1532 = vunpack.c.l.b16 %v342
    %v1533 = vunpack.c.h.b16 %v342
    %v1534 = vunpack.c.l.b16 %v343
    %v1535 = vunpack.c.h.b16 %v343
    %v1536 = vunpack.c.l.b16 %v344
    %v1537 = vunpack.c.h.b16 %v344
    %v1538 = vunpack.c.l.b16 %v345
    %v1539 = vunpack.c.h.b16 %v345
    %v1540 = vunpack.c.l.b16 %v346
    %v1541 = vunpack.c.h.b16 %v346
    %v1542 = vunpack.c.l.b16 %v347
    %v1543 = vunpack.c.h.b16 %v347
    %v1544 = vunpack.c.l.b16 %v348
    %v1545 = vunpack.c.h.b16 %v348
    %v1546 = vunpack.c.l.b16 %v349
    %v1547 = vunpack.c.h.b16 %v349
    %v1548 = vunpack.c.l.b16 %v350
    %v1549 = vunpack.c.h.b16 %v350
    %v1550 = vunpack.c.l.b16 %v351
    %v1551 = vunpack.c.h.b16 %v351
    %v1552 = vunpack.c.l.b16 %v352
    %v1553 = vunpack.c.h.b16 %v352
    %v1554 = vunpack.c.l.b16 %v353
    %v1555 = vunpack.c.h.b16 %v353
    %v1556 = vunpack.c.l.b16 %v354
    %v1557 = vunpack.c.h.b16 %v354
    %v1558 = vunpack.c.l.b16 %v355
    %v1559 = vunpack.c.h.b16 %v355
    %v1560 = vunpack.c.l.b16 %v356
    %v1561 = vunpack.c.h.b16 %v356
    %v1562 = vunpack.c.l.b16 %v357
    %v1563 = vunpack.c.h.b16 %v357
    %v1564 = vunpack.c.l.b16 %v358
    %v1565 = vunpack.c.h.b16 %v358
    %v1566 = vunpack.c.l.b16 %v359
    %v1567 = vunpack.c.h.b16 %v359
    %v1568 = vunpack.c.l.b16 %v360
    %v1569 = vunpack.c.h.b16 %v360
    %v1570 = vunpack.c.l.b16 %v361
    %v1571 = vunpack.c.h.b16 %v361
    %v1572 = vunpack.c.l.b16 %v362
    %v1573 = vunpack.c.h.b16 %v362
    %v1574 = vunpack.c.l.b16 %v363
    %v1575 = vunpack.c.h.b16 %v363
    %v1576 = vunpack.c.l.b16 %v364
    %v1577 = vunpack.c.h.b16 %v364
    %v1578 = vunpack.c.l.b16 %v365
    %v1579 = vunpack.c.h.b16 %v365
    %v1580 = vunpack.c.l.b16 %v366
    %v1581 = vunpack.c.h.b16 %v366
    %v1582 = vunpack.c.l.b16 %v367
    %v1583 = vunpack.c.h.b16 %v367
    %v1584 = vunpack.c.l.b16 %v368
    %v1585 = vunpack.c.h.b16 %v368
    %v1586 = vunpack.c.l.b16 %v369
    %v1587 = vunpack.c.h.b16 %v369
    %v1588 = vunpack.c.l.b16 %v370
    %v1589 = vunpack.c.h.b16 %v370
    %v1590 = vunpack.c.l.b16 %v371
    %v1591 = vunpack.c.h.b16 %v371
    %v1592 = vunpack.c.l.b16 %v372
    %v1593 = vunpack.c.h.b16 %v372
    %v1594 = vunpack.c.l.b16 %v373
    %v1595 = vunpack.c.h.b16 %v373
    %v1596 = vunpack.c.l.b16 %v374
    %v1597 = vunpack.c.h.b16 %v374
    %v1598 = vunpack.c.l.b16 %v375
    %v1599 = vunpack.c.h.b16 %v375
    %v1600 = vunpack.c.l.b16 %v376
    %v1601 = vunpack.c.h.b16 %v376
    %v1602 = vunpack.c.l.b16 %v377
    %v1603 = vunpack.c.h.b16 %v377
    %v1604 = vunpack.c.l.b16 %v378
    %v1605 = vunpack.c.h.b16 %v378
    %v1606 = vunpack.c.l.b16 %v379
    %v1607 = vunpack.c.h.b16 %v379
    %v1608 = vunpack.c.l.b16 %v380
    %v1609 = vunpack.c.h.b16 %v380
    %v1610 = vunpack.c.l.b16 %v381
    %v1611 = vunpack.c.h.b16 %v381
    %v1612 = vunpack.c.l.b16 %v382
    %v1613 = vunpack.c.h.b16 %v382
    %v1614 = vunpack.c.l.b16 %v383
    %v1615 = vunpack.c.h.b16 %v383
    %v1616 = vunpack.c.l.b16 %v384
    %v1617 = vunpack.c.h.b16 %v384
    %v1618 = vunpack.c.l.b16 %v385
    %v1619 = vunpack.c.h.b16 %v385
    %v1620 = vunpack.c.l.b16 %v386
    %v1621 = vunpack.c.h.b16 %v386
    %v1622 = vunpack.c.l.b16 %v387
    %v1623 = vunpack.c.h.b16 %v387
    %v1624 = vunpack.c.l.b16 %v388
    %v1625 = vunpack.c.h.b16 %v388
    %v1626 = vunpack.c.l.b16 %v389
    %v1627 = vunpack.c.h.b16 %v389
    %v1628 = vunpack.c.l.b16 %v390
    %v1629 = vunpack.c.h.b16 %v390
    %v1630 = vunpack.c.l.b16 %v391
    %v1631 = vunpack.c.h.b16 %v391
    %v1632 = vunpack.c.l.b16 %v392
    %v1633 = vunpack.c.h.b16 %v392
    %v1634 = vunpack.c.l.b16 %v393
    %v1635 = vunpack.c.h.b16 %v393
    %v1636 = vunpack.c.l.b16 %v394
    %v1637 = vunpack.c.h.b16 %v394
    %v1638 = vunpack.c.l.b16 %v395
    %v1639 = vunpack.c.h.b16 %v395
    %v1640 = vunpack.c.l.b16 %v396
    %v1641 = vunpack.c.h.b16 %v396
    %v1642 = vunpack.c.l.b16 %v397
    %v1643 = vunpack.c.h.b16 %v397
    %v1644 = vunpack.c.l.b16 %v398
    %v1645 = vunpack.c.h.b16 %v398
    %v1646 = vunpack.c.l.b16 %v399
    %v1647 = vunpack.c.h.b16 %v399
    %v1648 = vunpack.c.l.b16 %v400
    %v1649 = vunpack.c.h.b16 %v400
    %v1650 = vunpack.c.l.b16 %v401
    %v1651 = vunpack.c.h.b16 %v401
    %v1652 = vunpack.c.l.b16 %v402
    %v1653 = vunpack.c.h.b16 %v402
    %v1654 = vunpack.c.l.b16 %v403
    %v1655 = vunpack.c.h.b16 %v403
    %v1656 = vunpack.c.l.b16 %v404
    %v1657 = vunpack.c.h.b16 %v404
    %v1658 = vunpack.c.l.b16 %v405
    %v1659 = vunpack.c.h.b16 %v405
    %v1660 = vunpack.c.l.b16 %v406
    %v1661 = vunpack.c.h.b16 %v406
    %v1662 = vunpack.c.l.b16 %v407
    %v1663 = vunpack.c.h.b16 %v407
    %v1664 = vunpack.c.l.b16 %v408
    %v1665 = vunpack.c.h.b16 %v408
    %v1666 = vunpack.c.l.b16 %v409
    %v1667 = vunpack.c.h.b16 %v409
    %v1668 = vunpack.c.l.b16 %v410
    %v1669 = vunpack.c.h.b16 %v410
    %v1670 = vunpack.c.l.b16 %v411
    %v1671 = vunpack.c.h.b16 %v411
    %v1672 = vunpack.c.l.b16 %v412
    %v1673 = vunpack.c.h.b16 %v412
    %v1674 = vunpack.c.l.b16 %v413
    %v1675 = vunpack.c.h.b16 %v413
    %v1676 = vunpack.c.l.b16 %v414
    %v1677 = vunpack.c.h.b16 %v414
    %v1678 = vunpack.c.l.b16 %v415
    %v1679 = vunpack.c.h.b16 %v415
    %v1680 = vunpack.c.l.b16 %v416
    %v1681 = vunpack.c.h.b16 %v416
    %v1682 = vunpack.c.l.b16 %v417
    %v1683 = vunpack.c.h.b16 %v417
    %v1684 = vunpack.c.l.b16 %v418
    %v1685 = vunpack.c.h.b16 %v418
    %v1686 = vunpack.c.l.b16 %v419
    %v1687 = vunpack.c.h.b16 %v419
    %v1688 = vunpack.c.l.b16 %v420
    %v1689 = vunpack.c.h.b16 %v420
    %v1690 = vunpack.c.l.b16 %v421
    %v1691 = vunpack.c.h.b16 %v421
    %v1692 = vunpack.c.l.b16 %v422
    %v1693 = vunpack.c.h.b16 %v422
    %v1694 = vunpack.c.l.b16 %v423
    %v1695 = vunpack.c.h.b16 %v423
    %v1696 = vunpack.c.l.b16 %v424
    %v1697 = vunpack.c.h.b16 %v424
    %v1698 = vunpack.c.l.b16 %v425
    %v1699 = vunpack.c.h.b16 %v425
    %v1700 = vunpack.c.l.b16 %v426
    %v1701 = vunpack.c.h.b16 %v426
    %v1702 = vunpack.c.l.b16 %v427
    %v1703 = vunpack.c.h.b16 %v427
    %v1704 = vunpack.c.l.b16 %v428
    %v1705 = vunpack.c.h.b16 %v428
    %v1706 = vunpack.c.l.b16 %v429
    %v1707 = vunpack.c.h.b16 %v429
    %v1708 = vunpack.c.l.b16 %v430
    %v1709 = vunpack.c.h.b16 %v430
    %v1710 = vunpack.c.l.b16 %v431
    %v1711 = vunpack.c.h.b16 %v431
    %v1712 = vunpack.c.l.b16 %v432
    %v1713 = vunpack.c.h.b16 %v432
    %v1714 = vunpack.c.l.b16 %v433
    %v1715 = vunpack.c.h.b16 %v433
    %v1716 = vunpack.c.l.b16 %v434
    %v1717 = vunpack.c.h.b16 %v434
    %v1718 = vunpack.c.l.b16 %v435
    %v1719 = vunpack.c.h.b16 %v435
    %v1720 = vunpack.c.l.b16 %v436
    %v1721 = vunpack.c.h.b16 %v436
    %v1722 = vunpack.c.l.b16 %v437
    %v1723 = vunpack.c.h.b16 %v437
    %v1724 = vunpack.c.l.b16 %v438
    %v1725 = vunpack.c.h.b16 %v438
    %v1726 = vunpack.c.l.b16 %v439
    %v1727 = vunpack.c.h.b16 %v439
    %v1728 = vunpack.c.l.b16 %v440
    %v1729 = vunpack.c.h.b16 %v440
    %v1730 = vunpack.c.l.b16 %v441
    %v1731 = vunpack.c.h.b16 %v441
    %v1732 = vunpack.c.l.b16 %v442
    %v1733 = vunpack.c.h.b16 %v442
    %v1734 = vunpack.c.l.b16 %v443
    %v1735 = vunpack.c.h.b16 %v443
    %v1736 = vunpack.c.l.b16 %v444
    %v1737 = vunpack.c.h.b16 %v444
    %v1738 = vunpack.c.l.b16 %v445
    %v1739 = vunpack.c.h.b16 %v445
    %v1740 = vunpack.c.l.b16 %v446
    %v1741 = vunpack.c.h.b16 %v446
    %v1742 = vunpack.c.l.b16 %v447
    %v1743 = vunpack.c.h.b16 %v447
    %v1744 = vunpack.c.l.b16 %v448
    %v1745 = vunpack.c.h.b16 %v448
    %v1746 = vunpack.c.l.b16 %v449
    %v1747 = vunpack.c.h.b16 %v449
    %v1748 = vunpack.c.l.b16 %v450
    %v1749 = vunpack.c.h.b16 %v450
    %v1750 = vunpack.c.l.b16 %v451
    %v1751 = vunpack.c.h.b16 %v451
    %v1752 = vunpack.c.l.b16 %v452
    %v1753 = vunpack.c.h.b16 %v452
    %v1754 = vunpack.c.l.b16 %v453
    %v1755 = vunpack.c.h.b16 %v453
    %v1756 = vunpack.c.l.b16 %v454
    %v1757 = vunpack.c.h.b16 %v454
    %v1758 = vunpack.c.l.b16 %v455
    %v1759 = vunpack.c.h.b16 %v455
    %v1760 = vunpack.c.l.b16 %v456
    %v1761 = vunpack.c.h.b16 %v456
    %v1762 = vunpack.c.l.b16 %v457
    %v1763 = vunpack.c.h.b16 %v457
    %v1764 = vunpack.c.l.b16 %v458
    %v1765 = vunpack.c.h.b16 %v458
    %v1766 = vunpack.c.l.b16 %v459
    %v1767 = vunpack.c.h.b16 %v459
    %v1768 = vunpack.c.l.b16 %v460
    %v1769 = vunpack.c.h.b16 %v460
    %v1770 = vunpack.c.l.b16 %v461
    %v1771 = vunpack.c.h.b16 %v461
    %v1772 = vunpack.c.l.b16 %v462
    %v1773 = vunpack.c.h.b16 %v462
    %v1774 = vunpack.c.l.b16 %v463
    %v1775 = vunpack.c.h.b16 %v463
    %v1776 = vunpack.c.l.b16 %v464
    %v1777 = vunpack.c.h.b16 %v464
    %v1778 = vunpack.c.l.b16 %v465
    %v1779 = vunpack.c.h.b16 %v465
    %v1780 = vunpack.c.l.b16 %v466
    %v1781 = vunpack.c.h.b16 %v466
    %v1782 = vunpack.c.l.b16 %v467
    %v1783 = vunpack.c.h.b16 %v467
    %v1784 = vunpack.c.l.b16 %v468
    %v1785 = vunpack.c.h.b16 %v468
    %v1786 = vunpack.c.l.b16 %v469
    %v1787 = vunpack.c.h.b16 %v469
    %v1788 = vunpack.c.l.b16 %v470
    %v1789 = vunpack.c.h.b16 %v470
    %v1790 = vunpack.c.l.b16 %v471
    %v1791 = vunpack.c.h.b16 %v471
    %v1792 = vunpack.c.l.b16 %v472
    %v1793 = vunpack.c.h.b16 %v472
    %v1794 = vunpack.c.l.b16 %v473
    %v1795 = vunpack.c.h.b16 %v473
    %v1796 = vunpack.c.l.b16 %v474
    %v1797 = vunpack.c.h.b16 %v474
    %v1798 = vunpack.c.l.b16 %v475
    %v1799 = vunpack.c.h.b16 %v475
    %v1800 = vunpack.c.l.b16 %v476
    %v1801 = vunpack.c.h.b16 %v476
    %v1802 = vunpack.c.l.b16 %v477
    %v1803 = vunpack.c.h.b16 %v477
    %v1804 = vunpack.c.l.b16 %v478
    %v1805 = vunpack.c.h.b16 %v478
    %v1806 = vunpack.c.l.b16 %v479
    %v1807 = vunpack.c.h.b16 %v479
    %v1808 = vunpack.c.l.b16 %v480
    %v1809 = vunpack.c.h.b16 %v480
    %v1810 = vunpack.c.l.b16 %v481
    %v1811 = vunpack.c.h.b16 %v481
    %v1812 = vunpack.c.l.b16 %v482
    %v1813 = vunpack.c.h.b16 %v482
    %v1814 = vunpack.c.l.b16 %v483
    %v1815 = vunpack.c.h.b16 %v483
    %v1816 = vunpack.c.l.b16 %v484
    %v1817 = vunpack.c.h.b16 %v484
    %v1818 = vunpack.c.l.b16 %v485
    %v1819 = vunpack.c.h.b16 %v485
    %v1820 = vunpack.c.l.b16 %v486
    %v1821 = vunpack.c.h.b16 %v486
    %v1822 = vunpack.c.l.b16 %v487
    %v1823 = vunpack.c.h.b16 %v487
    %v1824 = vunpack.c.l.b16 %v488
    %v1825 = vunpack.c.h.b16 %v488
    %v1826 = vunpack.c.l.b16 %v489
    %v1827 = vunpack.c.h.b16 %v489
    %v1828 = vunpack.c.l.b16 %v490
    %v1829 = vunpack.c.h.b16 %v490
    %v1830 = vunpack.c.l.b16 %v491
    %v1831 = vunpack.c.h.b16 %v491
    %v1832 = vunpack.c.l.b16 %v492
    %v1833 = vunpack.c.h.b16 %v492
    %v1834 = vunpack.c.l.b16 %v493
    %v1835 = vunpack.c.h.b16 %v493
    %v1836 = vunpack.c.l.b16 %v494
    %v1837 = vunpack.c.h.b16 %v494
    %v1838 = vunpack.c.l.b16 %v495
    %v1839 = vunpack.c.h.b16 %v495
    %v1840 = vunpack.c.l.b16 %v496
    %v1841 = vunpack.c.h.b16 %v496
    %v1842 = vunpack.c.l.b16 %v497
    %v1843 = vunpack.c.h.b16 %v497
    %v1844 = vunpack.c.l.b16 %v498
    %v1845 = vunpack.c.h.b16 %v498
    %v1846 = vunpack.c.l.b16 %v499
    %v1847 = vunpack.c.h.b16 %v499
    %v1848 = vunpack.c.l.b16 %v500
    %v1849 = vunpack.c.h.b16 %v500
    %v1850 = vunpack.c.l.b16 %v501
    %v1851 = vunpack.c.h.b16 %v501
    %v1852 = vunpack.c.l.b16 %v502
    %v1853 = vunpack.c.h.b16 %v502
    %v1854 = vunpack.c.l.b16 %v503
    %v1855 = vunpack.c.h.b16 %v503
    %v1856 = vunpack.c.l.b16 %v504
    %v1857 = vunpack.c.h.b16 %v504
    %v1858 = vunpack.c.l.b16 %v505
    %v1859 = vunpack.c.h.b16 %v505
    %v1860 = vunpack.c.l.b16 %v506
    %v1861 = vunpack.c.h.b16 %v506
    %v1862 = vunpack.c.l.b16 %v507
    %v1863 = vunpack.c.h.b16 %v507
    %v1864 = vunpack.c.l.b16 %v508
    %v1865 = vunpack.c.h.b16 %v508
    %v1866 = vunpack.c.l.b16 %v509
    %v1867 = vunpack.c.h.b16 %v509
    %v1868 = vunpack.c.l.b16 %v510
    %v1869 = vunpack.c.h.b16 %v510
    %v1870 = vunpack.c.l.b16 %v511
    %v1871 = vunpack.c.h.b16 %v511
    %v1872 = vunpack.c.l.b16 %v512
    %v1873 = vunpack.c.h.b16 %v512
    %v1874 = vunpack.c.l.b16 %v513
    %v1875 = vunpack.c.h.b16 %v513
    %v1876 = vunpack.c.l.b16 %v514
    %v1877 = vunpack.c.h.b16 %v514
    %v1878 = vunpack.c.l.b16 %v515
    %v1879 = vunpack.c.h.b16 %v515
    %v1880 = vunpack.c.l.b16 %v516
    %v1881 = vunpack.c.h.b16 %v516
    %v1882 = vunpack.c.l.b16 %v517
    %v1883 = vunpack.c.h.b16 %v517
    %v1884 = vunpack.c.l.b16 %v518
    %v1885 = vunpack.c.h.b16 %v518
    %v1886 = vunpack.c.l.b16 %v519
    %v1887 = vunpack.c.h.b16 %v519
    %v1888 = vunpack.c.l.b16 %v520
    %v1889 = vunpack.c.h.b16 %v520
    %v1890 = vunpack.c.l.b16 %v521
    %v1891 = vunpack.c.h.b16 %v521
    %v1892 = vunpack.c.l.b16 %v522
    %v1893 = vunpack.c.h.b16 %v522
    %v1894 = vunpack.c.l.b16 %v523
    %v1895 = vunpack.c.h.b16 %v523
    %v1896 = vunpack.c.l.b16 %v524
    %v1897 = vunpack.c.h.b16 %v524
    %v1898 = vunpack.c.l.b16 %v525
    %v1899 = vunpack.c.h.b16 %v525
    %v1900 = vunpack.c.l.b16 %v526
    %v1901 = vunpack.c.h.b16 %v526
    %v1902 = vunpack.c.l.b16 %v527
    %v1903 = vunpack.c.h.b16 %v527
    %v1904 = vunpack.c.l.b16 %v528
    %v1905 = vunpack.c.h.b16 %v528
    %v1906 = vunpack.c.l.b16 %v529
    %v1907 = vunpack.c.h.b16 %v529
    %v1908 = vunpack.c.l.b16 %v530
    %v1909 = vunpack.c.h.b16 %v530
    %v1910 = vunpack.c.l.b16 %v531
    %v1911 = vunpack.c.h.b16 %v531
    %v1912 = vunpack.c.l.b16 %v532
    %v1913 = vunpack.c.h.b16 %v532
    %v1914 = vunpack.c.l.b16 %v533
    %v1915 = vunpack.c.h.b16 %v533
    %v1916 = vunpack.c.l.b16 %v534
    %v1917 = vunpack.c.h.b16 %v534
    %v1918 = vunpack.c.l.b16 %v535
    %v1919 = vunpack.c.h.b16 %v535
    %v1920 = vunpack.c.l.b16 %v536
    %v1921 = vunpack.c.h.b16 %v536
    %v1922 = vunpack.c.l.b16 %v537
    %v1923 = vunpack.c.h.b16 %v537
    %v1924 = vunpack.c.l.b16 %v538
    %v1925 = vunpack.c.h.b16 %v538
    %v1926 = vunpack.c.l.b16 %v539
    %v1927 = vunpack.c.h.b16 %v539
    %v1928 = vunpack.c.l.b16 %v540
    %v1929 = vunpack.c.h.b16 %v540
    %v1930 = vunpack.c.l.b16 %v541
    %v1931 = vunpack.c.h.b16 %v541
    %v1932 = vunpack.c.l.b16 %v542
    %v1933 = vunpack.c.h.b16 %v542
    %v1934 = vunpack.c.l.b16 %v543
    %v1935 = vunpack.c.h.b16 %v543
    %v1936 = vunpack.c.l.b16 %v544
    %v1937 = vunpack.c.h.b16 %v544
    %v1938 = vunpack.c.l.b16 %v545
    %v1939 = vunpack.c.h.b16 %v545
    %v1940 = vunpack.c.l.b16 %v546
    %v1941 = vunpack.c.h.b16 %v546
    %v1942 = vunpack.c.l.b16 %v547
    %v1943 = vunpack.c.h.b16 %v547
    %v1944 = vunpack.c.l.b16 %v548
    %v1945 = vunpack.c.h.b16 %v548
    %v1946 = vunpack.c.l.b16 %v549
    %v1947 = vunpack.c.h.b16 %v549
    %v1948 = vunpack.c.l.b16 %v550
    %v1949 = vunpack.c.h.b16 %v550
    %v1950 = vunpack.c.l.b16 %v551
    %v1951 = vunpack.c.h.b16 %v551
    %v1952 = vunpack.c.l.b16 %v552
    %v1953 = vunpack.c.h.b16 %v552
    %v1954 = vunpack.c.l.b16 %v553
    %v1955 = vunpack.c.h.b16 %v553
    %v1956 = vunpack.c.l.b16 %v554
    %v1957 = vunpack.c.h.b16 %v554
    %v1958 = vunpack.c.l.b16 %v555
    %v1959 = vunpack.c.h.b16 %v555
    %v1960 = vunpack.c.l.b16 %v556
    %v1961 = vunpack.c.h.b16 %v556
    %v1962 = vunpack.c.l.b16 %v557
    %v1963 = vunpack.c.h.b16 %v557
    %v1964 = vunpack.c.l.b16 %v558
    %v1965 = vunpack.c.h.b16 %v558
    %v1966 = vunpack.c.l.b16 %v559
    %v1967 = vunpack.c.h.b16 %v559
    %v1968 = vunpack.c.l.b16 %v560
    %v1969 = vunpack.c.h.b16 %v560
    %v1970 = vunpack.c.l.b16 %v561
    %v1971 = vunpack.c.h.b16 %v561
    %v1972 = vunpack.c.l.b16 %v562
    %v1973 = vunpack.c.h.b16 %v562
    %v1974 = vunpack.c.l.b16 %v563
    %v1975 = vunpack.c.h.b16 %v563
    %v1976 = vunpack.c.l.b16 %v564
    %v1977 = vunpack.c.h.b16 %v564
    %v1978 = vunpack.c.l.b16 %v565
    %v1979 = vunpack.c.h.b16 %v565
    %v1980 = vunpack.c.l.b16 %v566
    %v1981 = vunpack.c.h.b16 %v566
    %v1982 = vunpack.c.l.b16 %v567
    %v1983 = vunpack.c.h.b16 %v567
    %v1984 = vunpack.c.l.b16 %v568
    %v1985 = vunpack.c.h.b16 %v568
    %v1986 = vunpack.c.l.b16 %v569
    %v1987 = vunpack.c.h.b16 %v569
    %v1988 = vunpack.c.l.b16 %v570
    %v1989 = vunpack.c.h.b16 %v570
    %v1990 = vunpack.c.l.b16 %v571
    %v1991 = vunpack.c.h.b16 %v571
    %v1992 = vunpack.c.l.b16 %v572
    %v1993 = vunpack.c.h.b16 %v572
    %v1994 = vunpack.c.l.b16 %v573
    %v1995 = vunpack.c.h.b16 %v573
    %v1996 = vunpack.c.l.b16 %v574
    %v1997 = vunpack.c.h.b16 %v574
    %v1998 = vunpack.c.l.b16 %v575
    %v1999 = vunpack.c.h.b16 %v575
    %v2000 = vunpack.c.l.b16 %v576
    %v2001 = vunpack.c.h.b16 %v576
    %v2002 = vunpack.c.l.b16 %v577
    %v2003 = vunpack.c.h.b16 %v577
    %v2004 = vunpack.c.l.b16 %v578
    %v2005 = vunpack.c.h.b16 %v578
    %v2006 = vunpack.c.l.b16 %v579
    %v2007 = vunpack.c.h.b16 %v579
    %v2008 = vunpack.c.l.b16 %v580
    %v2009 = vunpack.c.h.b16 %v580
    %v2010 = vunpack.c.l.b16 %v581
    %v2011 = vunpack.c.h.b16 %v581
    %v2012 = vunpack.c.l.b16 %v582
    %v2013 = vunpack.c.h.b16 %v582
    %v2014 = vunpack.c.l.b16 %v583
    %v2015 = vunpack.c.h.b16 %v583
    %v2016 = vunpack.c.l.b16 %v584
    %v2017 = vunpack.c.h.b16 %v584
    %v2018 = vunpack.c.l.b16 %v585
    %v2019 = vunpack.c.h.b16 %v585
    %v2020 = vunpack.c.l.b16 %v586
    %v2021 = vunpack.c.h.b16 %v586
    %v2022 = vunpack.c.l.b16 %v587
    %v2023 = vunpack.c.h.b16 %v587
    %v2024 = vunpack.c.l.b16 %v588
    %v2025 = vunpack.c.h.b16 %v588
    %v2026 = vunpack.c.l.b16 %v589
    %v2027 = vunpack.c.h.b16 %v589
    %v2028 = vunpack.c.l.b16 %v590
    %v2029 = vunpack.c.h.b16 %v590
    %v2030 = vunpack.c.l.b16 %v591
    %v2031 = vunpack.c.h.b16 %v591
    %v2032 = vunpack.c.l.b16 %v592
    %v2033 = vunpack.c.h.b16 %v592
    %v2034 = vunpack.c.l.b16 %v593
    %v2035 = vunpack.c.h.b16 %v593
    %v2036 = vunpack.c.l.b16 %v594
    %v2037 = vunpack.c.h.b16 %v594
    %v2038 = vunpack.c.l.b16 %v595
    %v2039 = vunpack.c.h.b16 %v595
    %v2040 = vunpack.c.l.b16 %v596
    %v2041 = vunpack.c.h.b16 %v596
    %v2042 = vunpack.c.l.b16 %v597
    %v2043 = vunpack.c.h.b16 %v597
    %v2044 = vunpack.c.l.b16 %v598
    %v2045 = vunpack.c.h.b16 %v598
    %v2046 = vunpack.c.l.b16 %v599
    %v2047 = vunpack.c.h.b16 %v599
    %v2048 = vunpack.c.l.b16 %v600
    %v2049 = vunpack.c.h.b16 %v600
    %v2050 = vunpack.c.l.b16 %v601
    %v2051 = vunpack.c.h.b16 %v601
    %v2052 = vunpack.c.l.b16 %v602
    %v2053 = vunpack.c.h.b16 %v602
    %v2054 = vunpack.c.l.b16 %v603
    %v2055 = vunpack.c.h.b16 %v603
    %v2056 = vunpack.c.l.b16 %v604
    %v2057 = vunpack.c.h.b16 %v604
    %v2058 = vunpack.c.l.b16 %v605
    %v2059 = vunpack.c.h.b16 %v605
    %v2060 = vunpack.c.l.b16 %v606
    %v2061 = vunpack.c.h.b16 %v606
    %v2062 = vunpack.c.l.b16 %v607
    %v2063 = vunpack.c.h.b16 %v607
    %v2064 = vunpack.c.l.b16 %v608
    %v2065 = vunpack.c.h.b16 %v608
    %v2066 = vunpack.c.l.b16 %v609
    %v2067 = vunpack.c.h.b16 %v609
    %v2068 = vunpack.c.l.b16 %v610
    %v2069 = vunpack.c.h.b16 %v610
    %v2070 = vunpack.c.l.b16 %v611
    %v2071 = vunpack.c.h.b16 %v611
    %v2072 = vunpack.c.l.b16 %v612
    %v2073 = vunpack.c.h.b16 %v612
    %v2074 = vunpack.c.l.b16 %v613
    %v2075 = vunpack.c.h.b16 %v613
    %v2076 = vunpack.c.l.b16 %v614
    %v2077 = vunpack.c.h.b16 %v614
    %v2078 = vunpack.c.l.b16 %v615
    %v2079 = vunpack.c.h.b16 %v615
    %v2080 = vunpack.c.l.b16 %v616
    %v2081 = vunpack.c.h.b16 %v616
    %v2082 = vunpack.c.l.b16 %v617
    %v2083 = vunpack.c.h.b16 %v617
    %v2084 = vunpack.c.l.b16 %v618
    %v2085 = vunpack.c.h.b16 %v618
    %v2086 = vunpack.c.l.b16 %v619
    %v2087 = vunpack.c.h.b16 %v619
    %v2088 = vunpack.c.l.b16 %v620
    %v2089 = vunpack.c.h.b16 %v620
    %v2090 = vunpack.c.l.b16 %v621
    %v2091 = vunpack.c.h.b16 %v621
    %v2092 = vunpack.c.l.b16 %v622
    %v2093 = vunpack.c.h.b16 %v622
    %v2094 = vunpack.c.l.b16 %v623
    %v2095 = vunpack.c.h.b16 %v623
    %v2096 = vunpack.c.l.b16 %v624
    %v2097 = vunpack.c.h.b16 %v624
    %v2098 = vunpack.c.l.b16 %v625
    %v2099 = vunpack.c.h.b16 %v625
    %v2100 = vunpack.c.l.b16 %v626
    %v2101 = vunpack.c.h.b16 %v626
    %v2102 = vunpack.c.l.b16 %v627
    %v2103 = vunpack.c.h.b16 %v627
    %v2104 = vunpack.c.l.b16 %v628
    %v2105 = vunpack.c.h.b16 %v628
    %v2106 = vunpack.c.l.b16 %v629
    %v2107 = vunpack.c.h.b16 %v629
    %v2108 = vunpack.c.l.b16 %v630
    %v2109 = vunpack.c.h.b16 %v630
    %v2110 = vunpack.c.l.b16 %v631
    %v2111 = vunpack.c.h.b16 %v631
    %v2112 = vunpack.c.l.b16 %v632
    %v2113 = vunpack.c.h.b16 %v632
    %v2114 = vunpack.c.l.b16 %v633
    %v2115 = vunpack.c.h.b16 %v633
    %v2116 = vunpack.c.l.b16 %v634
    %v2117 = vunpack.c.h.b16 %v634
    %v2118 = vunpack.c.l.b16 %v635
    %v2119 = vunpack.c.h.b16 %v635
    %v2120 = vunpack.c.l.b16 %v636
    %v2121 = vunpack.c.h.b16 %v636
    %v2122 = vunpack.c.l.b16 %v637
    %v2123 = vunpack.c.h.b16 %v637
    %v2124 = vunpack.c.l.b16 %v638
    %v2125 = vunpack.c.h.b16 %v638
    %v2126 = vunpack.c.l.b16 %v639
    %v2127 = vunpack.c.h.b16 %v639
    %v2128 = vunpack.c.l.b16 %v640
    %v2129 = vunpack.c.h.b16 %v640
    %v2130 = vunpack.c.l.b16 %v641
    %v2131 = vunpack.c.h.b16 %v641
    %v2132 = vunpack.c.l.b16 %v642
    %v2133 = vunpack.c.h.b16 %v642
    %v2134 = vunpack.c.l.b16 %v643
    %v2135 = vunpack.c.h.b16 %v643
    %v2136 = vunpack.c.l.b16 %v644
    %v2137 = vunpack.c.h.b16 %v644
    %v2138 = vunpack.c.l.b16 %v645
    %v2139 = vunpack.c.h.b16 %v645
    %v2140 = vunpack.c.l.b16 %v646
    %v2141 = vunpack.c.h.b16 %v646
    %v2142 = vunpack.c.l.b16 %v647
    %v2143 = vunpack.c.h.b16 %v647
    %v2144 = vunpack.c.l.b16 %v648
    %v2145 = vunpack.c.h.b16 %v648
    %v2146 = vunpack.c.l.b16 %v649
    %v2147 = vunpack.c.h.b16 %v649
    %v2148 = vunpack.c.l.b16 %v650
    %v2149 = vunpack.c.h.b16 %v650
    %v2150 = vunpack.c.l.b16 %v651
    %v2151 = vunpack.c.h.b16 %v651
    %v2152 = vunpack.c.l.b16 %v652
    %v2153 = vunpack.c.h.b16 %v652
    %v2154 = vunpack.c.l.b16 %v653
    %v2155 = vunpack.c.h.b16 %v653
    %v2156 = vunpack.c.l.b16 %v654
    %v2157 = vunpack.c.h.b16 %v654
    %v2158 = vunpack.c.l.b16 %v655
    %v2159 = vunpack.c.h.b16 %v655
    %v2160 = vunpack.c.l.b16 %v656
    %v2161 = vunpack.c.h.b16 %v656
    %v2162 = vunpack.c.l.b16 %v657
    %v2163 = vunpack.c.h.b16 %v657
    %v2164 = vunpack.c.l.b16 %v658
    %v2165 = vunpack.c.h.b16 %v658
    %v2166 = vunpack.c.l.b16 %v659
    %v2167 = vunpack.c.h.b16 %v659
    %v2168 = vunpack.c.l.b16 %v660
    %v2169 = vunpack.c.h.b16 %v660
    %v2170 = vunpack.c.l.b16 %v661
    %v2171 = vunpack.c.h.b16 %v661
    %v2172 = vunpack.c.l.b16 %v662
    %v2173 = vunpack.c.h.b16 %v662
    %v2174 = vunpack.c.l.b16 %v663
    %v2175 = vunpack.c.h.b16 %v663
    %v2176 = vunpack.c.l.b16 %v664
    %v2177 = vunpack.c.h.b16 %v664
    %v2178 = vunpack.c.l.b16 %v665
    %v2179 = vunpack.c.h.b16 %v665
    %v2180 = vunpack.c.l.b16 %v666
    %v2181 = vunpack.c.h.b16 %v666
    %v2182 = vunpack.c.l.b16 %v667
    %v2183 = vunpack.c.h.b16 %v667
    %v2184 = vunpack.c.l.b16 %v668
    %v2185 = vunpack.c.h.b16 %v668
    %v2186 = vunpack.c.l.b16 %v669
    %v2187 = vunpack.c.h.b16 %v669
    %v2188 = vunpack.c.l.b16 %v670
    %v2189 = vunpack.c.h.b16 %v670
    %v2190 = vunpack.c.l.b16 %v671
    %v2191 = vunpack.c.h.b16 %v671
    %v2192 = vunpack.c.l.b16 %v672
    %v2193 = vunpack.c.h.b16 %v672
    %v2194 = vunpack.c.l.b16 %v673
    %v2195 = vunpack.c.h.b16 %v673
    %v2196 = vunpack.c.l.b16 %v674
    %v2197 = vunpack.c.h.b16 %v674
    %v2198 = vunpack.c.l.b16 %v675
    %v2199 = vunpack.c.h.b16 %v675
    %v2200 = vunpack.c.l.b16 %v676
    %v2201 = vunpack.c.h.b16 %v676
    %v2202 = vunpack.c.l.b16 %v677
    %v2203 = vunpack.c.h.b16 %v677
    %v2204 = vunpack.c.l.b16 %v678
    %v2205 = vunpack.c.h.b16 %v678
    %v2206 = vunpack.c.l.b16 %v679
    %v2207 = vunpack.c.h.b16 %v679
    %v2208 = vunpack.c.l.b16 %v680
    %v2209 = vunpack.c.h.b16 %v680
    %v2210 = vunpack.c.l.b16 %v681
    %v2211 = vunpack.c.h.b16 %v681
    %v2212 = vunpack.c.l.b16 %v682
    %v2213 = vunpack.c.h.b16 %v682
    %v2214 = vunpack.c.l.b16 %v683
    %v2215 = vunpack.c.h.b16 %v683
    %v2216 = vunpack.c.l.b16 %v684
    %v2217 = vunpack.c.h.b16 %v684
    %v2218 = vunpack.c.l.b16 %v685
    %v2219 = vunpack.c.h.b16 %v685
    %v2220 = vunpack.c.l.b16 %v686
    %v2221 = vunpack.c.h.b16 %v686
    %v2222 = vunpack.c.l.b16 %v687
    %v2223 = vunpack.c.h.b16 %v687
    %v2224 = vunpack.c.l.b16 %v688
    %v2225 = vunpack.c.h.b16 %v688
    %v2226 = vunpack.c.l.b16 %v689
    %v2227 = vunpack.c.h.b16 %v689
    %v2228 = vunpack.c.l.b16 %v690
    %v2229 = vunpack.c.h.b16 %v690
    %v2230 = vunpack.c.l.b16 %v691
    %v2231 = vunpack.c.h.b16 %v691
    %v2232 = vunpack.c.l.b16 %v692
    %v2233 = vunpack.c.h.b16 %v692
    %v2234 = vunpack.c.l.b16 %v693
    %v2235 = vunpack.c.h.b16 %v693
    %v2236 = vunpack.c.l.b16 %v694
    %v2237 = vunpack.c.h.b16 %v694
    %v2238 = vunpack.c.l.b16 %v695
    %v2239 = vunpack.c.h.b16 %v695
    %v2240 = vunpack.c.l.b16 %v696
    %v2241 = vunpack.c.h.b16 %v696
    %v2242 = vunpack.c.l.b16 %v697
    %v2243 = vunpack.c.h.b16 %v697
    %v2244 = vunpack.c.l.b16 %v698
    %v2245 = vunpack.c.h.b16 %v698
    %v2246 = vunpack.c.l.b16 %v699
    %v2247 = vunpack.c.h.b16 %v699
    %v2248 = vunpack.c.l.b16 %v700
    %v2249 = vunpack.c.h.b16 %v700
    %v2250 = vunpack.c.l.b16 %v701
    %v2251 = vunpack.c.h.b16 %v701
    %v2252 = vunpack.c.l.b16 %v702
    %v2253 = vunpack.c.h.b16 %v702
    %v2254 = vunpack.c.l.b16 %v703
    %v2255 = vunpack.c.h.b16 %v703
    %v2256 = vunpack.c.l.b16 %v704
    %v2257 = vunpack.c.h.b16 %v704
    %v2258 = vunpack.c.l.b16 %v705
    %v2259 = vunpack.c.h.b16 %v705
    %v2260 = vpack.c.b16 %v1244, %v1236
    %v2261 = vpack.c.b16 %v1245, %v1237
    %v2262 = vpack.c.b16 %v1246, %v1238
    %v2263 = vpack.c.b16 %v1247, %v1239
    %v2264 = vpack.c.b16 %v1248, %v1240
    %v2265 = vpack.c.b16 %v1249, %v1241
    %v2266 = vpack.c.b16 %v1250, %v1242
    %v2267 = vpack.c.b16 %v1251, %v1243
    %v2268 = vpack.c.b16 %v1260, %v1252
    %v2269 = vpack.c.b16 %v1261, %v1253
    %v2270 = vpack.c.b16 %v1262, %v1254
    %v2271 = vpack.c.b16 %v1263, %v1255
    %v2272 = vpack.c.b16 %v1264, %v1256
    %v2273 = vpack.c.b16 %v1265, %v1257
    %v2274 = vpack.c.b16 %v1266, %v1258
    %v2275 = vpack.c.b16 %v1267, %v1259
    %v2276 = vpack.c.b16 %v1276, %v1268
    %v2277 = vpack.c.b16 %v1277, %v1269
    %v2278 = vpack.c.b16 %v1278, %v1270
    %v2279 = vpack.c.b16 %v1279, %v1271
    %v2280 = vpack.c.b16 %v1280, %v1272
    %v2281 = vpack.c.b16 %v1281, %v1273
    %v2282 = vpack.c.b16 %v1282, %v1274
    %v2283 = vpack.c.b16 %v1283, %v1275
    %v2284 = vpack.c.b16 %v1292, %v1284
    %v2285 = vpack.c.b16 %v1293, %v1285
    %v2286 = vpack.c.b16 %v1294, %v1286
    %v2287 = vpack.c.b16 %v1295, %v1287
    %v2288 = vpack.c.b16 %v1296, %v1288
    %v2289 = vpack.c.b16 %v1297, %v1289
    %v2290 = vpack.c.b16 %v1298, %v1290
    %v2291 = vpack.c.b16 %v1299, %v1291
    %v2292 = vpack.c.b16 %v1308, %v1300
    %v2293 = vpack.c.b16 %v1309, %v1301
    %v2294 = vpack.c.b16 %v1310, %v1302
    %v2295 = vpack.c.b16 %v1311, %v1303
    %v2296 = vpack.c.b16 %v1312, %v1304
    %v2297 = vpack.c.b16 %v1313, %v1305
    %v2298 = vpack.c.b16 %v1314, %v1306
    %v2299 = vpack.c.b16 %v1315, %v1307
    %v2300 = vpack.c.b16 %v1324, %v1316
    %v2301 = vpack.c.b16 %v1325, %v1317
    %v2302 = vpack.c.b16 %v1326, %v1318
    %v2303 = vpack.c.b16 %v1327, %v1319
    %v2304 = vpack.c.b16 %v1328, %v1320
    %v2305 = vpack.c.b16 %v1329, %v1321
    %v2306 = vpack.c.b16 %v1330, %v1322
    %v2307 = vpack.c.b16 %v1331, %v1323
    %v2308 = vpack.c.b16 %v1340, %v1332
    %v2309 = vpack.c.b16 %v1341, %v1333
    %v2310 = vpack.c.b16 %v1342, %v1334
    %v2311 = vpack.c.b16 %v1343, %v1335
    %v2312 = vpack.c.b16 %v1344, %v1336
    %v2313 = vpack.c.b16 %v1345, %v1337
    %v2314 = vpack.c.b16 %v1346, %v1338
    %v2315 = vpack.c.b16 %v1347, %v1339
    %v2316 = vpack.c.b16 %v1356, %v1348
    %v2317 = vpack.c.b16 %v1357, %v1349
    %v2318 = vpack.c.b16 %v1358, %v1350
    %v2319 = vpack.c.b16 %v1359, %v1351
    %v2320 = vpack.c.b16 %v1360, %v1352
    %v2321 = vpack.c.b16 %v1361, %v1353
    %v2322 = vpack.c.b16 %v1362, %v1354
    %v2323 = vpack.c.b16 %v1363, %v1355
    %v2324 = vpack.c.b16 %v1372, %v1364
    %v2325 = vpack.c.b16 %v1373, %v1365
    %v2326 = vpack.c.b16 %v1374, %v1366
    %v2327 = vpack.c.b16 %v1375, %v1367
    %v2328 = vpack.c.b16 %v1376, %v1368
    %v2329 = vpack.c.b16 %v1377, %v1369
    %v2330 = vpack.c.b16 %v1378, %v1370
    %v2331 = vpack.c.b16 %v1379, %v1371
    %v2332 = vpack.c.b16 %v1388, %v1380
    %v2333 = vpack.c.b16 %v1389, %v1381
    %v2334 = vpack.c.b16 %v1390, %v1382
    %v2335 = vpack.c.b16 %v1391, %v1383
    %v2336 = vpack.c.b16 %v1392, %v1384
    %v2337 = vpack.c.b16 %v1393, %v1385
    %v2338 = vpack.c.b16 %v1394, %v1386
    %v2339 = vpack.c.b16 %v1395, %v1387
    %v2340 = vpack.c.b16 %v1404, %v1396
    %v2341 = vpack.c.b16 %v1405, %v1397
    %v2342 = vpack.c.b16 %v1406, %v1398
    %v2343 = vpack.c.b16 %v1407, %v1399
    %v2344 = vpack.c.b16 %v1408, %v1400
    %v2345 = vpack.c.b16 %v1409, %v1401
    %v2346 = vpack.c.b16 %v1410, %v1402
    %v2347 = vpack.c.b16 %v1411, %v1403
    %v2348 = vpack.c.b16 %v1420, %v1412
    %v2349 = vpack.c.b16 %v1421, %v1413
    %v2350 = vpack.c.b16 %v1422, %v1414
    %v2351 = vpack.c.b16 %v1423, %v1415
    %v2352 = vpack.c.b16 %v1424, %v1416
    %v2353 = vpack.c.b16 %v1425, %v1417
    %v2354 = vpack.c.b16 %v1426, %v1418
    %v2355 = vpack.c.b16 %v1427, %v1419
    %v2356 = vpack.c.b16 %v1436, %v1428
    %v2357 = vpack.c.b16 %v1437, %v1429
    %v2358 = vpack.c.b16 %v1438, %v1430
    %v2359 = vpack.c.b16 %v1439, %v1431
    %v2360 = vpack.c.b16 %v1440, %v1432
    %v2361 = vpack.c.b16 %v1441, %v1433
    %v2362 = vpack.c.b16 %v1442, %v1434
    %v2363 = vpack.c.b16 %v1443, %v1435
    %v2364 = vpack.c.b16 %v1452, %v1444
    %v2365 = vpack.c.b16 %v1453, %v1445
    %v2366 = vpack.c.b16 %v1454, %v1446
    %v2367 = vpack.c.b16 %v1455, %v1447
    %v2368 = vpack.c.b16 %v1456, %v1448
    %v2369 = vpack.c.b16 %v1457, %v1449
    %v2370 = vpack.c.b16 %v1458, %v1450
    %v2371 = vpack.c.b16 %v1459, %v1451
    %v2372 = vpack.c.b16 %v1468, %v1460
    %v2373 = vpack.c.b16 %v1469, %v1461
    %v2374 = vpack.c.b16 %v1470, %v1462
    %v2375 = vpack.c.b16 %v1471, %v1463
    %v2376 = vpack.c.b16 %v1472, %v1464
    %v2377 = vpack.c.b16 %v1473, %v1465
    %v2378 = vpack.c.b16 %v1474, %v1466
    %v2379 = vpack.c.b16 %v1475, %v1467
    %v2380 = vpack.c.b16 %v1484, %v1476
    %v2381 = vpack.c.b16 %v1485, %v1477
    %v2382 = vpack.c.b16 %v1486, %v1478
    %v2383 = vpack.c.b16 %v1487, %v1479
    %v2384 = vpack.c.b16 %v1488, %v1480
    %v2385 = vpack.c.b16 %v1489, %v1481
    %v2386 = vpack.c.b16 %v1490, %v1482
    %v2387 = vpack.c.b16 %v1491, %v1483
    %v2388 = vpack.c.b16 %v1500, %v1492
    %v2389 = vpack.c.b16 %v1501, %v1493
    %v2390 = vpack.c.b16 %v1502, %v1494
    %v2391 = vpack.c.b16 %v1503, %v1495
    %v2392 = vpack.c.b16 %v1504, %v1496
    %v2393 = vpack.c.b16 %v1505, %v1497
    %v2394 = vpack.c.b16 %v1506, %v1498
    %v2395 = vpack.c.b16 %v1507, %v1499
    %v2396 = vpack.c.b16 %v1516, %v1508
    %v2397 = vpack.c.b16 %v1517, %v1509
    %v2398 = vpack.c.b16 %v1518, %v1510
    %v2399 = vpack.c.b16 %v1519, %v1511
    %v2400 = vpack.c.b16 %v1520, %v1512
    %v2401 = vpack.c.b16 %v1521, %v1513
    %v2402 = vpack.c.b16 %v1522, %v1514
    %v2403 = vpack.c.b16 %v1523, %v1515
    %v2404 = vpack.c.b16 %v1532, %v1524
    %v2405 = vpack.c.b16 %v1533, %v1525
    %v2406 = vpack.c.b16 %v1534, %v1526
    %v2407 = vpack.c.b16 %v1535, %v1527
    %v2408 = vpack.c.b16 %v1536, %v1528
    %v2409 = vpack.c.b16 %v1537, %v1529
    %v2410 = vpack.c.b16 %v1538, %v1530
    %v2411 = vpack.c.b16 %v1539, %v1531
    %v2412 = vpack.c.b16 %v1548, %v1540
    %v2413 = vpack.c.b16 %v1549, %v1541
    %v2414 = vpack.c.b16 %v1550, %v1542
    %v2415 = vpack.c.b16 %v1551, %v1543
    %v2416 = vpack.c.b16 %v1552, %v1544
    %v2417 = vpack.c.b16 %v1553, %v1545
    %v2418 = vpack.c.b16 %v1554, %v1546
    %v2419 = vpack.c.b16 %v1555, %v1547
    %v2420 = vpack.c.b16 %v1564, %v1556
    %v2421 = vpack.c.b16 %v1565, %v1557
    %v2422 = vpack.c.b16 %v1566, %v1558
    %v2423 = vpack.c.b16 %v1567, %v1559
    %v2424 = vpack.c.b16 %v1568, %v1560
    %v2425 = vpack.c.b16 %v1569, %v1561
    %v2426 = vpack.c.b16 %v1570, %v1562
    %v2427 = vpack.c.b16 %v1571, %v1563
    %v2428 = vpack.c.b16 %v1580, %v1572
    %v2429 = vpack.c.b16 %v1581, %v1573
    %v2430 = vpack.c.b16 %v1582, %v1574
    %v2431 = vpack.c.b16 %v1583, %v1575
    %v2432 = vpack.c.b16 %v1584, %v1576
    %v2433 = vpack.c.b16 %v1585, %v1577
    %v2434 = vpack.c.b16 %v1586, %v1578
    %v2435 = vpack.c.b16 %v1587, %v1579
    %v2436 = vpack.c.b16 %v1596, %v1588
    %v2437 = vpack.c.b16 %v1597, %v1589
    %v2438 = vpack.c.b16 %v1598, %v1590
    %v2439 = vpack.c.b16 %v1599, %v1591
    %v2440 = vpack.c.b16 %v1600, %v1592
    %v2441 = vpack.c.b16 %v1601, %v1593
    %v2442 = vpack.c.b16 %v1602, %v1594
    %v2443 = vpack.c.b16 %v1603, %v1595
    %v2444 = vpack.c.b16 %v1612, %v1604
    %v2445 = vpack.c.b16 %v1613, %v1605
    %v2446 = vpack.c.b16 %v1614, %v1606
    %v2447 = vpack.c.b16 %v1615, %v1607
    %v2448 = vpack.c.b16 %v1616, %v1608
    %v2449 = vpack.c.b16 %v1617, %v1609
    %v2450 = vpack.c.b16 %v1618, %v1610
    %v2451 = vpack.c.b16 %v1619, %v1611
    %v2452 = vpack.c.b16 %v1628, %v1620
    %v2453 = vpack.c.b16 %v1629, %v1621
    %v2454 = vpack.c.b16 %v1630, %v1622
    %v2455 = vpack.c.b16 %v1631, %v1623
    %v2456 = vpack.c.b16 %v1632, %v1624
    %v2457 = vpack.c.b16 %v1633, %v1625
    %v2458 = vpack.c.b16 %v1634, %v1626
    %v2459 = vpack.c.b16 %v1635, %v1627
    %v2460 = vpack.c.b16 %v1644, %v1636
    %v2461 = vpack.c.b16 %v1645, %v1637
    %v2462 = vpack.c.b16 %v1646, %v1638
    %v2463 = vpack.c.b16 %v1647, %v1639
    %v2464 = vpack.c.b16 %v1648, %v1640
    %v2465 = vpack.c.b16 %v1649, %v1641
    %v2466 = vpack.c.b16 %v1650, %v1642
    %v2467 = vpack.c.b16 %v1651, %v1643
    %v2468 = vpack.c.b16 %v1660, %v1652
    %v2469 = vpack.c.b16 %v1661, %v1653
    %v2470 = vpack.c.b16 %v1662, %v1654
    %v2471 = vpack.c.b16 %v1663, %v1655
    %v2472 = vpack.c.b16 %v1664, %v1656
    %v2473 = vpack.c.b16 %v1665, %v1657
    %v2474 = vpack.c.b16 %v1666, %v1658
    %v2475 = vpack.c.b16 %v1667, %v1659
    %v2476 = vpack.c.b16 %v1676, %v1668
    %v2477 = vpack.c.b16 %v1677, %v1669
    %v2478 = vpack.c.b16 %v1678, %v1670
    %v2479 = vpack.c.b16 %v1679, %v1671
    %v2480 = vpack.c.b16 %v1680, %v1672
    %v2481 = vpack.c.b16 %v1681, %v1673
    %v2482 = vpack.c.b16 %v1682, %v1674
    %v2483 = vpack.c.b16 %v1683, %v1675
    %v2484 = vpack.c.b16 %v1692, %v1684
    %v2485 = vpack.c.b16 %v1693, %v1685
    %v2486 = vpack.c.b16 %v1694, %v1686
    %v2487 = vpack.c.b16 %v1695, %v1687
    %v2488 = vpack.c.b16 %v1696, %v1688
    %v2489 = vpack.c.b16 %v1697, %v1689
    %v2490 = vpack.c.b16 %v1698, %v1690
    %v2491 = vpack.c.b16 %v1699, %v1691
    %v2492 = vpack.c.b16 %v1708, %v1700
    %v2493 = vpack.c.b16 %v1709, %v1701
    %v2494 = vpack.c.b16 %v1710, %v1702
    %v2495 = vpack.c.b16 %v1711, %v1703
    %v2496 = vpack.c.b16 %v1712, %v1704
    %v2497 = vpack.c.b16 %v1713, %v1705
    %v2498 = vpack.c.b16 %v1714, %v1706
    %v2499 = vpack.c.b16 %v1715, %v1707
    %v2500 = vpack.c.b16 %v1724, %v1716
    %v2501 = vpack.c.b16 %v1725, %v1717
    %v2502 = vpack.c.b16 %v1726, %v1718
    %v2503 = vpack.c.b16 %v1727, %v1719
    %v2504 = vpack.c.b16 %v1728, %v1720
    %v2505 = vpack.c.b16 %v1729, %v1721
    %v2506 = vpack.c.b16 %v1730, %v1722
    %v2507 = vpack.c.b16 %v1731, %v1723
    %v2508 = vpack.c.b16 %v1740, %v1732
    %v2509 = vpack.c.b16 %v1741, %v1733
    %v2510 = vpack.c.b16 %v1742, %v1734
    %v2511 = vpack.c.b16 %v1743, %v1735
    %v2512 = vpack.c.b16 %v1744, %v1736
    %v2513 = vpack.c.b16 %v1745, %v1737
    %v2514 = vpack.c.b16 %v1746, %v1738
    %v2515 = vpack.c.b16 %v1747, %v1739
    %v2516 = vpack.c.b16 %v1756, %v1748
    %v2517 = vpack.c.b16 %v1757, %v1749
    %v2518 = vpack.c.b16 %v1758, %v1750
    %v2519 = vpack.c.b16 %v1759, %v1751
    %v2520 = vpack.c.b16 %v1760, %v1752
    %v2521 = vpack.c.b16 %v1761, %v1753
    %v2522 = vpack.c.b16 %v1762, %v1754
    %v2523 = vpack.c.b16 %v1763, %v1755
    %v2524 = vpack.c.b16 %v1772, %v1764
    %v2525 = vpack.c.b16 %v1773, %v1765
    %v2526 = vpack.c.b16 %v1774, %v1766
    %v2527 = vpack.c.b16 %v1775, %v1767
    %v2528 = vpack.c.b16 %v1776, %v1768
    %v2529 = vpack.c.b16 %v1777, %v1769
    %v2530 = vpack.c.b16 %v1778, %v1770
    %v2531 = vpack.c.b16 %v1779, %v1771
    %v2532 = vpack.c.b16 %v1788, %v1780
    %v2533 = vpack.c.b16 %v1789, %v1781
    %v2534 = vpack.c.b16 %v1790, %v1782
    %v2535 = vpack.c.b16 %v1791, %v1783
    %v2536 = vpack.c.b16 %v1792, %v1784
    %v2537 = vpack.c.b16 %v1793, %v1785
    %v2538 = vpack.c.b16 %v1794, %v1786
    %v2539 = vpack.c.b16 %v1795, %v1787
    %v2540 = vpack.c.b16 %v1804, %v1796
    %v2541 = vpack.c.b16 %v1805, %v1797
    %v2542 = vpack.c.b16 %v1806, %v1798
    %v2543 = vpack.c.b16 %v1807, %v1799
    %v2544 = vpack.c.b16 %v1808, %v1800
    %v2545 = vpack.c.b16 %v1809, %v1801
    %v2546 = vpack.c.b16 %v1810, %v1802
    %v2547 = vpack.c.b16 %v1811, %v1803
    %v2548 = vpack.c.b16 %v1820, %v1812
    %v2549 = vpack.c.b16 %v1821, %v1813
    %v2550 = vpack.c.b16 %v1822, %v1814
    %v2551 = vpack.c.b16 %v1823, %v1815
    %v2552 = vpack.c.b16 %v1824, %v1816
    %v2553 = vpack.c.b16 %v1825, %v1817
    %v2554 = vpack.c.b16 %v1826, %v1818
    %v2555 = vpack.c.b16 %v1827, %v1819
    %v2556 = vpack.c.b16 %v1836, %v1828
    %v2557 = vpack.c.b16 %v1837, %v1829
    %v2558 = vpack.c.b16 %v1838, %v1830
    %v2559 = vpack.c.b16 %v1839, %v1831
    %v2560 = vpack.c.b16 %v1840, %v1832
    %v2561 = vpack.c.b16 %v1841, %v1833
    %v2562 = vpack.c.b16 %v1842, %v1834
    %v2563 = vpack.c.b16 %v1843, %v1835
    %v2564 = vpack.c.b16 %v1852, %v1844
    %v2565 = vpack.c.b16 %v1853, %v1845
    %v2566 = vpack.c.b16 %v1854, %v1846
    %v2567 = vpack.c.b16 %v1855, %v1847
    %v2568 = vpack.c.b16 %v1856, %v1848
    %v2569 = vpack.c.b16 %v1857, %v1849
    %v2570 = vpack.c.b16 %v1858, %v1850
    %v2571 = vpack.c.b16 %v1859, %v1851
    %v2572 = vpack.c.b16 %v1868, %v1860
    %v2573 = vpack.c.b16 %v1869, %v1861
    %v2574 = vpack.c.b16 %v1870, %v1862
    %v2575 = vpack.c.b16 %v1871, %v1863
    %v2576 = vpack.c.b16 %v1872, %v1864
    %v2577 = vpack.c.b16 %v1873, %v1865
    %v2578 = vpack.c.b16 %v1874, %v1866
    %v2579 = vpack.c.b16 %v1875, %v1867
    %v2580 = vpack.c.b16 %v1884, %v1876
    %v2581 = vpack.c.b16 %v1885, %v1877
    %v2582 = vpack.c.b16 %v1886, %v1878
    %v2583 = vpack.c.b16 %v1887, %v1879
    %v2584 = vpack.c.b16 %v1888, %v1880
    %v2585 = vpack.c.b16 %v1889, %v1881
    %v2586 = vpack.c.b16 %v1890, %v1882
    %v2587 = vpack.c.b16 %v1891, %v1883
    %v2588 = vpack.c.b16 %v1900, %v1892
    %v2589 = vpack.c.b16 %v1901, %v1893
    %v2590 = vpack.c.b16 %v1902, %v1894
    %v2591 = vpack.c.b16 %v1903, %v1895
    %v2592 = vpack.c.b16 %v1904, %v1896
    %v2593 = vpack.c.b16 %v1905, %v1897
    %v2594 = vpack.c.b16 %v1906, %v1898
    %v2595 = vpack.c.b16 %v1907, %v1899
    %v2596 = vpack.c.b16 %v1916, %v1908
    %v2597 = vpack.c.b16 %v1917, %v1909
    %v2598 = vpack.c.b16 %v1918, %v1910
    %v2599 = vpack.c.b16 %v1919, %v1911
    %v2600 = vpack.c.b16 %v1920, %v1912
    %v2601 = vpack.c.b16 %v1921, %v1913
    %v2602 = vpack.c.b16 %v1922, %v1914
    %v2603 = vpack.c.b16 %v1923, %v1915
    %v2604 = vpack.c.b16 %v1932, %v1924
    %v2605 = vpack.c.b16 %v1933, %v1925
    %v2606 = vpack.c.b16 %v1934, %v1926
    %v2607 = vpack.c.b16 %v1935, %v1927
    %v2608 = vpack.c.b16 %v1936, %v1928
    %v2609 = vpack.c.b16 %v1937, %v1929
    %v2610 = vpack.c.b16 %v1938, %v1930
    %v2611 = vpack.c.b16 %v1939, %v1931
    %v2612 = vpack.c.b16 %v1948, %v1940
    %v2613 = vpack.c.b16 %v1949, %v1941
    %v2614 = vpack.c.b16 %v1950, %v1942
    %v2615 = vpack.c.b16 %v1951, %v1943
    %v2616 = vpack.c.b16 %v1952, %v1944
    %v2617 = vpack.c.b16 %v1953, %v1945
    %v2618 = vpack.c.b16 %v1954, %v1946
    %v2619 = vpack.c.b16 %v1955, %v1947
    %v2620 = vpack.c.b16 %v1964, %v1956
    %v2621 = vpack.c.b16 %v1965, %v1957
    %v2622 = vpack.c.b16 %v1966, %v1958
    %v2623 = vpack.c.b16 %v1967, %v1959
    %v2624 = vpack.c.b16 %v1968, %v1960
    %v2625 = vpack.c.b16 %v1969, %v1961
    %v2626 = vpack.c.b16 %v1970, %v1962
    %v2627 = vpack.c.b16 %v1971, %v1963
    %v2628 = vpack.c.b16 %v1980, %v1972
    %v2629 = vpack.c.b16 %v1981, %v1973
    %v2630 = vpack.c.b16 %v1982, %v1974
    %v2631 = vpack.c.b16 %v1983, %v1975
    %v2632 = vpack.c.b16 %v1984, %v1976
    %v2633 = vpack.c.b16 %v1985, %v1977
    %v2634 = vpack.c.b16 %v1986, %v1978
    %v2635 = vpack.c.b16 %v1987, %v1979
    %v2636 = vpack.c.b16 %v1996, %v1988
    %v2637 = vpack.c.b16 %v1997, %v1989
    %v2638 = vpack.c.b16 %v1998, %v1990
    %v2639 = vpack.c.b16 %v1999, %v1991
    %v2640 = vpack.c.b16 %v2000, %v1992
    %v2641 = vpack.c.b16 %v2001, %v1993
    %v2642 = vpack.c.b16 %v2002, %v1994
    %v2643 = vpack.c.b16 %v2003, %v1995
    %v2644 = vpack.c.b16 %v2012, %v2004
    %v2645 = vpack.c.b16 %v2013, %v2005
    %v2646 = vpack.c.b16 %v2014, %v2006
    %v2647 = vpack.c.b16 %v2015, %v2007
    %v2648 = vpack.c.b16 %v2016, %v2008
    %v2649 = vpack.c.b16 %v2017, %v2009
    %v2650 = vpack.c.b16 %v2018, %v2010
    %v2651 = vpack.c.b16 %v2019, %v2011
    %v2652 = vpack.c.b16 %v2028, %v2020
    %v2653 = vpack.c.b16 %v2029, %v2021
    %v2654 = vpack.c.b16 %v2030, %v2022
    %v2655 = vpack.c.b16 %v2031, %v2023
    %v2656 = vpack.c.b16 %v2032, %v2024
    %v2657 = vpack.c.b16 %v2033, %v2025
    %v2658 = vpack.c.b16 %v2034, %v2026
    %v2659 = vpack.c.b16 %v2035, %v2027
    %v2660 = vpack.c.b16 %v2044, %v2036
    %v2661 = vpack.c.b16 %v2045, %v2037
    %v2662 = vpack.c.b16 %v2046, %v2038
    %v2663 = vpack.c.b16 %v2047, %v2039
    %v2664 = vpack.c.b16 %v2048, %v2040
    %v2665 = vpack.c.b16 %v2049, %v2041
    %v2666 = vpack.c.b16 %v2050, %v2042
    %v2667 = vpack.c.b16 %v2051, %v2043
    %v2668 = vpack.c.b16 %v2060, %v2052
    %v2669 = vpack.c.b16 %v2061, %v2053
    %v2670 = vpack.c.b16 %v2062, %v2054
    %v2671 = vpack.c.b16 %v2063, %v2055
    %v2672 = vpack.c.b16 %v2064, %v2056
    %v2673 = vpack.c.b16 %v2065, %v2057
    %v2674 = vpack.c.b16 %v2066, %v2058
    %v2675 = vpack.c.b16 %v2067, %v2059
    %v2676 = vpack.c.b16 %v2076, %v2068
    %v2677 = vpack.c.b16 %v2077, %v2069
    %v2678 = vpack.c.b16 %v2078, %v2070
    %v2679 = vpack.c.b16 %v2079, %v2071
    %v2680 = vpack.c.b16 %v2080, %v2072
    %v2681 = vpack.c.b16 %v2081, %v2073
    %v2682 = vpack.c.b16 %v2082, %v2074
    %v2683 = vpack.c.b16 %v2083, %v2075
    %v2684 = vpack.c.b16 %v2092, %v2084
    %v2685 = vpack.c.b16 %v2093, %v2085
    %v2686 = vpack.c.b16 %v2094, %v2086
    %v2687 = vpack.c.b16 %v2095, %v2087
    %v2688 = vpack.c.b16 %v2096, %v2088
    %v2689 = vpack.c.b16 %v2097, %v2089
    %v2690 = vpack.c.b16 %v2098, %v2090
    %v2691 = vpack.c.b16 %v2099, %v2091
    %v2692 = vpack.c.b16 %v2108, %v2100
    %v2693 = vpack.c.b16 %v2109, %v2101
    %v2694 = vpack.c.b16 %v2110, %v2102
    %v2695 = vpack.c.b16 %v2111, %v2103
    %v2696 = vpack.c.b16 %v2112, %v2104
    %v2697 = vpack.c.b16 %v2113, %v2105
    %v2698 = vpack.c.b16 %v2114, %v2106
    %v2699 = vpack.c.b16 %v2115, %v2107
    %v2700 = vpack.c.b16 %v2124, %v2116
    %v2701 = vpack.c.b16 %v2125, %v2117
    %v2702 = vpack.c.b16 %v2126, %v2118
    %v2703 = vpack.c.b16 %v2127, %v2119
    %v2704 = vpack.c.b16 %v2128, %v2120
    %v2705 = vpack.c.b16 %v2129, %v2121
    %v2706 = vpack.c.b16 %v2130, %v2122
    %v2707 = vpack.c.b16 %v2131, %v2123
    %v2708 = vpack.c.b16 %v2140, %v2132
    %v2709 = vpack.c.b16 %v2141, %v2133
    %v2710 = vpack.c.b16 %v2142, %v2134
    %v2711 = vpack.c.b16 %v2143, %v2135
    %v2712 = vpack.c.b16 %v2144, %v2136
    %v2713 = vpack.c.b16 %v2145, %v2137
    %v2714 = vpack.c.b16 %v2146, %v2138
    %v2715 = vpack.c.b16 %v2147, %v2139
    %v2716 = vpack.c.b16 %v2156, %v2148
    %v2717 = vpack.c.b16 %v2157, %v2149
    %v2718 = vpack.c.b16 %v2158, %v2150
    %v2719 = vpack.c.b16 %v2159, %v2151
    %v2720 = vpack.c.b16 %v2160, %v2152
    %v2721 = vpack.c.b16 %v2161, %v2153
    %v2722 = vpack.c.b16 %v2162, %v2154
    %v2723 = vpack.c.b16 %v2163, %v2155
    %v2724 = vpack.c.b16 %v2172, %v2164
    %v2725 = vpack.c.b16 %v2173, %v2165
    %v2726 = vpack.c.b16 %v2174, %v2166
    %v2727 = vpack.c.b16 %v2175, %v2167
    %v2728 = vpack.c.b16 %v2176, %v2168
    %v2729 = vpack.c.b16 %v2177, %v2169
    %v2730 = vpack.c.b16 %v2178, %v2170
    %v2731 = vpack.c.b16 %v2179, %v2171
    %v2732 = vpack.c.b16 %v2188, %v2180
    %v2733 = vpack.c.b16 %v2189, %v2181
    %v2734 = vpack.c.b16 %v2190, %v2182
    %v2735 = vpack.c.b16 %v2191, %v2183
    %v2736 = vpack.c.b16 %v2192, %v2184
    %v2737 = vpack.c.b16 %v2193, %v2185
    %v2738 = vpack.c.b16 %v2194, %v2186
    %v2739 = vpack.c.b16 %v2195, %v2187
    %v2740 = vpack.c.b16 %v2204, %v2196
    %v2741 = vpack.c.b16 %v2205, %v2197
    %v2742 = vpack.c.b16 %v2206, %v2198
    %v2743 = vpack.c.b16 %v2207, %v2199
    %v2744 = vpack.c.b16 %v2208, %v2200
    %v2745 = vpack.c.b16 %v2209, %v2201
    %v2746 = vpack.c.b16 %v2210, %v2202
    %v2747 = vpack.c.b16 %v2211, %v2203
    %v2748 = vpack.c.b16 %v2220, %v2212
    %v2749 = vpack.c.b16 %v2221, %v2213
    %v2750 = vpack.c.b16 %v2222, %v2214
    %v2751 = vpack.c.b16 %v2223, %v2215
    %v2752 = vpack.c.b16 %v2224, %v2216
    %v2753 = vpack.c.b16 %v2225, %v2217
    %v2754 = vpack.c.b16 %v2226, %v2218
    %v2755 = vpack.c.b16 %v2227, %v2219
    %v2756 = vpack.c.b16 %v2236, %v2228
    %v2757 = vpack.c.b16 %v2237, %v2229
    %v2758 = vpack.c.b16 %v2238, %v2230
    %v2759 = vpack.c.b16 %v2239, %v2231
    %v2760 = vpack.c.b16 %v2240, %v2232
    %v2761 = vpack.c.b16 %v2241, %v2233
    %v2762 = vpack.c.b16 %v2242, %v2234
    %v2763 = vpack.c.b16 %v2243, %v2235
    %v2764 = vpack.c.b16 %v2252, %v2244
    %v2765 = vpack.c.b16 %v2253, %v2245
    %v2766 = vpack.c.b16 %v2254, %v2246
    %v2767 = vpack.c.b16 %v2255, %v2247
    %v2768 = vpack.c.b16 %v2256, %v2248
    %v2769 = vpack.c.b16 %v2257, %v2249
    %v2770 = vpack.c.b16 %v2258, %v2250
    %v2771 = vpack.c.b16 %v2259, %v2251
    %3284 = vmatpush.bf16.msra.mxu0 %v2316
    %3285 = vmatpush.bf16.msra.mxu0 %v2308
    %3286 = vmatpush.bf16.msra.mxu0 %v2300
    %3287 = vmatpush.bf16.msra.mxu0 %v2292
    %3288 = vmatpush.bf16.msra.mxu0 %v2284
    %3289 = vmatpush.bf16.msra.mxu0 %v2276
    %3290 = vmatpush.bf16.msra.mxu0 %v2268
    %3291 = vmatpush.bf16.msra.mxu0 %v2260
    %3292 = vmatmul.bf16.gmra.mxu0 %v186
    %v3293 = vpop.f32.mrf.mxu0
    %v3294 = vadd.f32 %v708, %v3293
    %v3295 = vpop.f32.mrf.mxu0
    %3296 = vdwg.mxu0
    %3297 = vmatpush.bf16.msra.mxu0 %v2380
    %3298 = vmatpush.bf16.msra.mxu0 %v2372
    %3299 = vmatpush.bf16.msra.mxu0 %v2364
    %3300 = vmatpush.bf16.msra.mxu0 %v2356
    %3301 = vmatpush.bf16.msra.mxu0 %v2348
    %3302 = vmatpush.bf16.msra.mxu0 %v2340
    %3303 = vmatpush.bf16.msra.mxu0 %v2332
    %3304 = vmatpush.bf16.msra.mxu0 %v2324
    %3305 = vmatmul.bf16.gmra.mxu0 %v187
    %v3306 = vpop.f32.mrf.mxu0
    %v3307 = vadd.f32 %v3294, %v3306
    %v3308 = vpop.f32.mrf.mxu0
    %3309 = vdwg.mxu0
    %3310 = vmatpush.bf16.msra.mxu0 %v2444
    %3311 = vmatpush.bf16.msra.mxu0 %v2436
    %3312 = vmatpush.bf16.msra.mxu0 %v2428
    %3313 = vmatpush.bf16.msra.mxu0 %v2420
    %3314 = vmatpush.bf16.msra.mxu0 %v2412
    %3315 = vmatpush.bf16.msra.mxu0 %v2404
    %3316 = vmatpush.bf16.msra.mxu0 %v2396
    %3317 = vmatpush.bf16.msra.mxu0 %v2388
    %3318 = vmatmul.bf16.gmra.mxu0 %v188
    %v3319 = vpop.f32.mrf.mxu0
    %v3320 = vadd.f32 %v3307, %v3319
    %v3321 = vpop.f32.mrf.mxu0
    %3322 = vdwg.mxu0
    %3323 = vmatpush.bf16.msra.mxu0 %v2508
    %3324 = vmatpush.bf16.msra.mxu0 %v2500
    %3325 = vmatpush.bf16.msra.mxu0 %v2492
    %3326 = vmatpush.bf16.msra.mxu0 %v2484
    %3327 = vmatpush.bf16.msra.mxu0 %v2476
    %3328 = vmatpush.bf16.msra.mxu0 %v2468
    %3329 = vmatpush.bf16.msra.mxu0 %v2460
    %3330 = vmatpush.bf16.msra.mxu0 %v2452
    %3331 = vmatmul.bf16.gmra.mxu0 %v189
    %v3332 = vpop.f32.mrf.mxu0
    %v3333 = vadd.f32 %v3320, %v3332
    %v3334 = vpop.f32.mrf.mxu0
    %3335 = vdwg.mxu0
    %3336 = vmatpush.bf16.msra.mxu0 %v2572
    %3337 = vmatpush.bf16.msra.mxu0 %v2564
    %3338 = vmatpush.bf16.msra.mxu0 %v2556
    %3339 = vmatpush.bf16.msra.mxu0 %v2548
    %3340 = vmatpush.bf16.msra.mxu0 %v2540
    %3341 = vmatpush.bf16.msra.mxu0 %v2532
    %3342 = vmatpush.bf16.msra.mxu0 %v2524
    %3343 = vmatpush.bf16.msra.mxu0 %v2516
    %3344 = vmatmul.bf16.gmra.mxu0 %v190
    %v3345 = vpop.f32.mrf.mxu0
    %v3346 = vadd.f32 %v3333, %v3345
    %v3347 = vpop.f32.mrf.mxu0
    %3348 = vdwg.mxu0
    %3349 = vmatpush.bf16.msra.mxu0 %v2636
    %3350 = vmatpush.bf16.msra.mxu0 %v2628
    %3351 = vmatpush.bf16.msra.mxu0 %v2620
    %3352 = vmatpush.bf16.msra.mxu0 %v2612
    %3353 = vmatpush.bf16.msra.mxu0 %v2604
    %3354 = vmatpush.bf16.msra.mxu0 %v2596
    %3355 = vmatpush.bf16.msra.mxu0 %v2588
    %3356 = vmatpush.bf16.msra.mxu0 %v2580
    %3357 = vmatmul.bf16.gmra.mxu0 %v191
    %v3358 = vpop.f32.mrf.mxu0
    %v3359 = vadd.f32 %v3346, %v3358
    %v3360 = vpop.f32.mrf.mxu0
    %3361 = vdwg.mxu0
    %3362 = vmatpush.bf16.msra.mxu0 %v2700
    %3363 = vmatpush.bf16.msra.mxu0 %v2692
    %3364 = vmatpush.bf16.msra.mxu0 %v2684
    %3365 = vmatpush.bf16.msra.mxu0 %v2676
    %3366 = vmatpush.bf16.msra.mxu0 %v2668
    %3367 = vmatpush.bf16.msra.mxu0 %v2660
    %3368 = vmatpush.bf16.msra.mxu0 %v2652
    %3369 = vmatpush.bf16.msra.mxu0 %v2644
    %3370 = vmatmul.bf16.gmra.mxu0 %v192
    %v3371 = vpop.f32.mrf.mxu0
    %v3372 = vadd.f32 %v3359, %v3371
    %v3373 = vpop.f32.mrf.mxu0
    %3374 = vdwg.mxu0
    %3375 = vmatpush.bf16.msra.mxu0 %v2764
    %3376 = vmatpush.bf16.msra.mxu0 %v2756
    %3377 = vmatpush.bf16.msra.mxu0 %v2748
    %3378 = vmatpush.bf16.msra.mxu0 %v2740
    %3379 = vmatpush.bf16.msra.mxu0 %v2732
    %3380 = vmatpush.bf16.msra.mxu0 %v2724
    %3381 = vmatpush.bf16.msra.mxu0 %v2716
    %3382 = vmatpush.bf16.msra.mxu0 %v2708
    %3383 = vmatmul.bf16.gmra.mxu0 %v193
    %v3384 = vpop.f32.mrf.mxu0
    %v3385 = vadd.f32 %v3372, %v3384
    %v3386 = vpop.f32.mrf.mxu0
    %3387 = vdwg.mxu0
    %3388 = vmatpush.bf16.msra.mxu0 %v2317
    %3389 = vmatpush.bf16.msra.mxu0 %v2309
    %3390 = vmatpush.bf16.msra.mxu0 %v2301
    %3391 = vmatpush.bf16.msra.mxu0 %v2293
    %3392 = vmatpush.bf16.msra.mxu0 %v2285
    %3393 = vmatpush.bf16.msra.mxu0 %v2277
    %3394 = vmatpush.bf16.msra.mxu0 %v2269
    %3395 = vmatpush.bf16.msra.mxu0 %v2261
    %3396 = vmatmul.bf16.gmra.mxu0 %v186
    %v3397 = vpop.f32.mrf.mxu0
    %v3398 = vadd.f32 %v709, %v3397
    %v3399 = vpop.f32.mrf.mxu0
    %3400 = vdwg.mxu0
    %3401 = vmatpush.bf16.msra.mxu0 %v2381
    %3402 = vmatpush.bf16.msra.mxu0 %v2373
    %3403 = vmatpush.bf16.msra.mxu0 %v2365
    %3404 = vmatpush.bf16.msra.mxu0 %v2357
    %3405 = vmatpush.bf16.msra.mxu0 %v2349
    %3406 = vmatpush.bf16.msra.mxu0 %v2341
    %3407 = vmatpush.bf16.msra.mxu0 %v2333
    %3408 = vmatpush.bf16.msra.mxu0 %v2325
    %3409 = vmatmul.bf16.gmra.mxu0 %v187
    %v3410 = vpop.f32.mrf.mxu0
    %v3411 = vadd.f32 %v3398, %v3410
    %v3412 = vpop.f32.mrf.mxu0
    %3413 = vdwg.mxu0
    %3414 = vmatpush.bf16.msra.mxu0 %v2445
    %3415 = vmatpush.bf16.msra.mxu0 %v2437
    %3416 = vmatpush.bf16.msra.mxu0 %v2429
    %3417 = vmatpush.bf16.msra.mxu0 %v2421
    %3418 = vmatpush.bf16.msra.mxu0 %v2413
    %3419 = vmatpush.bf16.msra.mxu0 %v2405
    %3420 = vmatpush.bf16.msra.mxu0 %v2397
    %3421 = vmatpush.bf16.msra.mxu0 %v2389
    %3422 = vmatmul.bf16.gmra.mxu0 %v188
    %v3423 = vpop.f32.mrf.mxu0
    %v3424 = vadd.f32 %v3411, %v3423
    %v3425 = vpop.f32.mrf.mxu0
    %3426 = vdwg.mxu0
    %3427 = vmatpush.bf16.msra.mxu0 %v2509
    %3428 = vmatpush.bf16.msra.mxu0 %v2501
    %3429 = vmatpush.bf16.msra.mxu0 %v2493
    %3430 = vmatpush.bf16.msra.mxu0 %v2485
    %3431 = vmatpush.bf16.msra.mxu0 %v2477
    %3432 = vmatpush.bf16.msra.mxu0 %v2469
    %3433 = vmatpush.bf16.msra.mxu0 %v2461
    %3434 = vmatpush.bf16.msra.mxu0 %v2453
    %3435 = vmatmul.bf16.gmra.mxu0 %v189
    %v3436 = vpop.f32.mrf.mxu0
    %v3437 = vadd.f32 %v3424, %v3436
    %v3438 = vpop.f32.mrf.mxu0
    %3439 = vdwg.mxu0
    %3440 = vmatpush.bf16.msra.mxu0 %v2573
    %3441 = vmatpush.bf16.msra.mxu0 %v2565
    %3442 = vmatpush.bf16.msra.mxu0 %v2557
    %3443 = vmatpush.bf16.msra.mxu0 %v2549
    %3444 = vmatpush.bf16.msra.mxu0 %v2541
    %3445 = vmatpush.bf16.msra.mxu0 %v2533
    %3446 = vmatpush.bf16.msra.mxu0 %v2525
    %3447 = vmatpush.bf16.msra.mxu0 %v2517
    %3448 = vmatmul.bf16.gmra.mxu0 %v190
    %v3449 = vpop.f32.mrf.mxu0
    %v3450 = vadd.f32 %v3437, %v3449
    %v3451 = vpop.f32.mrf.mxu0
    %3452 = vdwg.mxu0
    %3453 = vmatpush.bf16.msra.mxu0 %v2637
    %3454 = vmatpush.bf16.msra.mxu0 %v2629
    %3455 = vmatpush.bf16.msra.mxu0 %v2621
    %3456 = vmatpush.bf16.msra.mxu0 %v2613
    %3457 = vmatpush.bf16.msra.mxu0 %v2605
    %3458 = vmatpush.bf16.msra.mxu0 %v2597
    %3459 = vmatpush.bf16.msra.mxu0 %v2589
    %3460 = vmatpush.bf16.msra.mxu0 %v2581
    %3461 = vmatmul.bf16.gmra.mxu0 %v191
    %v3462 = vpop.f32.mrf.mxu0
    %v3463 = vadd.f32 %v3450, %v3462
    %v3464 = vpop.f32.mrf.mxu0
    %3465 = vdwg.mxu0
    %3466 = vmatpush.bf16.msra.mxu0 %v2701
    %3467 = vmatpush.bf16.msra.mxu0 %v2693
    %3468 = vmatpush.bf16.msra.mxu0 %v2685
    %3469 = vmatpush.bf16.msra.mxu0 %v2677
    %3470 = vmatpush.bf16.msra.mxu0 %v2669
    %3471 = vmatpush.bf16.msra.mxu0 %v2661
    %3472 = vmatpush.bf16.msra.mxu0 %v2653
    %3473 = vmatpush.bf16.msra.mxu0 %v2645
    %3474 = vmatmul.bf16.gmra.mxu0 %v192
    %v3475 = vpop.f32.mrf.mxu0
    %v3476 = vadd.f32 %v3463, %v3475
    %v3477 = vpop.f32.mrf.mxu0
    %3478 = vdwg.mxu0
    %3479 = vmatpush.bf16.msra.mxu0 %v2765
    %3480 = vmatpush.bf16.msra.mxu0 %v2757
    %3481 = vmatpush.bf16.msra.mxu0 %v2749
    %3482 = vmatpush.bf16.msra.mxu0 %v2741
    %3483 = vmatpush.bf16.msra.mxu0 %v2733
    %3484 = vmatpush.bf16.msra.mxu0 %v2725
    %3485 = vmatpush.bf16.msra.mxu0 %v2717
    %3486 = vmatpush.bf16.msra.mxu0 %v2709
    %3487 = vmatmul.bf16.gmra.mxu0 %v193
    %v3488 = vpop.f32.mrf.mxu0
    %v3489 = vadd.f32 %v3476, %v3488
    %v3490 = vpop.f32.mrf.mxu0
    %3491 = vdwg.mxu0
    %3492 = vmatpush.bf16.msra.mxu0 %v2318
    %3493 = vmatpush.bf16.msra.mxu0 %v2310
    %3494 = vmatpush.bf16.msra.mxu0 %v2302
    %3495 = vmatpush.bf16.msra.mxu0 %v2294
    %3496 = vmatpush.bf16.msra.mxu0 %v2286
    %3497 = vmatpush.bf16.msra.mxu0 %v2278
    %3498 = vmatpush.bf16.msra.mxu0 %v2270
    %3499 = vmatpush.bf16.msra.mxu0 %v2262
    %3500 = vmatmul.bf16.gmra.mxu0 %v186
    %v3501 = vpop.f32.mrf.mxu0
    %v3502 = vadd.f32 %v710, %v3501
    %v3503 = vpop.f32.mrf.mxu0
    %3504 = vdwg.mxu0
    %3505 = vmatpush.bf16.msra.mxu0 %v2382
    %3506 = vmatpush.bf16.msra.mxu0 %v2374
    %3507 = vmatpush.bf16.msra.mxu0 %v2366
    %3508 = vmatpush.bf16.msra.mxu0 %v2358
    %3509 = vmatpush.bf16.msra.mxu0 %v2350
    %3510 = vmatpush.bf16.msra.mxu0 %v2342
    %3511 = vmatpush.bf16.msra.mxu0 %v2334
    %3512 = vmatpush.bf16.msra.mxu0 %v2326
    %3513 = vmatmul.bf16.gmra.mxu0 %v187
    %v3514 = vpop.f32.mrf.mxu0
    %v3515 = vadd.f32 %v3502, %v3514
    %v3516 = vpop.f32.mrf.mxu0
    %3517 = vdwg.mxu0
    %3518 = vmatpush.bf16.msra.mxu0 %v2446
    %3519 = vmatpush.bf16.msra.mxu0 %v2438
    %3520 = vmatpush.bf16.msra.mxu0 %v2430
    %3521 = vmatpush.bf16.msra.mxu0 %v2422
    %3522 = vmatpush.bf16.msra.mxu0 %v2414
    %3523 = vmatpush.bf16.msra.mxu0 %v2406
    %3524 = vmatpush.bf16.msra.mxu0 %v2398
    %3525 = vmatpush.bf16.msra.mxu0 %v2390
    %3526 = vmatmul.bf16.gmra.mxu0 %v188
    %v3527 = vpop.f32.mrf.mxu0
    %v3528 = vadd.f32 %v3515, %v3527
    %v3529 = vpop.f32.mrf.mxu0
    %3530 = vdwg.mxu0
    %3531 = vmatpush.bf16.msra.mxu0 %v2510
    %3532 = vmatpush.bf16.msra.mxu0 %v2502
    %3533 = vmatpush.bf16.msra.mxu0 %v2494
    %3534 = vmatpush.bf16.msra.mxu0 %v2486
    %3535 = vmatpush.bf16.msra.mxu0 %v2478
    %3536 = vmatpush.bf16.msra.mxu0 %v2470
    %3537 = vmatpush.bf16.msra.mxu0 %v2462
    %3538 = vmatpush.bf16.msra.mxu0 %v2454
    %3539 = vmatmul.bf16.gmra.mxu0 %v189
    %v3540 = vpop.f32.mrf.mxu0
    %v3541 = vadd.f32 %v3528, %v3540
    %v3542 = vpop.f32.mrf.mxu0
    %3543 = vdwg.mxu0
    %3544 = vmatpush.bf16.msra.mxu0 %v2574
    %3545 = vmatpush.bf16.msra.mxu0 %v2566
    %3546 = vmatpush.bf16.msra.mxu0 %v2558
    %3547 = vmatpush.bf16.msra.mxu0 %v2550
    %3548 = vmatpush.bf16.msra.mxu0 %v2542
    %3549 = vmatpush.bf16.msra.mxu0 %v2534
    %3550 = vmatpush.bf16.msra.mxu0 %v2526
    %3551 = vmatpush.bf16.msra.mxu0 %v2518
    %3552 = vmatmul.bf16.gmra.mxu0 %v190
    %v3553 = vpop.f32.mrf.mxu0
    %v3554 = vadd.f32 %v3541, %v3553
    %v3555 = vpop.f32.mrf.mxu0
    %3556 = vdwg.mxu0
    %3557 = vmatpush.bf16.msra.mxu0 %v2638
    %3558 = vmatpush.bf16.msra.mxu0 %v2630
    %3559 = vmatpush.bf16.msra.mxu0 %v2622
    %3560 = vmatpush.bf16.msra.mxu0 %v2614
    %3561 = vmatpush.bf16.msra.mxu0 %v2606
    %3562 = vmatpush.bf16.msra.mxu0 %v2598
    %3563 = vmatpush.bf16.msra.mxu0 %v2590
    %3564 = vmatpush.bf16.msra.mxu0 %v2582
    %3565 = vmatmul.bf16.gmra.mxu0 %v191
    %v3566 = vpop.f32.mrf.mxu0
    %v3567 = vadd.f32 %v3554, %v3566
    %v3568 = vpop.f32.mrf.mxu0
    %3569 = vdwg.mxu0
    %3570 = vmatpush.bf16.msra.mxu0 %v2702
    %3571 = vmatpush.bf16.msra.mxu0 %v2694
    %3572 = vmatpush.bf16.msra.mxu0 %v2686
    %3573 = vmatpush.bf16.msra.mxu0 %v2678
    %3574 = vmatpush.bf16.msra.mxu0 %v2670
    %3575 = vmatpush.bf16.msra.mxu0 %v2662
    %3576 = vmatpush.bf16.msra.mxu0 %v2654
    %3577 = vmatpush.bf16.msra.mxu0 %v2646
    %3578 = vmatmul.bf16.gmra.mxu0 %v192
    %v3579 = vpop.f32.mrf.mxu0
    %v3580 = vadd.f32 %v3567, %v3579
    %v3581 = vpop.f32.mrf.mxu0
    %3582 = vdwg.mxu0
    %3583 = vmatpush.bf16.msra.mxu0 %v2766
    %3584 = vmatpush.bf16.msra.mxu0 %v2758
    %3585 = vmatpush.bf16.msra.mxu0 %v2750
    %3586 = vmatpush.bf16.msra.mxu0 %v2742
    %3587 = vmatpush.bf16.msra.mxu0 %v2734
    %3588 = vmatpush.bf16.msra.mxu0 %v2726
    %3589 = vmatpush.bf16.msra.mxu0 %v2718
    %3590 = vmatpush.bf16.msra.mxu0 %v2710
    %3591 = vmatmul.bf16.gmra.mxu0 %v193
    %v3592 = vpop.f32.mrf.mxu0
    %v3593 = vadd.f32 %v3580, %v3592
    %v3594 = vpop.f32.mrf.mxu0
    %3595 = vdwg.mxu0
    %3596 = vmatpush.bf16.msra.mxu0 %v2319
    %3597 = vmatpush.bf16.msra.mxu0 %v2311
    %3598 = vmatpush.bf16.msra.mxu0 %v2303
    %3599 = vmatpush.bf16.msra.mxu0 %v2295
    %3600 = vmatpush.bf16.msra.mxu0 %v2287
    %3601 = vmatpush.bf16.msra.mxu0 %v2279
    %3602 = vmatpush.bf16.msra.mxu0 %v2271
    %3603 = vmatpush.bf16.msra.mxu0 %v2263
    %3604 = vmatmul.bf16.gmra.mxu0 %v186
    %v3605 = vpop.f32.mrf.mxu0
    %v3606 = vadd.f32 %v711, %v3605
    %v3607 = vpop.f32.mrf.mxu0
    %3608 = vdwg.mxu0
    %3609 = vmatpush.bf16.msra.mxu0 %v2383
    %3610 = vmatpush.bf16.msra.mxu0 %v2375
    %3611 = vmatpush.bf16.msra.mxu0 %v2367
    %3612 = vmatpush.bf16.msra.mxu0 %v2359
    %3613 = vmatpush.bf16.msra.mxu0 %v2351
    %3614 = vmatpush.bf16.msra.mxu0 %v2343
    %3615 = vmatpush.bf16.msra.mxu0 %v2335
    %3616 = vmatpush.bf16.msra.mxu0 %v2327
    %3617 = vmatmul.bf16.gmra.mxu0 %v187
    %v3618 = vpop.f32.mrf.mxu0
    %v3619 = vadd.f32 %v3606, %v3618
    %v3620 = vpop.f32.mrf.mxu0
    %3621 = vdwg.mxu0
    %3622 = vmatpush.bf16.msra.mxu0 %v2447
    %3623 = vmatpush.bf16.msra.mxu0 %v2439
    %3624 = vmatpush.bf16.msra.mxu0 %v2431
    %3625 = vmatpush.bf16.msra.mxu0 %v2423
    %3626 = vmatpush.bf16.msra.mxu0 %v2415
    %3627 = vmatpush.bf16.msra.mxu0 %v2407
    %3628 = vmatpush.bf16.msra.mxu0 %v2399
    %3629 = vmatpush.bf16.msra.mxu0 %v2391
    %3630 = vmatmul.bf16.gmra.mxu0 %v188
    %v3631 = vpop.f32.mrf.mxu0
    %v3632 = vadd.f32 %v3619, %v3631
    %v3633 = vpop.f32.mrf.mxu0
    %3634 = vdwg.mxu0
    %3635 = vmatpush.bf16.msra.mxu0 %v2511
    %3636 = vmatpush.bf16.msra.mxu0 %v2503
    %3637 = vmatpush.bf16.msra.mxu0 %v2495
    %3638 = vmatpush.bf16.msra.mxu0 %v2487
    %3639 = vmatpush.bf16.msra.mxu0 %v2479
    %3640 = vmatpush.bf16.msra.mxu0 %v2471
    %3641 = vmatpush.bf16.msra.mxu0 %v2463
    %3642 = vmatpush.bf16.msra.mxu0 %v2455
    %3643 = vmatmul.bf16.gmra.mxu0 %v189
    %v3644 = vpop.f32.mrf.mxu0
    %v3645 = vadd.f32 %v3632, %v3644
    %v3646 = vpop.f32.mrf.mxu0
    %3647 = vdwg.mxu0
    %3648 = vmatpush.bf16.msra.mxu0 %v2575
    %3649 = vmatpush.bf16.msra.mxu0 %v2567
    %3650 = vmatpush.bf16.msra.mxu0 %v2559
    %3651 = vmatpush.bf16.msra.mxu0 %v2551
    %3652 = vmatpush.bf16.msra.mxu0 %v2543
    %3653 = vmatpush.bf16.msra.mxu0 %v2535
    %3654 = vmatpush.bf16.msra.mxu0 %v2527
    %3655 = vmatpush.bf16.msra.mxu0 %v2519
    %3656 = vmatmul.bf16.gmra.mxu0 %v190
    %v3657 = vpop.f32.mrf.mxu0
    %v3658 = vadd.f32 %v3645, %v3657
    %v3659 = vpop.f32.mrf.mxu0
    %3660 = vdwg.mxu0
    %3661 = vmatpush.bf16.msra.mxu0 %v2639
    %3662 = vmatpush.bf16.msra.mxu0 %v2631
    %3663 = vmatpush.bf16.msra.mxu0 %v2623
    %3664 = vmatpush.bf16.msra.mxu0 %v2615
    %3665 = vmatpush.bf16.msra.mxu0 %v2607
    %3666 = vmatpush.bf16.msra.mxu0 %v2599
    %3667 = vmatpush.bf16.msra.mxu0 %v2591
    %3668 = vmatpush.bf16.msra.mxu0 %v2583
    %3669 = vmatmul.bf16.gmra.mxu0 %v191
    %v3670 = vpop.f32.mrf.mxu0
    %v3671 = vadd.f32 %v3658, %v3670
    %v3672 = vpop.f32.mrf.mxu0
    %3673 = vdwg.mxu0
    %3674 = vmatpush.bf16.msra.mxu0 %v2703
    %3675 = vmatpush.bf16.msra.mxu0 %v2695
    %3676 = vmatpush.bf16.msra.mxu0 %v2687
    %3677 = vmatpush.bf16.msra.mxu0 %v2679
    %3678 = vmatpush.bf16.msra.mxu0 %v2671
    %3679 = vmatpush.bf16.msra.mxu0 %v2663
    %3680 = vmatpush.bf16.msra.mxu0 %v2655
    %3681 = vmatpush.bf16.msra.mxu0 %v2647
    %3682 = vmatmul.bf16.gmra.mxu0 %v192
    %v3683 = vpop.f32.mrf.mxu0
    %v3684 = vadd.f32 %v3671, %v3683
    %v3685 = vpop.f32.mrf.mxu0
    %3686 = vdwg.mxu0
    %3687 = vmatpush.bf16.msra.mxu0 %v2767
    %3688 = vmatpush.bf16.msra.mxu0 %v2759
    %3689 = vmatpush.bf16.msra.mxu0 %v2751
    %3690 = vmatpush.bf16.msra.mxu0 %v2743
    %3691 = vmatpush.bf16.msra.mxu0 %v2735
    %3692 = vmatpush.bf16.msra.mxu0 %v2727
    %3693 = vmatpush.bf16.msra.mxu0 %v2719
    %3694 = vmatpush.bf16.msra.mxu0 %v2711
    %3695 = vmatmul.bf16.gmra.mxu0 %v193
    %v3696 = vpop.f32.mrf.mxu0
    %v3697 = vadd.f32 %v3684, %v3696
    %v3698 = vpop.f32.mrf.mxu0
    %3699 = vdwg.mxu0
    %3700 = vmatpush.bf16.msra.mxu0 %v2320
    %3701 = vmatpush.bf16.msra.mxu0 %v2312
    %3702 = vmatpush.bf16.msra.mxu0 %v2304
    %3703 = vmatpush.bf16.msra.mxu0 %v2296
    %3704 = vmatpush.bf16.msra.mxu0 %v2288
    %3705 = vmatpush.bf16.msra.mxu0 %v2280
    %3706 = vmatpush.bf16.msra.mxu0 %v2272
    %3707 = vmatpush.bf16.msra.mxu0 %v2264
    %3708 = vmatmul.bf16.gmra.mxu0 %v186
    %v3709 = vpop.f32.mrf.mxu0
    %v3710 = vadd.f32 %v712, %v3709
    %v3711 = vpop.f32.mrf.mxu0
    %3712 = vdwg.mxu0
    %3713 = vmatpush.bf16.msra.mxu0 %v2384
    %3714 = vmatpush.bf16.msra.mxu0 %v2376
    %3715 = vmatpush.bf16.msra.mxu0 %v2368
    %3716 = vmatpush.bf16.msra.mxu0 %v2360
    %3717 = vmatpush.bf16.msra.mxu0 %v2352
    %3718 = vmatpush.bf16.msra.mxu0 %v2344
    %3719 = vmatpush.bf16.msra.mxu0 %v2336
    %3720 = vmatpush.bf16.msra.mxu0 %v2328
    %3721 = vmatmul.bf16.gmra.mxu0 %v187
    %v3722 = vpop.f32.mrf.mxu0
    %v3723 = vadd.f32 %v3710, %v3722
    %v3724 = vpop.f32.mrf.mxu0
    %3725 = vdwg.mxu0
    %3726 = vmatpush.bf16.msra.mxu0 %v2448
    %3727 = vmatpush.bf16.msra.mxu0 %v2440
    %3728 = vmatpush.bf16.msra.mxu0 %v2432
    %3729 = vmatpush.bf16.msra.mxu0 %v2424
    %3730 = vmatpush.bf16.msra.mxu0 %v2416
    %3731 = vmatpush.bf16.msra.mxu0 %v2408
    %3732 = vmatpush.bf16.msra.mxu0 %v2400
    %3733 = vmatpush.bf16.msra.mxu0 %v2392
    %3734 = vmatmul.bf16.gmra.mxu0 %v188
    %v3735 = vpop.f32.mrf.mxu0
    %v3736 = vadd.f32 %v3723, %v3735
    %v3737 = vpop.f32.mrf.mxu0
    %3738 = vdwg.mxu0
    %3739 = vmatpush.bf16.msra.mxu0 %v2512
    %3740 = vmatpush.bf16.msra.mxu0 %v2504
    %3741 = vmatpush.bf16.msra.mxu0 %v2496
    %3742 = vmatpush.bf16.msra.mxu0 %v2488
    %3743 = vmatpush.bf16.msra.mxu0 %v2480
    %3744 = vmatpush.bf16.msra.mxu0 %v2472
    %3745 = vmatpush.bf16.msra.mxu0 %v2464
    %3746 = vmatpush.bf16.msra.mxu0 %v2456
    %3747 = vmatmul.bf16.gmra.mxu0 %v189
    %v3748 = vpop.f32.mrf.mxu0
    %v3749 = vadd.f32 %v3736, %v3748
    %v3750 = vpop.f32.mrf.mxu0
    %3751 = vdwg.mxu0
    %3752 = vmatpush.bf16.msra.mxu0 %v2576
    %3753 = vmatpush.bf16.msra.mxu0 %v2568
    %3754 = vmatpush.bf16.msra.mxu0 %v2560
    %3755 = vmatpush.bf16.msra.mxu0 %v2552
    %3756 = vmatpush.bf16.msra.mxu0 %v2544
    %3757 = vmatpush.bf16.msra.mxu0 %v2536
    %3758 = vmatpush.bf16.msra.mxu0 %v2528
    %3759 = vmatpush.bf16.msra.mxu0 %v2520
    %3760 = vmatmul.bf16.gmra.mxu0 %v190
    %v3761 = vpop.f32.mrf.mxu0
    %v3762 = vadd.f32 %v3749, %v3761
    %v3763 = vpop.f32.mrf.mxu0
    %3764 = vdwg.mxu0
    %3765 = vmatpush.bf16.msra.mxu0 %v2640
    %3766 = vmatpush.bf16.msra.mxu0 %v2632
    %3767 = vmatpush.bf16.msra.mxu0 %v2624
    %3768 = vmatpush.bf16.msra.mxu0 %v2616
    %3769 = vmatpush.bf16.msra.mxu0 %v2608
    %3770 = vmatpush.bf16.msra.mxu0 %v2600
    %3771 = vmatpush.bf16.msra.mxu0 %v2592
    %3772 = vmatpush.bf16.msra.mxu0 %v2584
    %3773 = vmatmul.bf16.gmra.mxu0 %v191
    %v3774 = vpop.f32.mrf.mxu0
    %v3775 = vadd.f32 %v3762, %v3774
    %v3776 = vpop.f32.mrf.mxu0
    %3777 = vdwg.mxu0
    %3778 = vmatpush.bf16.msra.mxu0 %v2704
    %3779 = vmatpush.bf16.msra.mxu0 %v2696
    %3780 = vmatpush.bf16.msra.mxu0 %v2688
    %3781 = vmatpush.bf16.msra.mxu0 %v2680
    %3782 = vmatpush.bf16.msra.mxu0 %v2672
    %3783 = vmatpush.bf16.msra.mxu0 %v2664
    %3784 = vmatpush.bf16.msra.mxu0 %v2656
    %3785 = vmatpush.bf16.msra.mxu0 %v2648
    %3786 = vmatmul.bf16.gmra.mxu0 %v192
    %v3787 = vpop.f32.mrf.mxu0
    %v3788 = vadd.f32 %v3775, %v3787
    %v3789 = vpop.f32.mrf.mxu0
    %3790 = vdwg.mxu0
    %3791 = vmatpush.bf16.msra.mxu0 %v2768
    %3792 = vmatpush.bf16.msra.mxu0 %v2760
    %3793 = vmatpush.bf16.msra.mxu0 %v2752
    %3794 = vmatpush.bf16.msra.mxu0 %v2744
    %3795 = vmatpush.bf16.msra.mxu0 %v2736
    %3796 = vmatpush.bf16.msra.mxu0 %v2728
    %3797 = vmatpush.bf16.msra.mxu0 %v2720
    %3798 = vmatpush.bf16.msra.mxu0 %v2712
    %3799 = vmatmul.bf16.gmra.mxu0 %v193
    %v3800 = vpop.f32.mrf.mxu0
    %v3801 = vadd.f32 %v3788, %v3800
    %v3802 = vpop.f32.mrf.mxu0
    %3803 = vdwg.mxu0
    %3804 = vmatpush.bf16.msra.mxu0 %v2321
    %3805 = vmatpush.bf16.msra.mxu0 %v2313
    %3806 = vmatpush.bf16.msra.mxu0 %v2305
    %3807 = vmatpush.bf16.msra.mxu0 %v2297
    %3808 = vmatpush.bf16.msra.mxu0 %v2289
    %3809 = vmatpush.bf16.msra.mxu0 %v2281
    %3810 = vmatpush.bf16.msra.mxu0 %v2273
    %3811 = vmatpush.bf16.msra.mxu0 %v2265
    %3812 = vmatmul.bf16.gmra.mxu0 %v186
    %v3813 = vpop.f32.mrf.mxu0
    %v3814 = vadd.f32 %v713, %v3813
    %v3815 = vpop.f32.mrf.mxu0
    %3816 = vdwg.mxu0
    %3817 = vmatpush.bf16.msra.mxu0 %v2385
    %3818 = vmatpush.bf16.msra.mxu0 %v2377
    %3819 = vmatpush.bf16.msra.mxu0 %v2369
    %3820 = vmatpush.bf16.msra.mxu0 %v2361
    %3821 = vmatpush.bf16.msra.mxu0 %v2353
    %3822 = vmatpush.bf16.msra.mxu0 %v2345
    %3823 = vmatpush.bf16.msra.mxu0 %v2337
    %3824 = vmatpush.bf16.msra.mxu0 %v2329
    %3825 = vmatmul.bf16.gmra.mxu0 %v187
    %v3826 = vpop.f32.mrf.mxu0
    %v3827 = vadd.f32 %v3814, %v3826
    %v3828 = vpop.f32.mrf.mxu0
    %3829 = vdwg.mxu0
    %3830 = vmatpush.bf16.msra.mxu0 %v2449
    %3831 = vmatpush.bf16.msra.mxu0 %v2441
    %3832 = vmatpush.bf16.msra.mxu0 %v2433
    %3833 = vmatpush.bf16.msra.mxu0 %v2425
    %3834 = vmatpush.bf16.msra.mxu0 %v2417
    %3835 = vmatpush.bf16.msra.mxu0 %v2409
    %3836 = vmatpush.bf16.msra.mxu0 %v2401
    %3837 = vmatpush.bf16.msra.mxu0 %v2393
    %3838 = vmatmul.bf16.gmra.mxu0 %v188
    %v3839 = vpop.f32.mrf.mxu0
    %v3840 = vadd.f32 %v3827, %v3839
    %v3841 = vpop.f32.mrf.mxu0
    %3842 = vdwg.mxu0
    %3843 = vmatpush.bf16.msra.mxu0 %v2513
    %3844 = vmatpush.bf16.msra.mxu0 %v2505
    %3845 = vmatpush.bf16.msra.mxu0 %v2497
    %3846 = vmatpush.bf16.msra.mxu0 %v2489
    %3847 = vmatpush.bf16.msra.mxu0 %v2481
    %3848 = vmatpush.bf16.msra.mxu0 %v2473
    %3849 = vmatpush.bf16.msra.mxu0 %v2465
    %3850 = vmatpush.bf16.msra.mxu0 %v2457
    %3851 = vmatmul.bf16.gmra.mxu0 %v189
    %v3852 = vpop.f32.mrf.mxu0
    %v3853 = vadd.f32 %v3840, %v3852
    %v3854 = vpop.f32.mrf.mxu0
    %3855 = vdwg.mxu0
    %3856 = vmatpush.bf16.msra.mxu0 %v2577
    %3857 = vmatpush.bf16.msra.mxu0 %v2569
    %3858 = vmatpush.bf16.msra.mxu0 %v2561
    %3859 = vmatpush.bf16.msra.mxu0 %v2553
    %3860 = vmatpush.bf16.msra.mxu0 %v2545
    %3861 = vmatpush.bf16.msra.mxu0 %v2537
    %3862 = vmatpush.bf16.msra.mxu0 %v2529
    %3863 = vmatpush.bf16.msra.mxu0 %v2521
    %3864 = vmatmul.bf16.gmra.mxu0 %v190
    %v3865 = vpop.f32.mrf.mxu0
    %v3866 = vadd.f32 %v3853, %v3865
    %v3867 = vpop.f32.mrf.mxu0
    %3868 = vdwg.mxu0
    %3869 = vmatpush.bf16.msra.mxu0 %v2641
    %3870 = vmatpush.bf16.msra.mxu0 %v2633
    %3871 = vmatpush.bf16.msra.mxu0 %v2625
    %3872 = vmatpush.bf16.msra.mxu0 %v2617
    %3873 = vmatpush.bf16.msra.mxu0 %v2609
    %3874 = vmatpush.bf16.msra.mxu0 %v2601
    %3875 = vmatpush.bf16.msra.mxu0 %v2593
    %3876 = vmatpush.bf16.msra.mxu0 %v2585
    %3877 = vmatmul.bf16.gmra.mxu0 %v191
    %v3878 = vpop.f32.mrf.mxu0
    %v3879 = vadd.f32 %v3866, %v3878
    %v3880 = vpop.f32.mrf.mxu0
    %3881 = vdwg.mxu0
    %3882 = vmatpush.bf16.msra.mxu0 %v2705
    %3883 = vmatpush.bf16.msra.mxu0 %v2697
    %3884 = vmatpush.bf16.msra.mxu0 %v2689
    %3885 = vmatpush.bf16.msra.mxu0 %v2681
    %3886 = vmatpush.bf16.msra.mxu0 %v2673
    %3887 = vmatpush.bf16.msra.mxu0 %v2665
    %3888 = vmatpush.bf16.msra.mxu0 %v2657
    %3889 = vmatpush.bf16.msra.mxu0 %v2649
    %3890 = vmatmul.bf16.gmra.mxu0 %v192
    %v3891 = vpop.f32.mrf.mxu0
    %v3892 = vadd.f32 %v3879, %v3891
    %v3893 = vpop.f32.mrf.mxu0
    %3894 = vdwg.mxu0
    %3895 = vmatpush.bf16.msra.mxu0 %v2769
    %3896 = vmatpush.bf16.msra.mxu0 %v2761
    %3897 = vmatpush.bf16.msra.mxu0 %v2753
    %3898 = vmatpush.bf16.msra.mxu0 %v2745
    %3899 = vmatpush.bf16.msra.mxu0 %v2737
    %3900 = vmatpush.bf16.msra.mxu0 %v2729
    %3901 = vmatpush.bf16.msra.mxu0 %v2721
    %3902 = vmatpush.bf16.msra.mxu0 %v2713
    %3903 = vmatmul.bf16.gmra.mxu0 %v193
    %v3904 = vpop.f32.mrf.mxu0
    %v3905 = vadd.f32 %v3892, %v3904
    %v3906 = vpop.f32.mrf.mxu0
    %3907 = vdwg.mxu0
    %3908 = vmatpush.bf16.msra.mxu0 %v2322
    %3909 = vmatpush.bf16.msra.mxu0 %v2314
    %3910 = vmatpush.bf16.msra.mxu0 %v2306
    %3911 = vmatpush.bf16.msra.mxu0 %v2298
    %3912 = vmatpush.bf16.msra.mxu0 %v2290
    %3913 = vmatpush.bf16.msra.mxu0 %v2282
    %3914 = vmatpush.bf16.msra.mxu0 %v2274
    %3915 = vmatpush.bf16.msra.mxu0 %v2266
    %3916 = vmatmul.bf16.gmra.mxu0 %v186
    %v3917 = vpop.f32.mrf.mxu0
    %v3918 = vadd.f32 %v714, %v3917
    %v3919 = vpop.f32.mrf.mxu0
    %3920 = vdwg.mxu0
    %3921 = vmatpush.bf16.msra.mxu0 %v2386
    %3922 = vmatpush.bf16.msra.mxu0 %v2378
    %3923 = vmatpush.bf16.msra.mxu0 %v2370
    %3924 = vmatpush.bf16.msra.mxu0 %v2362
    %3925 = vmatpush.bf16.msra.mxu0 %v2354
    %3926 = vmatpush.bf16.msra.mxu0 %v2346
    %3927 = vmatpush.bf16.msra.mxu0 %v2338
    %3928 = vmatpush.bf16.msra.mxu0 %v2330
    %3929 = vmatmul.bf16.gmra.mxu0 %v187
    %v3930 = vpop.f32.mrf.mxu0
    %v3931 = vadd.f32 %v3918, %v3930
    %v3932 = vpop.f32.mrf.mxu0
    %3933 = vdwg.mxu0
    %3934 = vmatpush.bf16.msra.mxu0 %v2450
    %3935 = vmatpush.bf16.msra.mxu0 %v2442
    %3936 = vmatpush.bf16.msra.mxu0 %v2434
    %3937 = vmatpush.bf16.msra.mxu0 %v2426
    %3938 = vmatpush.bf16.msra.mxu0 %v2418
    %3939 = vmatpush.bf16.msra.mxu0 %v2410
    %3940 = vmatpush.bf16.msra.mxu0 %v2402
    %3941 = vmatpush.bf16.msra.mxu0 %v2394
    %3942 = vmatmul.bf16.gmra.mxu0 %v188
    %v3943 = vpop.f32.mrf.mxu0
    %v3944 = vadd.f32 %v3931, %v3943
    %v3945 = vpop.f32.mrf.mxu0
    %3946 = vdwg.mxu0
    %3947 = vmatpush.bf16.msra.mxu0 %v2514
    %3948 = vmatpush.bf16.msra.mxu0 %v2506
    %3949 = vmatpush.bf16.msra.mxu0 %v2498
    %3950 = vmatpush.bf16.msra.mxu0 %v2490
    %3951 = vmatpush.bf16.msra.mxu0 %v2482
    %3952 = vmatpush.bf16.msra.mxu0 %v2474
    %3953 = vmatpush.bf16.msra.mxu0 %v2466
    %3954 = vmatpush.bf16.msra.mxu0 %v2458
    %3955 = vmatmul.bf16.gmra.mxu0 %v189
    %v3956 = vpop.f32.mrf.mxu0
    %v3957 = vadd.f32 %v3944, %v3956
    %v3958 = vpop.f32.mrf.mxu0
    %3959 = vdwg.mxu0
    %3960 = vmatpush.bf16.msra.mxu0 %v2578
    %3961 = vmatpush.bf16.msra.mxu0 %v2570
    %3962 = vmatpush.bf16.msra.mxu0 %v2562
    %3963 = vmatpush.bf16.msra.mxu0 %v2554
    %3964 = vmatpush.bf16.msra.mxu0 %v2546
    %3965 = vmatpush.bf16.msra.mxu0 %v2538
    %3966 = vmatpush.bf16.msra.mxu0 %v2530
    %3967 = vmatpush.bf16.msra.mxu0 %v2522
    %3968 = vmatmul.bf16.gmra.mxu0 %v190
    %v3969 = vpop.f32.mrf.mxu0
    %v3970 = vadd.f32 %v3957, %v3969
    %v3971 = vpop.f32.mrf.mxu0
    %3972 = vdwg.mxu0
    %3973 = vmatpush.bf16.msra.mxu0 %v2642
    %3974 = vmatpush.bf16.msra.mxu0 %v2634
    %3975 = vmatpush.bf16.msra.mxu0 %v2626
    %3976 = vmatpush.bf16.msra.mxu0 %v2618
    %3977 = vmatpush.bf16.msra.mxu0 %v2610
    %3978 = vmatpush.bf16.msra.mxu0 %v2602
    %3979 = vmatpush.bf16.msra.mxu0 %v2594
    %3980 = vmatpush.bf16.msra.mxu0 %v2586
    %3981 = vmatmul.bf16.gmra.mxu0 %v191
    %v3982 = vpop.f32.mrf.mxu0
    %v3983 = vadd.f32 %v3970, %v3982
    %v3984 = vpop.f32.mrf.mxu0
    %3985 = vdwg.mxu0
    %3986 = vmatpush.bf16.msra.mxu0 %v2706
    %3987 = vmatpush.bf16.msra.mxu0 %v2698
    %3988 = vmatpush.bf16.msra.mxu0 %v2690
    %3989 = vmatpush.bf16.msra.mxu0 %v2682
    %3990 = vmatpush.bf16.msra.mxu0 %v2674
    %3991 = vmatpush.bf16.msra.mxu0 %v2666
    %3992 = vmatpush.bf16.msra.mxu0 %v2658
    %3993 = vmatpush.bf16.msra.mxu0 %v2650
    %3994 = vmatmul.bf16.gmra.mxu0 %v192
    %v3995 = vpop.f32.mrf.mxu0
    %v3996 = vadd.f32 %v3983, %v3995
    %v3997 = vpop.f32.mrf.mxu0
    %3998 = vdwg.mxu0
    %3999 = vmatpush.bf16.msra.mxu0 %v2770
    %4000 = vmatpush.bf16.msra.mxu0 %v2762
    %4001 = vmatpush.bf16.msra.mxu0 %v2754
    %4002 = vmatpush.bf16.msra.mxu0 %v2746
    %4003 = vmatpush.bf16.msra.mxu0 %v2738
    %4004 = vmatpush.bf16.msra.mxu0 %v2730
    %4005 = vmatpush.bf16.msra.mxu0 %v2722
    %4006 = vmatpush.bf16.msra.mxu0 %v2714
    %4007 = vmatmul.bf16.gmra.mxu0 %v193
    %v4008 = vpop.f32.mrf.mxu0
    %v4009 = vadd.f32 %v3996, %v4008
    %v4010 = vpop.f32.mrf.mxu0
    %4011 = vdwg.mxu0
    %4012 = vmatpush.bf16.msra.mxu0 %v2323
    %4013 = vmatpush.bf16.msra.mxu0 %v2315
    %4014 = vmatpush.bf16.msra.mxu0 %v2307
    %4015 = vmatpush.bf16.msra.mxu0 %v2299
    %4016 = vmatpush.bf16.msra.mxu0 %v2291
    %4017 = vmatpush.bf16.msra.mxu0 %v2283
    %4018 = vmatpush.bf16.msra.mxu0 %v2275
    %4019 = vmatpush.bf16.msra.mxu0 %v2267
    %4020 = vmatmul.bf16.gmra.mxu0 %v186
    %v4021 = vpop.f32.mrf.mxu0
    %v4022 = vadd.f32 %v715, %v4021
    %v4023 = vpop.f32.mrf.mxu0
    %4024 = vdwg.mxu0
    %4025 = vmatpush.bf16.msra.mxu0 %v2387
    %4026 = vmatpush.bf16.msra.mxu0 %v2379
    %4027 = vmatpush.bf16.msra.mxu0 %v2371
    %4028 = vmatpush.bf16.msra.mxu0 %v2363
    %4029 = vmatpush.bf16.msra.mxu0 %v2355
    %4030 = vmatpush.bf16.msra.mxu0 %v2347
    %4031 = vmatpush.bf16.msra.mxu0 %v2339
    %4032 = vmatpush.bf16.msra.mxu0 %v2331
    %4033 = vmatmul.bf16.gmra.mxu0 %v187
    %v4034 = vpop.f32.mrf.mxu0
    %v4035 = vadd.f32 %v4022, %v4034
    %v4036 = vpop.f32.mrf.mxu0
    %4037 = vdwg.mxu0
    %4038 = vmatpush.bf16.msra.mxu0 %v2451
    %4039 = vmatpush.bf16.msra.mxu0 %v2443
    %4040 = vmatpush.bf16.msra.mxu0 %v2435
    %4041 = vmatpush.bf16.msra.mxu0 %v2427
    %4042 = vmatpush.bf16.msra.mxu0 %v2419
    %4043 = vmatpush.bf16.msra.mxu0 %v2411
    %4044 = vmatpush.bf16.msra.mxu0 %v2403
    %4045 = vmatpush.bf16.msra.mxu0 %v2395
    %4046 = vmatmul.bf16.gmra.mxu0 %v188
    %v4047 = vpop.f32.mrf.mxu0
    %v4048 = vadd.f32 %v4035, %v4047
    %v4049 = vpop.f32.mrf.mxu0
    %4050 = vdwg.mxu0
    %4051 = vmatpush.bf16.msra.mxu0 %v2515
    %4052 = vmatpush.bf16.msra.mxu0 %v2507
    %4053 = vmatpush.bf16.msra.mxu0 %v2499
    %4054 = vmatpush.bf16.msra.mxu0 %v2491
    %4055 = vmatpush.bf16.msra.mxu0 %v2483
    %4056 = vmatpush.bf16.msra.mxu0 %v2475
    %4057 = vmatpush.bf16.msra.mxu0 %v2467
    %4058 = vmatpush.bf16.msra.mxu0 %v2459
    %4059 = vmatmul.bf16.gmra.mxu0 %v189
    %v4060 = vpop.f32.mrf.mxu0
    %v4061 = vadd.f32 %v4048, %v4060
    %v4062 = vpop.f32.mrf.mxu0
    %4063 = vdwg.mxu0
    %4064 = vmatpush.bf16.msra.mxu0 %v2579
    %4065 = vmatpush.bf16.msra.mxu0 %v2571
    %4066 = vmatpush.bf16.msra.mxu0 %v2563
    %4067 = vmatpush.bf16.msra.mxu0 %v2555
    %4068 = vmatpush.bf16.msra.mxu0 %v2547
    %4069 = vmatpush.bf16.msra.mxu0 %v2539
    %4070 = vmatpush.bf16.msra.mxu0 %v2531
    %4071 = vmatpush.bf16.msra.mxu0 %v2523
    %4072 = vmatmul.bf16.gmra.mxu0 %v190
    %v4073 = vpop.f32.mrf.mxu0
    %v4074 = vadd.f32 %v4061, %v4073
    %v4075 = vpop.f32.mrf.mxu0
    %4076 = vdwg.mxu0
    %4077 = vmatpush.bf16.msra.mxu0 %v2643
    %4078 = vmatpush.bf16.msra.mxu0 %v2635
    %4079 = vmatpush.bf16.msra.mxu0 %v2627
    %4080 = vmatpush.bf16.msra.mxu0 %v2619
    %4081 = vmatpush.bf16.msra.mxu0 %v2611
    %4082 = vmatpush.bf16.msra.mxu0 %v2603
    %4083 = vmatpush.bf16.msra.mxu0 %v2595
    %4084 = vmatpush.bf16.msra.mxu0 %v2587
    %4085 = vmatmul.bf16.gmra.mxu0 %v191
    %v4086 = vpop.f32.mrf.mxu0
    %v4087 = vadd.f32 %v4074, %v4086
    %v4088 = vpop.f32.mrf.mxu0
    %4089 = vdwg.mxu0
    %4090 = vmatpush.bf16.msra.mxu0 %v2707
    %4091 = vmatpush.bf16.msra.mxu0 %v2699
    %4092 = vmatpush.bf16.msra.mxu0 %v2691
    %4093 = vmatpush.bf16.msra.mxu0 %v2683
    %4094 = vmatpush.bf16.msra.mxu0 %v2675
    %4095 = vmatpush.bf16.msra.mxu0 %v2667
    %4096 = vmatpush.bf16.msra.mxu0 %v2659
    %4097 = vmatpush.bf16.msra.mxu0 %v2651
    %4098 = vmatmul.bf16.gmra.mxu0 %v192
    %v4099 = vpop.f32.mrf.mxu0
    %v4100 = vadd.f32 %v4087, %v4099
    %v4101 = vpop.f32.mrf.mxu0
    %4102 = vdwg.mxu0
    %4103 = vmatpush.bf16.msra.mxu0 %v2771
    %4104 = vmatpush.bf16.msra.mxu0 %v2763
    %4105 = vmatpush.bf16.msra.mxu0 %v2755
    %4106 = vmatpush.bf16.msra.mxu0 %v2747
    %4107 = vmatpush.bf16.msra.mxu0 %v2739
    %4108 = vmatpush.bf16.msra.mxu0 %v2731
    %4109 = vmatpush.bf16.msra.mxu0 %v2723
    %4110 = vmatpush.bf16.msra.mxu0 %v2715
    %4111 = vmatmul.bf16.gmra.mxu0 %v193
    %v4112 = vpop.f32.mrf.mxu0
    %v4113 = vadd.f32 %v4100, %v4112
    %v4114 = vpop.f32.mrf.mxu0
    %4115 = vdwg.mxu0
    %vm4116 = vcmp.gt.f32.partialorder %v3385, 0.0
    %vm4117 = vcmp.gt.f32.partialorder %v3489, 0.0
    %vm4118 = vcmp.gt.f32.partialorder %v3593, 0.0
    %vm4119 = vcmp.gt.f32.partialorder %v3697, 0.0
    %vm4120 = vcmp.gt.f32.partialorder %v3801, 0.0
    %vm4121 = vcmp.gt.f32.partialorder %v3905, 0.0
    %vm4122 = vcmp.gt.f32.partialorder %v4009, 0.0
    %vm4123 = vcmp.gt.f32.partialorder %v4113, 0.0
    %v4124 = vmul.f32 %v3385, 0.2
    %v4125 = vmul.f32 %v3489, 0.2
    %v4126 = vmul.f32 %v3593, 0.2
    %v4127 = vmul.f32 %v3697, 0.2
    %v4128 = vmul.f32 %v3801, 0.2
    %v4129 = vmul.f32 %v3905, 0.2
    %v4130 = vmul.f32 %v4009, 0.2
    %v4131 = vmul.f32 %v4113, 0.2
    %v4132 = vsel %vm4116, %v3385, %v4124
    %v4133 = vsel %vm4117, %v3489, %v4125
    %v4134 = vsel %vm4118, %v3593, %v4126
    %v4135 = vsel %vm4119, %v3697, %v4127
    %v4136 = vsel %vm4120, %v3801, %v4128
    %v4137 = vsel %vm4121, %v3905, %v4129
    %v4138 = vsel %vm4122, %v4009, %v4130
    %v4139 = vsel %vm4123, %v4113, %v4131
    %v4140 = vpack.c.bf16 %v4132, %v4132
    %v4141 = vpack.c.bf16 %v4133, %v4133
    %v4142 = vpack.c.bf16 %v4134, %v4134
    %v4143 = vpack.c.bf16 %v4135, %v4135
    %v4144 = vpack.c.bf16 %v4136, %v4136
    %v4145 = vpack.c.bf16 %v4137, %v4137
    %v4146 = vpack.c.bf16 %v4138, %v4138
    %v4147 = vpack.c.bf16 %v4139, %v4139
    %v4148 = vld [vmem:[#allocation8] sm:$0xff]
    %v4149 = vld [vmem:[#allocation8 + $0x8] sm:$0xff]
    %v4150 = vld [vmem:[#allocation8 + $0x10] sm:$0xff]
    %v4151 = vld [vmem:[#allocation8 + $0x18] sm:$0xff]
    %v4152 = vld [vmem:[#allocation8 + $0x20] sm:$0xff]
    %v4153 = vld [vmem:[#allocation8 + $0x28] sm:$0xff]
    %v4154 = vld [vmem:[#allocation8 + $0x30] sm:$0xff]
    %v4155 = vld [vmem:[#allocation8 + $0x38] sm:$0xff]
    %v4156 = vld [vmem:[#allocation8 + $0x40] sm:$0xff]
    %v4157 = vld [vmem:[#allocation8 + $0x48] sm:$0xff]
    %v4158 = vld [vmem:[#allocation8 + $0x50] sm:$0xff]
    %v4159 = vld [vmem:[#allocation8 + $0x58] sm:$0xff]
    %v4160 = vld [vmem:[#allocation8 + $0x60] sm:$0xff]
    %v4161 = vld [vmem:[#allocation8 + $0x68] sm:$0xff]
    %v4162 = vld [vmem:[#allocation8 + $0x70] sm:$0xff]
    %v4163 = vld [vmem:[#allocation8 + $0x78] sm:$0xff]
    %v4164 = vld [vmem:[#allocation8 + $0x80] sm:$0xff]
    %v4165 = vld [vmem:[#allocation8 + $0x88] sm:$0xff]
    %v4166 = vld [vmem:[#allocation8 + $0x90] sm:$0xff]
    %v4167 = vld [vmem:[#allocation8 + $0x98] sm:$0xff]
    %v4168 = vld [vmem:[#allocation8 + $0xa0] sm:$0xff]
    %v4169 = vld [vmem:[#allocation8 + $0xa8] sm:$0xff]
    %v4170 = vld [vmem:[#allocation8 + $0xb0] sm:$0xff]
    %v4171 = vld [vmem:[#allocation8 + $0xb8] sm:$0xff]
    %v4172 = vld [vmem:[#allocation8 + $0xc0] sm:$0xff]
    %v4173 = vld [vmem:[#allocation8 + $0xc8] sm:$0xff]
    %v4174 = vld [vmem:[#allocation8 + $0xd0] sm:$0xff]
    %v4175 = vld [vmem:[#allocation8 + $0xd8] sm:$0xff]
    %v4176 = vld [vmem:[#allocation8 + $0xe0] sm:$0xff]
    %v4177 = vld [vmem:[#allocation8 + $0xe8] sm:$0xff]
    %v4178 = vld [vmem:[#allocation8 + $0xf0] sm:$0xff]
    %v4179 = vld [vmem:[#allocation8 + $0xf8] sm:$0xff]
    %v4180 = vld [vmem:[#allocation8 + $0x100] sm:$0xff]
    %v4181 = vld [vmem:[#allocation8 + $0x108] sm:$0xff]
    %v4182 = vld [vmem:[#allocation8 + $0x110] sm:$0xff]
    %v4183 = vld [vmem:[#allocation8 + $0x118] sm:$0xff]
    %v4184 = vld [vmem:[#allocation8 + $0x120] sm:$0xff]
    %v4185 = vld [vmem:[#allocation8 + $0x128] sm:$0xff]
    %v4186 = vld [vmem:[#allocation8 + $0x130] sm:$0xff]
    %v4187 = vld [vmem:[#allocation8 + $0x138] sm:$0xff]
    %v4188 = vld [vmem:[#allocation8 + $0x140] sm:$0xff]
    %v4189 = vld [vmem:[#allocation8 + $0x148] sm:$0xff]
    %v4190 = vld [vmem:[#allocation8 + $0x150] sm:$0xff]
    %v4191 = vld [vmem:[#allocation8 + $0x158] sm:$0xff]
    %v4192 = vld [vmem:[#allocation8 + $0x160] sm:$0xff]
    %v4193 = vld [vmem:[#allocation8 + $0x168] sm:$0xff]
    %v4194 = vld [vmem:[#allocation8 + $0x170] sm:$0xff]
    %v4195 = vld [vmem:[#allocation8 + $0x178] sm:$0xff]
    %v4196 = vld [vmem:[#allocation8 + $0x180] sm:$0xff]
    %v4197 = vld [vmem:[#allocation8 + $0x188] sm:$0xff]
    %v4198 = vld [vmem:[#allocation8 + $0x190] sm:$0xff]
    %v4199 = vld [vmem:[#allocation8 + $0x198] sm:$0xff]
    %v4200 = vld [vmem:[#allocation8 + $0x1a0] sm:$0xff]
    %v4201 = vld [vmem:[#allocation8 + $0x1a8] sm:$0xff]
    %v4202 = vld [vmem:[#allocation8 + $0x1b0] sm:$0xff]
    %v4203 = vld [vmem:[#allocation8 + $0x1b8] sm:$0xff]
    %v4204 = vld [vmem:[#allocation8 + $0x1c0] sm:$0xff]
    %v4205 = vld [vmem:[#allocation8 + $0x1c8] sm:$0xff]
    %v4206 = vld [vmem:[#allocation8 + $0x1d0] sm:$0xff]
    %v4207 = vld [vmem:[#allocation8 + $0x1d8] sm:$0xff]
    %v4208 = vld [vmem:[#allocation8 + $0x1e0] sm:$0xff]
    %v4209 = vld [vmem:[#allocation8 + $0x1e8] sm:$0xff]
    %v4210 = vld [vmem:[#allocation8 + $0x1f0] sm:$0xff]
    %v4211 = vld [vmem:[#allocation8 + $0x1f8] sm:$0xff]
    %v4212 = vld [vmem:[#allocation8 + $0x200] sm:$0xff]
    %v4213 = vld [vmem:[#allocation8 + $0x208] sm:$0xff]
    %v4214 = vld [vmem:[#allocation8 + $0x210] sm:$0xff]
    %v4215 = vld [vmem:[#allocation8 + $0x218] sm:$0xff]
    %v4216 = vld [vmem:[#allocation8 + $0x220] sm:$0xff]
    %v4217 = vld [vmem:[#allocation8 + $0x228] sm:$0xff]
    %v4218 = vld [vmem:[#allocation8 + $0x230] sm:$0xff]
    %v4219 = vld [vmem:[#allocation8 + $0x238] sm:$0xff]
    %v4220 = vld [vmem:[#allocation8 + $0x240] sm:$0xff]
    %v4221 = vld [vmem:[#allocation8 + $0x248] sm:$0xff]
    %v4222 = vld [vmem:[#allocation8 + $0x250] sm:$0xff]
    %v4223 = vld [vmem:[#allocation8 + $0x258] sm:$0xff]
    %v4224 = vld [vmem:[#allocation8 + $0x260] sm:$0xff]
    %v4225 = vld [vmem:[#allocation8 + $0x268] sm:$0xff]
    %v4226 = vld [vmem:[#allocation8 + $0x270] sm:$0xff]
    %v4227 = vld [vmem:[#allocation8 + $0x278] sm:$0xff]
    %v4228 = vld [vmem:[#allocation8 + $0x280] sm:$0xff]
    %v4229 = vld [vmem:[#allocation8 + $0x288] sm:$0xff]
    %v4230 = vld [vmem:[#allocation8 + $0x290] sm:$0xff]
    %v4231 = vld [vmem:[#allocation8 + $0x298] sm:$0xff]
    %v4232 = vld [vmem:[#allocation8 + $0x2a0] sm:$0xff]
    %v4233 = vld [vmem:[#allocation8 + $0x2a8] sm:$0xff]
    %v4234 = vld [vmem:[#allocation8 + $0x2b0] sm:$0xff]
    %v4235 = vld [vmem:[#allocation8 + $0x2b8] sm:$0xff]
    %v4236 = vld [vmem:[#allocation8 + $0x2c0] sm:$0xff]
    %v4237 = vld [vmem:[#allocation8 + $0x2c8] sm:$0xff]
    %v4238 = vld [vmem:[#allocation8 + $0x2d0] sm:$0xff]
    %v4239 = vld [vmem:[#allocation8 + $0x2d8] sm:$0xff]
    %v4240 = vld [vmem:[#allocation8 + $0x2e0] sm:$0xff]
    %v4241 = vld [vmem:[#allocation8 + $0x2e8] sm:$0xff]
    %v4242 = vld [vmem:[#allocation8 + $0x2f0] sm:$0xff]
    %v4243 = vld [vmem:[#allocation8 + $0x2f8] sm:$0xff]
    %v4244 = vld [vmem:[#allocation8 + $0x300] sm:$0xff]
    %v4245 = vld [vmem:[#allocation8 + $0x308] sm:$0xff]
    %v4246 = vld [vmem:[#allocation8 + $0x310] sm:$0xff]
    %v4247 = vld [vmem:[#allocation8 + $0x318] sm:$0xff]
    %v4248 = vld [vmem:[#allocation8 + $0x320] sm:$0xff]
    %v4249 = vld [vmem:[#allocation8 + $0x328] sm:$0xff]
    %v4250 = vld [vmem:[#allocation8 + $0x330] sm:$0xff]
    %v4251 = vld [vmem:[#allocation8 + $0x338] sm:$0xff]
    %v4252 = vld [vmem:[#allocation8 + $0x340] sm:$0xff]
    %v4253 = vld [vmem:[#allocation8 + $0x348] sm:$0xff]
    %v4254 = vld [vmem:[#allocation8 + $0x350] sm:$0xff]
    %v4255 = vld [vmem:[#allocation8 + $0x358] sm:$0xff]
    %v4256 = vld [vmem:[#allocation8 + $0x360] sm:$0xff]
    %v4257 = vld [vmem:[#allocation8 + $0x368] sm:$0xff]
    %v4258 = vld [vmem:[#allocation8 + $0x370] sm:$0xff]
    %v4259 = vld [vmem:[#allocation8 + $0x378] sm:$0xff]
    %v4260 = vld [vmem:[#allocation8 + $0x380] sm:$0xff]
    %v4261 = vld [vmem:[#allocation8 + $0x388] sm:$0xff]
    %v4262 = vld [vmem:[#allocation8 + $0x390] sm:$0xff]
    %v4263 = vld [vmem:[#allocation8 + $0x398] sm:$0xff]
    %v4264 = vld [vmem:[#allocation8 + $0x3a0] sm:$0xff]
    %v4265 = vld [vmem:[#allocation8 + $0x3a8] sm:$0xff]
    %v4266 = vld [vmem:[#allocation8 + $0x3b0] sm:$0xff]
    %v4267 = vld [vmem:[#allocation8 + $0x3b8] sm:$0xff]
    %v4268 = vld [vmem:[#allocation8 + $0x3c0] sm:$0xff]
    %v4269 = vld [vmem:[#allocation8 + $0x3c8] sm:$0xff]
    %v4270 = vld [vmem:[#allocation8 + $0x3d0] sm:$0xff]
    %v4271 = vld [vmem:[#allocation8 + $0x3d8] sm:$0xff]
    %v4272 = vld [vmem:[#allocation8 + $0x3e0] sm:$0xff]
    %v4273 = vld [vmem:[#allocation8 + $0x3e8] sm:$0xff]
    %v4274 = vld [vmem:[#allocation8 + $0x3f0] sm:$0xff]
    %v4275 = vld [vmem:[#allocation8 + $0x3f8] sm:$0xff]
    %v4276 = vld [vmem:[#allocation8 + $0x400] sm:$0xff]
    %v4277 = vld [vmem:[#allocation8 + $0x408] sm:$0xff]
    %v4278 = vld [vmem:[#allocation8 + $0x410] sm:$0xff]
    %v4279 = vld [vmem:[#allocation8 + $0x418] sm:$0xff]
    %v4280 = vld [vmem:[#allocation8 + $0x420] sm:$0xff]
    %v4281 = vld [vmem:[#allocation8 + $0x428] sm:$0xff]
    %v4282 = vld [vmem:[#allocation8 + $0x430] sm:$0xff]
    %v4283 = vld [vmem:[#allocation8 + $0x438] sm:$0xff]
    %v4284 = vld [vmem:[#allocation8 + $0x440] sm:$0xff]
    %v4285 = vld [vmem:[#allocation8 + $0x448] sm:$0xff]
    %v4286 = vld [vmem:[#allocation8 + $0x450] sm:$0xff]
    %v4287 = vld [vmem:[#allocation8 + $0x458] sm:$0xff]
    %v4288 = vld [vmem:[#allocation8 + $0x460] sm:$0xff]
    %v4289 = vld [vmem:[#allocation8 + $0x468] sm:$0xff]
    %v4290 = vld [vmem:[#allocation8 + $0x470] sm:$0xff]
    %v4291 = vld [vmem:[#allocation8 + $0x478] sm:$0xff]
    %v4292 = vld [vmem:[#allocation8 + $0x480] sm:$0xff]
    %v4293 = vld [vmem:[#allocation8 + $0x488] sm:$0xff]
    %v4294 = vld [vmem:[#allocation8 + $0x490] sm:$0xff]
    %v4295 = vld [vmem:[#allocation8 + $0x498] sm:$0xff]
    %v4296 = vld [vmem:[#allocation8 + $0x4a0] sm:$0xff]
    %v4297 = vld [vmem:[#allocation8 + $0x4a8] sm:$0xff]
    %v4298 = vld [vmem:[#allocation8 + $0x4b0] sm:$0xff]
    %v4299 = vld [vmem:[#allocation8 + $0x4b8] sm:$0xff]
    %v4300 = vld [vmem:[#allocation8 + $0x4c0] sm:$0xff]
    %v4301 = vld [vmem:[#allocation8 + $0x4c8] sm:$0xff]
    %v4302 = vld [vmem:[#allocation8 + $0x4d0] sm:$0xff]
    %v4303 = vld [vmem:[#allocation8 + $0x4d8] sm:$0xff]
    %v4304 = vld [vmem:[#allocation8 + $0x4e0] sm:$0xff]
    %v4305 = vld [vmem:[#allocation8 + $0x4e8] sm:$0xff]
    %v4306 = vld [vmem:[#allocation8 + $0x4f0] sm:$0xff]
    %v4307 = vld [vmem:[#allocation8 + $0x4f8] sm:$0xff]
    %v4308 = vld [vmem:[#allocation8 + $0x500] sm:$0xff]
    %v4309 = vld [vmem:[#allocation8 + $0x508] sm:$0xff]
    %v4310 = vld [vmem:[#allocation8 + $0x510] sm:$0xff]
    %v4311 = vld [vmem:[#allocation8 + $0x518] sm:$0xff]
    %v4312 = vld [vmem:[#allocation8 + $0x520] sm:$0xff]
    %v4313 = vld [vmem:[#allocation8 + $0x528] sm:$0xff]
    %v4314 = vld [vmem:[#allocation8 + $0x530] sm:$0xff]
    %v4315 = vld [vmem:[#allocation8 + $0x538] sm:$0xff]
    %v4316 = vld [vmem:[#allocation8 + $0x540] sm:$0xff]
    %v4317 = vld [vmem:[#allocation8 + $0x548] sm:$0xff]
    %v4318 = vld [vmem:[#allocation8 + $0x550] sm:$0xff]
    %v4319 = vld [vmem:[#allocation8 + $0x558] sm:$0xff]
    %v4320 = vld [vmem:[#allocation8 + $0x560] sm:$0xff]
    %v4321 = vld [vmem:[#allocation8 + $0x568] sm:$0xff]
    %v4322 = vld [vmem:[#allocation8 + $0x570] sm:$0xff]
    %v4323 = vld [vmem:[#allocation8 + $0x578] sm:$0xff]
    %v4324 = vld [vmem:[#allocation8 + $0x580] sm:$0xff]
    %v4325 = vld [vmem:[#allocation8 + $0x588] sm:$0xff]
    %v4326 = vld [vmem:[#allocation8 + $0x590] sm:$0xff]
    %v4327 = vld [vmem:[#allocation8 + $0x598] sm:$0xff]
    %v4328 = vld [vmem:[#allocation8 + $0x5a0] sm:$0xff]
    %v4329 = vld [vmem:[#allocation8 + $0x5a8] sm:$0xff]
    %v4330 = vld [vmem:[#allocation8 + $0x5b0] sm:$0xff]
    %v4331 = vld [vmem:[#allocation8 + $0x5b8] sm:$0xff]
    %v4332 = vld [vmem:[#allocation8 + $0x5c0] sm:$0xff]
    %v4333 = vld [vmem:[#allocation8 + $0x5c8] sm:$0xff]
    %v4334 = vld [vmem:[#allocation8 + $0x5d0] sm:$0xff]
    %v4335 = vld [vmem:[#allocation8 + $0x5d8] sm:$0xff]
    %v4336 = vld [vmem:[#allocation8 + $0x5e0] sm:$0xff]
    %v4337 = vld [vmem:[#allocation8 + $0x5e8] sm:$0xff]
    %v4338 = vld [vmem:[#allocation8 + $0x5f0] sm:$0xff]
    %v4339 = vld [vmem:[#allocation8 + $0x5f8] sm:$0xff]
    %v4340 = vld [vmem:[#allocation8 + $0x600] sm:$0xff]
    %v4341 = vld [vmem:[#allocation8 + $0x608] sm:$0xff]
    %v4342 = vld [vmem:[#allocation8 + $0x610] sm:$0xff]
    %v4343 = vld [vmem:[#allocation8 + $0x618] sm:$0xff]
    %v4344 = vld [vmem:[#allocation8 + $0x620] sm:$0xff]
    %v4345 = vld [vmem:[#allocation8 + $0x628] sm:$0xff]
    %v4346 = vld [vmem:[#allocation8 + $0x630] sm:$0xff]
    %v4347 = vld [vmem:[#allocation8 + $0x638] sm:$0xff]
    %v4348 = vld [vmem:[#allocation8 + $0x640] sm:$0xff]
    %v4349 = vld [vmem:[#allocation8 + $0x648] sm:$0xff]
    %v4350 = vld [vmem:[#allocation8 + $0x650] sm:$0xff]
    %v4351 = vld [vmem:[#allocation8 + $0x658] sm:$0xff]
    %v4352 = vld [vmem:[#allocation8 + $0x660] sm:$0xff]
    %v4353 = vld [vmem:[#allocation8 + $0x668] sm:$0xff]
    %v4354 = vld [vmem:[#allocation8 + $0x670] sm:$0xff]
    %v4355 = vld [vmem:[#allocation8 + $0x678] sm:$0xff]
    %v4356 = vld [vmem:[#allocation8 + $0x680] sm:$0xff]
    %v4357 = vld [vmem:[#allocation8 + $0x688] sm:$0xff]
    %v4358 = vld [vmem:[#allocation8 + $0x690] sm:$0xff]
    %v4359 = vld [vmem:[#allocation8 + $0x698] sm:$0xff]
    %v4360 = vld [vmem:[#allocation8 + $0x6a0] sm:$0xff]
    %v4361 = vld [vmem:[#allocation8 + $0x6a8] sm:$0xff]
    %v4362 = vld [vmem:[#allocation8 + $0x6b0] sm:$0xff]
    %v4363 = vld [vmem:[#allocation8 + $0x6b8] sm:$0xff]
    %v4364 = vld [vmem:[#allocation8 + $0x6c0] sm:$0xff]
    %v4365 = vld [vmem:[#allocation8 + $0x6c8] sm:$0xff]
    %v4366 = vld [vmem:[#allocation8 + $0x6d0] sm:$0xff]
    %v4367 = vld [vmem:[#allocation8 + $0x6d8] sm:$0xff]
    %v4368 = vld [vmem:[#allocation8 + $0x6e0] sm:$0xff]
    %v4369 = vld [vmem:[#allocation8 + $0x6e8] sm:$0xff]
    %v4370 = vld [vmem:[#allocation8 + $0x6f0] sm:$0xff]
    %v4371 = vld [vmem:[#allocation8 + $0x6f8] sm:$0xff]
    %v4372 = vld [vmem:[#allocation8 + $0x700] sm:$0xff]
    %v4373 = vld [vmem:[#allocation8 + $0x708] sm:$0xff]
    %v4374 = vld [vmem:[#allocation8 + $0x710] sm:$0xff]
    %v4375 = vld [vmem:[#allocation8 + $0x718] sm:$0xff]
    %v4376 = vld [vmem:[#allocation8 + $0x720] sm:$0xff]
    %v4377 = vld [vmem:[#allocation8 + $0x728] sm:$0xff]
    %v4378 = vld [vmem:[#allocation8 + $0x730] sm:$0xff]
    %v4379 = vld [vmem:[#allocation8 + $0x738] sm:$0xff]
    %v4380 = vld [vmem:[#allocation8 + $0x740] sm:$0xff]
    %v4381 = vld [vmem:[#allocation8 + $0x748] sm:$0xff]
    %v4382 = vld [vmem:[#allocation8 + $0x750] sm:$0xff]
    %v4383 = vld [vmem:[#allocation8 + $0x758] sm:$0xff]
    %v4384 = vld [vmem:[#allocation8 + $0x760] sm:$0xff]
    %v4385 = vld [vmem:[#allocation8 + $0x768] sm:$0xff]
    %v4386 = vld [vmem:[#allocation8 + $0x770] sm:$0xff]
    %v4387 = vld [vmem:[#allocation8 + $0x778] sm:$0xff]
    %v4388 = vld [vmem:[#allocation8 + $0x780] sm:$0xff]
    %v4389 = vld [vmem:[#allocation8 + $0x788] sm:$0xff]
    %v4390 = vld [vmem:[#allocation8 + $0x790] sm:$0xff]
    %v4391 = vld [vmem:[#allocation8 + $0x798] sm:$0xff]
    %v4392 = vld [vmem:[#allocation8 + $0x7a0] sm:$0xff]
    %v4393 = vld [vmem:[#allocation8 + $0x7a8] sm:$0xff]
    %v4394 = vld [vmem:[#allocation8 + $0x7b0] sm:$0xff]
    %v4395 = vld [vmem:[#allocation8 + $0x7b8] sm:$0xff]
    %v4396 = vld [vmem:[#allocation8 + $0x7c0] sm:$0xff]
    %v4397 = vld [vmem:[#allocation8 + $0x7c8] sm:$0xff]
    %v4398 = vld [vmem:[#allocation8 + $0x7d0] sm:$0xff]
    %v4399 = vld [vmem:[#allocation8 + $0x7d8] sm:$0xff]
    %v4400 = vld [vmem:[#allocation8 + $0x7e0] sm:$0xff]
    %v4401 = vld [vmem:[#allocation8 + $0x7e8] sm:$0xff]
    %v4402 = vld [vmem:[#allocation8 + $0x7f0] sm:$0xff]
    %v4403 = vld [vmem:[#allocation8 + $0x7f8] sm:$0xff]
    %v4404 = vld [vmem:[#allocation10] sm:$0xf]
    %v4406 = vperm.slane %v4404, 0
    %v4407 = vperm.slane %v4404, 1
    %v4408 = vperm.slane %v4404, 2
    %v4409 = vperm.slane %v4404, 3
    %v4670 = vunpack.c.l.b16 %v4148
    %v4671 = vunpack.c.h.b16 %v4148
    %v4672 = vunpack.c.l.b16 %v4149
    %v4673 = vunpack.c.h.b16 %v4149
    %v4674 = vunpack.c.l.b16 %v4150
    %v4675 = vunpack.c.h.b16 %v4150
    %v4676 = vunpack.c.l.b16 %v4151
    %v4677 = vunpack.c.h.b16 %v4151
    %v4678 = vunpack.c.l.b16 %v4152
    %v4679 = vunpack.c.h.b16 %v4152
    %v4680 = vunpack.c.l.b16 %v4153
    %v4681 = vunpack.c.h.b16 %v4153
    %v4682 = vunpack.c.l.b16 %v4154
    %v4683 = vunpack.c.h.b16 %v4154
    %v4684 = vunpack.c.l.b16 %v4155
    %v4685 = vunpack.c.h.b16 %v4155
    %v4686 = vunpack.c.l.b16 %v4156
    %v4687 = vunpack.c.h.b16 %v4156
    %v4688 = vunpack.c.l.b16 %v4157
    %v4689 = vunpack.c.h.b16 %v4157
    %v4690 = vunpack.c.l.b16 %v4158
    %v4691 = vunpack.c.h.b16 %v4158
    %v4692 = vunpack.c.l.b16 %v4159
    %v4693 = vunpack.c.h.b16 %v4159
    %v4694 = vunpack.c.l.b16 %v4160
    %v4695 = vunpack.c.h.b16 %v4160
    %v4696 = vunpack.c.l.b16 %v4161
    %v4697 = vunpack.c.h.b16 %v4161
    %v4698 = vunpack.c.l.b16 %v4162
    %v4699 = vunpack.c.h.b16 %v4162
    %v4700 = vunpack.c.l.b16 %v4163
    %v4701 = vunpack.c.h.b16 %v4163
    %v4702 = vunpack.c.l.b16 %v4164
    %v4703 = vunpack.c.h.b16 %v4164
    %v4704 = vunpack.c.l.b16 %v4165
    %v4705 = vunpack.c.h.b16 %v4165
    %v4706 = vunpack.c.l.b16 %v4166
    %v4707 = vunpack.c.h.b16 %v4166
    %v4708 = vunpack.c.l.b16 %v4167
    %v4709 = vunpack.c.h.b16 %v4167
    %v4710 = vunpack.c.l.b16 %v4168
    %v4711 = vunpack.c.h.b16 %v4168
    %v4712 = vunpack.c.l.b16 %v4169
    %v4713 = vunpack.c.h.b16 %v4169
    %v4714 = vunpack.c.l.b16 %v4170
    %v4715 = vunpack.c.h.b16 %v4170
    %v4716 = vunpack.c.l.b16 %v4171
    %v4717 = vunpack.c.h.b16 %v4171
    %v4718 = vunpack.c.l.b16 %v4172
    %v4719 = vunpack.c.h.b16 %v4172
    %v4720 = vunpack.c.l.b16 %v4173
    %v4721 = vunpack.c.h.b16 %v4173
    %v4722 = vunpack.c.l.b16 %v4174
    %v4723 = vunpack.c.h.b16 %v4174
    %v4724 = vunpack.c.l.b16 %v4175
    %v4725 = vunpack.c.h.b16 %v4175
    %v4726 = vunpack.c.l.b16 %v4176
    %v4727 = vunpack.c.h.b16 %v4176
    %v4728 = vunpack.c.l.b16 %v4177
    %v4729 = vunpack.c.h.b16 %v4177
    %v4730 = vunpack.c.l.b16 %v4178
    %v4731 = vunpack.c.h.b16 %v4178
    %v4732 = vunpack.c.l.b16 %v4179
    %v4733 = vunpack.c.h.b16 %v4179
    %v4734 = vunpack.c.l.b16 %v4180
    %v4735 = vunpack.c.h.b16 %v4180
    %v4736 = vunpack.c.l.b16 %v4181
    %v4737 = vunpack.c.h.b16 %v4181
    %v4738 = vunpack.c.l.b16 %v4182
    %v4739 = vunpack.c.h.b16 %v4182
    %v4740 = vunpack.c.l.b16 %v4183
    %v4741 = vunpack.c.h.b16 %v4183
    %v4742 = vunpack.c.l.b16 %v4184
    %v4743 = vunpack.c.h.b16 %v4184
    %v4744 = vunpack.c.l.b16 %v4185
    %v4745 = vunpack.c.h.b16 %v4185
    %v4746 = vunpack.c.l.b16 %v4186
    %v4747 = vunpack.c.h.b16 %v4186
    %v4748 = vunpack.c.l.b16 %v4187
    %v4749 = vunpack.c.h.b16 %v4187
    %v4750 = vunpack.c.l.b16 %v4188
    %v4751 = vunpack.c.h.b16 %v4188
    %v4752 = vunpack.c.l.b16 %v4189
    %v4753 = vunpack.c.h.b16 %v4189
    %v4754 = vunpack.c.l.b16 %v4190
    %v4755 = vunpack.c.h.b16 %v4190
    %v4756 = vunpack.c.l.b16 %v4191
    %v4757 = vunpack.c.h.b16 %v4191
    %v4758 = vunpack.c.l.b16 %v4192
    %v4759 = vunpack.c.h.b16 %v4192
    %v4760 = vunpack.c.l.b16 %v4193
    %v4761 = vunpack.c.h.b16 %v4193
    %v4762 = vunpack.c.l.b16 %v4194
    %v4763 = vunpack.c.h.b16 %v4194
    %v4764 = vunpack.c.l.b16 %v4195
    %v4765 = vunpack.c.h.b16 %v4195
    %v4766 = vunpack.c.l.b16 %v4196
    %v4767 = vunpack.c.h.b16 %v4196
    %v4768 = vunpack.c.l.b16 %v4197
    %v4769 = vunpack.c.h.b16 %v4197
    %v4770 = vunpack.c.l.b16 %v4198
    %v4771 = vunpack.c.h.b16 %v4198
    %v4772 = vunpack.c.l.b16 %v4199
    %v4773 = vunpack.c.h.b16 %v4199
    %v4774 = vunpack.c.l.b16 %v4200
    %v4775 = vunpack.c.h.b16 %v4200
    %v4776 = vunpack.c.l.b16 %v4201
    %v4777 = vunpack.c.h.b16 %v4201
    %v4778 = vunpack.c.l.b16 %v4202
    %v4779 = vunpack.c.h.b16 %v4202
    %v4780 = vunpack.c.l.b16 %v4203
    %v4781 = vunpack.c.h.b16 %v4203
    %v4782 = vunpack.c.l.b16 %v4204
    %v4783 = vunpack.c.h.b16 %v4204
    %v4784 = vunpack.c.l.b16 %v4205
    %v4785 = vunpack.c.h.b16 %v4205
    %v4786 = vunpack.c.l.b16 %v4206
    %v4787 = vunpack.c.h.b16 %v4206
    %v4788 = vunpack.c.l.b16 %v4207
    %v4789 = vunpack.c.h.b16 %v4207
    %v4790 = vunpack.c.l.b16 %v4208
    %v4791 = vunpack.c.h.b16 %v4208
    %v4792 = vunpack.c.l.b16 %v4209
    %v4793 = vunpack.c.h.b16 %v4209
    %v4794 = vunpack.c.l.b16 %v4210
    %v4795 = vunpack.c.h.b16 %v4210
    %v4796 = vunpack.c.l.b16 %v4211
    %v4797 = vunpack.c.h.b16 %v4211
    %v4798 = vunpack.c.l.b16 %v4212
    %v4799 = vunpack.c.h.b16 %v4212
    %v4800 = vunpack.c.l.b16 %v4213
    %v4801 = vunpack.c.h.b16 %v4213
    %v4802 = vunpack.c.l.b16 %v4214
    %v4803 = vunpack.c.h.b16 %v4214
    %v4804 = vunpack.c.l.b16 %v4215
    %v4805 = vunpack.c.h.b16 %v4215
    %v4806 = vunpack.c.l.b16 %v4216
    %v4807 = vunpack.c.h.b16 %v4216
    %v4808 = vunpack.c.l.b16 %v4217
    %v4809 = vunpack.c.h.b16 %v4217
    %v4810 = vunpack.c.l.b16 %v4218
    %v4811 = vunpack.c.h.b16 %v4218
    %v4812 = vunpack.c.l.b16 %v4219
    %v4813 = vunpack.c.h.b16 %v4219
    %v4814 = vunpack.c.l.b16 %v4220
    %v4815 = vunpack.c.h.b16 %v4220
    %v4816 = vunpack.c.l.b16 %v4221
    %v4817 = vunpack.c.h.b16 %v4221
    %v4818 = vunpack.c.l.b16 %v4222
    %v4819 = vunpack.c.h.b16 %v4222
    %v4820 = vunpack.c.l.b16 %v4223
    %v4821 = vunpack.c.h.b16 %v4223
    %v4822 = vunpack.c.l.b16 %v4224
    %v4823 = vunpack.c.h.b16 %v4224
    %v4824 = vunpack.c.l.b16 %v4225
    %v4825 = vunpack.c.h.b16 %v4225
    %v4826 = vunpack.c.l.b16 %v4226
    %v4827 = vunpack.c.h.b16 %v4226
    %v4828 = vunpack.c.l.b16 %v4227
    %v4829 = vunpack.c.h.b16 %v4227
    %v4830 = vunpack.c.l.b16 %v4228
    %v4831 = vunpack.c.h.b16 %v4228
    %v4832 = vunpack.c.l.b16 %v4229
    %v4833 = vunpack.c.h.b16 %v4229
    %v4834 = vunpack.c.l.b16 %v4230
    %v4835 = vunpack.c.h.b16 %v4230
    %v4836 = vunpack.c.l.b16 %v4231
    %v4837 = vunpack.c.h.b16 %v4231
    %v4838 = vunpack.c.l.b16 %v4232
    %v4839 = vunpack.c.h.b16 %v4232
    %v4840 = vunpack.c.l.b16 %v4233
    %v4841 = vunpack.c.h.b16 %v4233
    %v4842 = vunpack.c.l.b16 %v4234
    %v4843 = vunpack.c.h.b16 %v4234
    %v4844 = vunpack.c.l.b16 %v4235
    %v4845 = vunpack.c.h.b16 %v4235
    %v4846 = vunpack.c.l.b16 %v4236
    %v4847 = vunpack.c.h.b16 %v4236
    %v4848 = vunpack.c.l.b16 %v4237
    %v4849 = vunpack.c.h.b16 %v4237
    %v4850 = vunpack.c.l.b16 %v4238
    %v4851 = vunpack.c.h.b16 %v4238
    %v4852 = vunpack.c.l.b16 %v4239
    %v4853 = vunpack.c.h.b16 %v4239
    %v4854 = vunpack.c.l.b16 %v4240
    %v4855 = vunpack.c.h.b16 %v4240
    %v4856 = vunpack.c.l.b16 %v4241
    %v4857 = vunpack.c.h.b16 %v4241
    %v4858 = vunpack.c.l.b16 %v4242
    %v4859 = vunpack.c.h.b16 %v4242
    %v4860 = vunpack.c.l.b16 %v4243
    %v4861 = vunpack.c.h.b16 %v4243
    %v4862 = vunpack.c.l.b16 %v4244
    %v4863 = vunpack.c.h.b16 %v4244
    %v4864 = vunpack.c.l.b16 %v4245
    %v4865 = vunpack.c.h.b16 %v4245
    %v4866 = vunpack.c.l.b16 %v4246
    %v4867 = vunpack.c.h.b16 %v4246
    %v4868 = vunpack.c.l.b16 %v4247
    %v4869 = vunpack.c.h.b16 %v4247
    %v4870 = vunpack.c.l.b16 %v4248
    %v4871 = vunpack.c.h.b16 %v4248
    %v4872 = vunpack.c.l.b16 %v4249
    %v4873 = vunpack.c.h.b16 %v4249
    %v4874 = vunpack.c.l.b16 %v4250
    %v4875 = vunpack.c.h.b16 %v4250
    %v4876 = vunpack.c.l.b16 %v4251
    %v4877 = vunpack.c.h.b16 %v4251
    %v4878 = vunpack.c.l.b16 %v4252
    %v4879 = vunpack.c.h.b16 %v4252
    %v4880 = vunpack.c.l.b16 %v4253
    %v4881 = vunpack.c.h.b16 %v4253
    %v4882 = vunpack.c.l.b16 %v4254
    %v4883 = vunpack.c.h.b16 %v4254
    %v4884 = vunpack.c.l.b16 %v4255
    %v4885 = vunpack.c.h.b16 %v4255
    %v4886 = vunpack.c.l.b16 %v4256
    %v4887 = vunpack.c.h.b16 %v4256
    %v4888 = vunpack.c.l.b16 %v4257
    %v4889 = vunpack.c.h.b16 %v4257
    %v4890 = vunpack.c.l.b16 %v4258
    %v4891 = vunpack.c.h.b16 %v4258
    %v4892 = vunpack.c.l.b16 %v4259
    %v4893 = vunpack.c.h.b16 %v4259
    %v4894 = vunpack.c.l.b16 %v4260
    %v4895 = vunpack.c.h.b16 %v4260
    %v4896 = vunpack.c.l.b16 %v4261
    %v4897 = vunpack.c.h.b16 %v4261
    %v4898 = vunpack.c.l.b16 %v4262
    %v4899 = vunpack.c.h.b16 %v4262
    %v4900 = vunpack.c.l.b16 %v4263
    %v4901 = vunpack.c.h.b16 %v4263
    %v4902 = vunpack.c.l.b16 %v4264
    %v4903 = vunpack.c.h.b16 %v4264
    %v4904 = vunpack.c.l.b16 %v4265
    %v4905 = vunpack.c.h.b16 %v4265
    %v4906 = vunpack.c.l.b16 %v4266
    %v4907 = vunpack.c.h.b16 %v4266
    %v4908 = vunpack.c.l.b16 %v4267
    %v4909 = vunpack.c.h.b16 %v4267
    %v4910 = vunpack.c.l.b16 %v4268
    %v4911 = vunpack.c.h.b16 %v4268
    %v4912 = vunpack.c.l.b16 %v4269
    %v4913 = vunpack.c.h.b16 %v4269
    %v4914 = vunpack.c.l.b16 %v4270
    %v4915 = vunpack.c.h.b16 %v4270
    %v4916 = vunpack.c.l.b16 %v4271
    %v4917 = vunpack.c.h.b16 %v4271
    %v4918 = vunpack.c.l.b16 %v4272
    %v4919 = vunpack.c.h.b16 %v4272
    %v4920 = vunpack.c.l.b16 %v4273
    %v4921 = vunpack.c.h.b16 %v4273
    %v4922 = vunpack.c.l.b16 %v4274
    %v4923 = vunpack.c.h.b16 %v4274
    %v4924 = vunpack.c.l.b16 %v4275
    %v4925 = vunpack.c.h.b16 %v4275
    %v4926 = vunpack.c.l.b16 %v4276
    %v4927 = vunpack.c.h.b16 %v4276
    %v4928 = vunpack.c.l.b16 %v4277
    %v4929 = vunpack.c.h.b16 %v4277
    %v4930 = vunpack.c.l.b16 %v4278
    %v4931 = vunpack.c.h.b16 %v4278
    %v4932 = vunpack.c.l.b16 %v4279
    %v4933 = vunpack.c.h.b16 %v4279
    %v4934 = vunpack.c.l.b16 %v4280
    %v4935 = vunpack.c.h.b16 %v4280
    %v4936 = vunpack.c.l.b16 %v4281
    %v4937 = vunpack.c.h.b16 %v4281
    %v4938 = vunpack.c.l.b16 %v4282
    %v4939 = vunpack.c.h.b16 %v4282
    %v4940 = vunpack.c.l.b16 %v4283
    %v4941 = vunpack.c.h.b16 %v4283
    %v4942 = vunpack.c.l.b16 %v4284
    %v4943 = vunpack.c.h.b16 %v4284
    %v4944 = vunpack.c.l.b16 %v4285
    %v4945 = vunpack.c.h.b16 %v4285
    %v4946 = vunpack.c.l.b16 %v4286
    %v4947 = vunpack.c.h.b16 %v4286
    %v4948 = vunpack.c.l.b16 %v4287
    %v4949 = vunpack.c.h.b16 %v4287
    %v4950 = vunpack.c.l.b16 %v4288
    %v4951 = vunpack.c.h.b16 %v4288
    %v4952 = vunpack.c.l.b16 %v4289
    %v4953 = vunpack.c.h.b16 %v4289
    %v4954 = vunpack.c.l.b16 %v4290
    %v4955 = vunpack.c.h.b16 %v4290
    %v4956 = vunpack.c.l.b16 %v4291
    %v4957 = vunpack.c.h.b16 %v4291
    %v4958 = vunpack.c.l.b16 %v4292
    %v4959 = vunpack.c.h.b16 %v4292
    %v4960 = vunpack.c.l.b16 %v4293
    %v4961 = vunpack.c.h.b16 %v4293
    %v4962 = vunpack.c.l.b16 %v4294
    %v4963 = vunpack.c.h.b16 %v4294
    %v4964 = vunpack.c.l.b16 %v4295
    %v4965 = vunpack.c.h.b16 %v4295
    %v4966 = vunpack.c.l.b16 %v4296
    %v4967 = vunpack.c.h.b16 %v4296
    %v4968 = vunpack.c.l.b16 %v4297
    %v4969 = vunpack.c.h.b16 %v4297
    %v4970 = vunpack.c.l.b16 %v4298
    %v4971 = vunpack.c.h.b16 %v4298
    %v4972 = vunpack.c.l.b16 %v4299
    %v4973 = vunpack.c.h.b16 %v4299
    %v4974 = vunpack.c.l.b16 %v4300
    %v4975 = vunpack.c.h.b16 %v4300
    %v4976 = vunpack.c.l.b16 %v4301
    %v4977 = vunpack.c.h.b16 %v4301
    %v4978 = vunpack.c.l.b16 %v4302
    %v4979 = vunpack.c.h.b16 %v4302
    %v4980 = vunpack.c.l.b16 %v4303
    %v4981 = vunpack.c.h.b16 %v4303
    %v4982 = vunpack.c.l.b16 %v4304
    %v4983 = vunpack.c.h.b16 %v4304
    %v4984 = vunpack.c.l.b16 %v4305
    %v4985 = vunpack.c.h.b16 %v4305
    %v4986 = vunpack.c.l.b16 %v4306
    %v4987 = vunpack.c.h.b16 %v4306
    %v4988 = vunpack.c.l.b16 %v4307
    %v4989 = vunpack.c.h.b16 %v4307
    %v4990 = vunpack.c.l.b16 %v4308
    %v4991 = vunpack.c.h.b16 %v4308
    %v4992 = vunpack.c.l.b16 %v4309
    %v4993 = vunpack.c.h.b16 %v4309
    %v4994 = vunpack.c.l.b16 %v4310
    %v4995 = vunpack.c.h.b16 %v4310
    %v4996 = vunpack.c.l.b16 %v4311
    %v4997 = vunpack.c.h.b16 %v4311
    %v4998 = vunpack.c.l.b16 %v4312
    %v4999 = vunpack.c.h.b16 %v4312
    %v5000 = vunpack.c.l.b16 %v4313
    %v5001 = vunpack.c.h.b16 %v4313
    %v5002 = vunpack.c.l.b16 %v4314
    %v5003 = vunpack.c.h.b16 %v4314
    %v5004 = vunpack.c.l.b16 %v4315
    %v5005 = vunpack.c.h.b16 %v4315
    %v5006 = vunpack.c.l.b16 %v4316
    %v5007 = vunpack.c.h.b16 %v4316
    %v5008 = vunpack.c.l.b16 %v4317
    %v5009 = vunpack.c.h.b16 %v4317
    %v5010 = vunpack.c.l.b16 %v4318
    %v5011 = vunpack.c.h.b16 %v4318
    %v5012 = vunpack.c.l.b16 %v4319
    %v5013 = vunpack.c.h.b16 %v4319
    %v5014 = vunpack.c.l.b16 %v4320
    %v5015 = vunpack.c.h.b16 %v4320
    %v5016 = vunpack.c.l.b16 %v4321
    %v5017 = vunpack.c.h.b16 %v4321
    %v5018 = vunpack.c.l.b16 %v4322
    %v5019 = vunpack.c.h.b16 %v4322
    %v5020 = vunpack.c.l.b16 %v4323
    %v5021 = vunpack.c.h.b16 %v4323
    %v5022 = vunpack.c.l.b16 %v4324
    %v5023 = vunpack.c.h.b16 %v4324
    %v5024 = vunpack.c.l.b16 %v4325
    %v5025 = vunpack.c.h.b16 %v4325
    %v5026 = vunpack.c.l.b16 %v4326
    %v5027 = vunpack.c.h.b16 %v4326
    %v5028 = vunpack.c.l.b16 %v4327
    %v5029 = vunpack.c.h.b16 %v4327
    %v5030 = vunpack.c.l.b16 %v4328
    %v5031 = vunpack.c.h.b16 %v4328
    %v5032 = vunpack.c.l.b16 %v4329
    %v5033 = vunpack.c.h.b16 %v4329
    %v5034 = vunpack.c.l.b16 %v4330
    %v5035 = vunpack.c.h.b16 %v4330
    %v5036 = vunpack.c.l.b16 %v4331
    %v5037 = vunpack.c.h.b16 %v4331
    %v5038 = vunpack.c.l.b16 %v4332
    %v5039 = vunpack.c.h.b16 %v4332
    %v5040 = vunpack.c.l.b16 %v4333
    %v5041 = vunpack.c.h.b16 %v4333
    %v5042 = vunpack.c.l.b16 %v4334
    %v5043 = vunpack.c.h.b16 %v4334
    %v5044 = vunpack.c.l.b16 %v4335
    %v5045 = vunpack.c.h.b16 %v4335
    %v5046 = vunpack.c.l.b16 %v4336
    %v5047 = vunpack.c.h.b16 %v4336
    %v5048 = vunpack.c.l.b16 %v4337
    %v5049 = vunpack.c.h.b16 %v4337
    %v5050 = vunpack.c.l.b16 %v4338
    %v5051 = vunpack.c.h.b16 %v4338
    %v5052 = vunpack.c.l.b16 %v4339
    %v5053 = vunpack.c.h.b16 %v4339
    %v5054 = vunpack.c.l.b16 %v4340
    %v5055 = vunpack.c.h.b16 %v4340
    %v5056 = vunpack.c.l.b16 %v4341
    %v5057 = vunpack.c.h.b16 %v4341
    %v5058 = vunpack.c.l.b16 %v4342
    %v5059 = vunpack.c.h.b16 %v4342
    %v5060 = vunpack.c.l.b16 %v4343
    %v5061 = vunpack.c.h.b16 %v4343
    %v5062 = vunpack.c.l.b16 %v4344
    %v5063 = vunpack.c.h.b16 %v4344
    %v5064 = vunpack.c.l.b16 %v4345
    %v5065 = vunpack.c.h.b16 %v4345
    %v5066 = vunpack.c.l.b16 %v4346
    %v5067 = vunpack.c.h.b16 %v4346
    %v5068 = vunpack.c.l.b16 %v4347
    %v5069 = vunpack.c.h.b16 %v4347
    %v5070 = vunpack.c.l.b16 %v4348
    %v5071 = vunpack.c.h.b16 %v4348
    %v5072 = vunpack.c.l.b16 %v4349
    %v5073 = vunpack.c.h.b16 %v4349
    %v5074 = vunpack.c.l.b16 %v4350
    %v5075 = vunpack.c.h.b16 %v4350
    %v5076 = vunpack.c.l.b16 %v4351
    %v5077 = vunpack.c.h.b16 %v4351
    %v5078 = vunpack.c.l.b16 %v4352
    %v5079 = vunpack.c.h.b16 %v4352
    %v5080 = vunpack.c.l.b16 %v4353
    %v5081 = vunpack.c.h.b16 %v4353
    %v5082 = vunpack.c.l.b16 %v4354
    %v5083 = vunpack.c.h.b16 %v4354
    %v5084 = vunpack.c.l.b16 %v4355
    %v5085 = vunpack.c.h.b16 %v4355
    %v5086 = vunpack.c.l.b16 %v4356
    %v5087 = vunpack.c.h.b16 %v4356
    %v5088 = vunpack.c.l.b16 %v4357
    %v5089 = vunpack.c.h.b16 %v4357
    %v5090 = vunpack.c.l.b16 %v4358
    %v5091 = vunpack.c.h.b16 %v4358
    %v5092 = vunpack.c.l.b16 %v4359
    %v5093 = vunpack.c.h.b16 %v4359
    %v5094 = vunpack.c.l.b16 %v4360
    %v5095 = vunpack.c.h.b16 %v4360
    %v5096 = vunpack.c.l.b16 %v4361
    %v5097 = vunpack.c.h.b16 %v4361
    %v5098 = vunpack.c.l.b16 %v4362
    %v5099 = vunpack.c.h.b16 %v4362
    %v5100 = vunpack.c.l.b16 %v4363
    %v5101 = vunpack.c.h.b16 %v4363
    %v5102 = vunpack.c.l.b16 %v4364
    %v5103 = vunpack.c.h.b16 %v4364
    %v5104 = vunpack.c.l.b16 %v4365
    %v5105 = vunpack.c.h.b16 %v4365
    %v5106 = vunpack.c.l.b16 %v4366
    %v5107 = vunpack.c.h.b16 %v4366
    %v5108 = vunpack.c.l.b16 %v4367
    %v5109 = vunpack.c.h.b16 %v4367
    %v5110 = vunpack.c.l.b16 %v4368
    %v5111 = vunpack.c.h.b16 %v4368
    %v5112 = vunpack.c.l.b16 %v4369
    %v5113 = vunpack.c.h.b16 %v4369
    %v5114 = vunpack.c.l.b16 %v4370
    %v5115 = vunpack.c.h.b16 %v4370
    %v5116 = vunpack.c.l.b16 %v4371
    %v5117 = vunpack.c.h.b16 %v4371
    %v5118 = vunpack.c.l.b16 %v4372
    %v5119 = vunpack.c.h.b16 %v4372
    %v5120 = vunpack.c.l.b16 %v4373
    %v5121 = vunpack.c.h.b16 %v4373
    %v5122 = vunpack.c.l.b16 %v4374
    %v5123 = vunpack.c.h.b16 %v4374
    %v5124 = vunpack.c.l.b16 %v4375
    %v5125 = vunpack.c.h.b16 %v4375
    %v5126 = vunpack.c.l.b16 %v4376
    %v5127 = vunpack.c.h.b16 %v4376
    %v5128 = vunpack.c.l.b16 %v4377
    %v5129 = vunpack.c.h.b16 %v4377
    %v5130 = vunpack.c.l.b16 %v4378
    %v5131 = vunpack.c.h.b16 %v4378
    %v5132 = vunpack.c.l.b16 %v4379
    %v5133 = vunpack.c.h.b16 %v4379
    %v5134 = vunpack.c.l.b16 %v4380
    %v5135 = vunpack.c.h.b16 %v4380
    %v5136 = vunpack.c.l.b16 %v4381
    %v5137 = vunpack.c.h.b16 %v4381
    %v5138 = vunpack.c.l.b16 %v4382
    %v5139 = vunpack.c.h.b16 %v4382
    %v5140 = vunpack.c.l.b16 %v4383
    %v5141 = vunpack.c.h.b16 %v4383
    %v5142 = vunpack.c.l.b16 %v4384
    %v5143 = vunpack.c.h.b16 %v4384
    %v5144 = vunpack.c.l.b16 %v4385
    %v5145 = vunpack.c.h.b16 %v4385
    %v5146 = vunpack.c.l.b16 %v4386
    %v5147 = vunpack.c.h.b16 %v4386
    %v5148 = vunpack.c.l.b16 %v4387
    %v5149 = vunpack.c.h.b16 %v4387
    %v5150 = vunpack.c.l.b16 %v4388
    %v5151 = vunpack.c.h.b16 %v4388
    %v5152 = vunpack.c.l.b16 %v4389
    %v5153 = vunpack.c.h.b16 %v4389
    %v5154 = vunpack.c.l.b16 %v4390
    %v5155 = vunpack.c.h.b16 %v4390
    %v5156 = vunpack.c.l.b16 %v4391
    %v5157 = vunpack.c.h.b16 %v4391
    %v5158 = vunpack.c.l.b16 %v4392
    %v5159 = vunpack.c.h.b16 %v4392
    %v5160 = vunpack.c.l.b16 %v4393
    %v5161 = vunpack.c.h.b16 %v4393
    %v5162 = vunpack.c.l.b16 %v4394
    %v5163 = vunpack.c.h.b16 %v4394
    %v5164 = vunpack.c.l.b16 %v4395
    %v5165 = vunpack.c.h.b16 %v4395
    %v5166 = vunpack.c.l.b16 %v4396
    %v5167 = vunpack.c.h.b16 %v4396
    %v5168 = vunpack.c.l.b16 %v4397
    %v5169 = vunpack.c.h.b16 %v4397
    %v5170 = vunpack.c.l.b16 %v4398
    %v5171 = vunpack.c.h.b16 %v4398
    %v5172 = vunpack.c.l.b16 %v4399
    %v5173 = vunpack.c.h.b16 %v4399
    %v5174 = vunpack.c.l.b16 %v4400
    %v5175 = vunpack.c.h.b16 %v4400
    %v5176 = vunpack.c.l.b16 %v4401
    %v5177 = vunpack.c.h.b16 %v4401
    %v5178 = vunpack.c.l.b16 %v4402
    %v5179 = vunpack.c.h.b16 %v4402
    %v5180 = vunpack.c.l.b16 %v4403
    %v5181 = vunpack.c.h.b16 %v4403
    %v5182 = vpack.c.b16 %v4674, %v4670
    %v5183 = vpack.c.b16 %v4675, %v4671
    %v5184 = vpack.c.b16 %v4676, %v4672
    %v5185 = vpack.c.b16 %v4677, %v4673
    %v5186 = vpack.c.b16 %v4682, %v4678
    %v5187 = vpack.c.b16 %v4683, %v4679
    %v5188 = vpack.c.b16 %v4684, %v4680
    %v5189 = vpack.c.b16 %v4685, %v4681
    %v5190 = vpack.c.b16 %v4690, %v4686
    %v5191 = vpack.c.b16 %v4691, %v4687
    %v5192 = vpack.c.b16 %v4692, %v4688
    %v5193 = vpack.c.b16 %v4693, %v4689
    %v5194 = vpack.c.b16 %v4698, %v4694
    %v5195 = vpack.c.b16 %v4699, %v4695
    %v5196 = vpack.c.b16 %v4700, %v4696
    %v5197 = vpack.c.b16 %v4701, %v4697
    %v5198 = vpack.c.b16 %v4706, %v4702
    %v5199 = vpack.c.b16 %v4707, %v4703
    %v5200 = vpack.c.b16 %v4708, %v4704
    %v5201 = vpack.c.b16 %v4709, %v4705
    %v5202 = vpack.c.b16 %v4714, %v4710
    %v5203 = vpack.c.b16 %v4715, %v4711
    %v5204 = vpack.c.b16 %v4716, %v4712
    %v5205 = vpack.c.b16 %v4717, %v4713
    %v5206 = vpack.c.b16 %v4722, %v4718
    %v5207 = vpack.c.b16 %v4723, %v4719
    %v5208 = vpack.c.b16 %v4724, %v4720
    %v5209 = vpack.c.b16 %v4725, %v4721
    %v5210 = vpack.c.b16 %v4730, %v4726
    %v5211 = vpack.c.b16 %v4731, %v4727
    %v5212 = vpack.c.b16 %v4732, %v4728
    %v5213 = vpack.c.b16 %v4733, %v4729
    %v5214 = vpack.c.b16 %v4738, %v4734
    %v5215 = vpack.c.b16 %v4739, %v4735
    %v5216 = vpack.c.b16 %v4740, %v4736
    %v5217 = vpack.c.b16 %v4741, %v4737
    %v5218 = vpack.c.b16 %v4746, %v4742
    %v5219 = vpack.c.b16 %v4747, %v4743
    %v5220 = vpack.c.b16 %v4748, %v4744
    %v5221 = vpack.c.b16 %v4749, %v4745
    %v5222 = vpack.c.b16 %v4754, %v4750
    %v5223 = vpack.c.b16 %v4755, %v4751
    %v5224 = vpack.c.b16 %v4756, %v4752
    %v5225 = vpack.c.b16 %v4757, %v4753
    %v5226 = vpack.c.b16 %v4762, %v4758
    %v5227 = vpack.c.b16 %v4763, %v4759
    %v5228 = vpack.c.b16 %v4764, %v4760
    %v5229 = vpack.c.b16 %v4765, %v4761
    %v5230 = vpack.c.b16 %v4770, %v4766
    %v5231 = vpack.c.b16 %v4771, %v4767
    %v5232 = vpack.c.b16 %v4772, %v4768
    %v5233 = vpack.c.b16 %v4773, %v4769
    %v5234 = vpack.c.b16 %v4778, %v4774
    %v5235 = vpack.c.b16 %v4779, %v4775
    %v5236 = vpack.c.b16 %v4780, %v4776
    %v5237 = vpack.c.b16 %v4781, %v4777
    %v5238 = vpack.c.b16 %v4786, %v4782
    %v5239 = vpack.c.b16 %v4787, %v4783
    %v5240 = vpack.c.b16 %v4788, %v4784
    %v5241 = vpack.c.b16 %v4789, %v4785
    %v5242 = vpack.c.b16 %v4794, %v4790
    %v5243 = vpack.c.b16 %v4795, %v4791
    %v5244 = vpack.c.b16 %v4796, %v4792
    %v5245 = vpack.c.b16 %v4797, %v4793
    %v5246 = vpack.c.b16 %v4802, %v4798
    %v5247 = vpack.c.b16 %v4803, %v4799
    %v5248 = vpack.c.b16 %v4804, %v4800
    %v5249 = vpack.c.b16 %v4805, %v4801
    %v5250 = vpack.c.b16 %v4810, %v4806
    %v5251 = vpack.c.b16 %v4811, %v4807
    %v5252 = vpack.c.b16 %v4812, %v4808
    %v5253 = vpack.c.b16 %v4813, %v4809
    %v5254 = vpack.c.b16 %v4818, %v4814
    %v5255 = vpack.c.b16 %v4819, %v4815
    %v5256 = vpack.c.b16 %v4820, %v4816
    %v5257 = vpack.c.b16 %v4821, %v4817
    %v5258 = vpack.c.b16 %v4826, %v4822
    %v5259 = vpack.c.b16 %v4827, %v4823
    %v5260 = vpack.c.b16 %v4828, %v4824
    %v5261 = vpack.c.b16 %v4829, %v4825
    %v5262 = vpack.c.b16 %v4834, %v4830
    %v5263 = vpack.c.b16 %v4835, %v4831
    %v5264 = vpack.c.b16 %v4836, %v4832
    %v5265 = vpack.c.b16 %v4837, %v4833
    %v5266 = vpack.c.b16 %v4842, %v4838
    %v5267 = vpack.c.b16 %v4843, %v4839
    %v5268 = vpack.c.b16 %v4844, %v4840
    %v5269 = vpack.c.b16 %v4845, %v4841
    %v5270 = vpack.c.b16 %v4850, %v4846
    %v5271 = vpack.c.b16 %v4851, %v4847
    %v5272 = vpack.c.b16 %v4852, %v4848
    %v5273 = vpack.c.b16 %v4853, %v4849
    %v5274 = vpack.c.b16 %v4858, %v4854
    %v5275 = vpack.c.b16 %v4859, %v4855
    %v5276 = vpack.c.b16 %v4860, %v4856
    %v5277 = vpack.c.b16 %v4861, %v4857
    %v5278 = vpack.c.b16 %v4866, %v4862
    %v5279 = vpack.c.b16 %v4867, %v4863
    %v5280 = vpack.c.b16 %v4868, %v4864
    %v5281 = vpack.c.b16 %v4869, %v4865
    %v5282 = vpack.c.b16 %v4874, %v4870
    %v5283 = vpack.c.b16 %v4875, %v4871
    %v5284 = vpack.c.b16 %v4876, %v4872
    %v5285 = vpack.c.b16 %v4877, %v4873
    %v5286 = vpack.c.b16 %v4882, %v4878
    %v5287 = vpack.c.b16 %v4883, %v4879
    %v5288 = vpack.c.b16 %v4884, %v4880
    %v5289 = vpack.c.b16 %v4885, %v4881
    %v5290 = vpack.c.b16 %v4890, %v4886
    %v5291 = vpack.c.b16 %v4891, %v4887
    %v5292 = vpack.c.b16 %v4892, %v4888
    %v5293 = vpack.c.b16 %v4893, %v4889
    %v5294 = vpack.c.b16 %v4898, %v4894
    %v5295 = vpack.c.b16 %v4899, %v4895
    %v5296 = vpack.c.b16 %v4900, %v4896
    %v5297 = vpack.c.b16 %v4901, %v4897
    %v5298 = vpack.c.b16 %v4906, %v4902
    %v5299 = vpack.c.b16 %v4907, %v4903
    %v5300 = vpack.c.b16 %v4908, %v4904
    %v5301 = vpack.c.b16 %v4909, %v4905
    %v5302 = vpack.c.b16 %v4914, %v4910
    %v5303 = vpack.c.b16 %v4915, %v4911
    %v5304 = vpack.c.b16 %v4916, %v4912
    %v5305 = vpack.c.b16 %v4917, %v4913
    %v5306 = vpack.c.b16 %v4922, %v4918
    %v5307 = vpack.c.b16 %v4923, %v4919
    %v5308 = vpack.c.b16 %v4924, %v4920
    %v5309 = vpack.c.b16 %v4925, %v4921
    %v5310 = vpack.c.b16 %v4930, %v4926
    %v5311 = vpack.c.b16 %v4931, %v4927
    %v5312 = vpack.c.b16 %v4932, %v4928
    %v5313 = vpack.c.b16 %v4933, %v4929
    %v5314 = vpack.c.b16 %v4938, %v4934
    %v5315 = vpack.c.b16 %v4939, %v4935
    %v5316 = vpack.c.b16 %v4940, %v4936
    %v5317 = vpack.c.b16 %v4941, %v4937
    %v5318 = vpack.c.b16 %v4946, %v4942
    %v5319 = vpack.c.b16 %v4947, %v4943
    %v5320 = vpack.c.b16 %v4948, %v4944
    %v5321 = vpack.c.b16 %v4949, %v4945
    %v5322 = vpack.c.b16 %v4954, %v4950
    %v5323 = vpack.c.b16 %v4955, %v4951
    %v5324 = vpack.c.b16 %v4956, %v4952
    %v5325 = vpack.c.b16 %v4957, %v4953
    %v5326 = vpack.c.b16 %v4962, %v4958
    %v5327 = vpack.c.b16 %v4963, %v4959
    %v5328 = vpack.c.b16 %v4964, %v4960
    %v5329 = vpack.c.b16 %v4965, %v4961
    %v5330 = vpack.c.b16 %v4970, %v4966
    %v5331 = vpack.c.b16 %v4971, %v4967
    %v5332 = vpack.c.b16 %v4972, %v4968
    %v5333 = vpack.c.b16 %v4973, %v4969
    %v5334 = vpack.c.b16 %v4978, %v4974
    %v5335 = vpack.c.b16 %v4979, %v4975
    %v5336 = vpack.c.b16 %v4980, %v4976
    %v5337 = vpack.c.b16 %v4981, %v4977
    %v5338 = vpack.c.b16 %v4986, %v4982
    %v5339 = vpack.c.b16 %v4987, %v4983
    %v5340 = vpack.c.b16 %v4988, %v4984
    %v5341 = vpack.c.b16 %v4989, %v4985
    %v5342 = vpack.c.b16 %v4994, %v4990
    %v5343 = vpack.c.b16 %v4995, %v4991
    %v5344 = vpack.c.b16 %v4996, %v4992
    %v5345 = vpack.c.b16 %v4997, %v4993
    %v5346 = vpack.c.b16 %v5002, %v4998
    %v5347 = vpack.c.b16 %v5003, %v4999
    %v5348 = vpack.c.b16 %v5004, %v5000
    %v5349 = vpack.c.b16 %v5005, %v5001
    %v5350 = vpack.c.b16 %v5010, %v5006
    %v5351 = vpack.c.b16 %v5011, %v5007
    %v5352 = vpack.c.b16 %v5012, %v5008
    %v5353 = vpack.c.b16 %v5013, %v5009
    %v5354 = vpack.c.b16 %v5018, %v5014
    %v5355 = vpack.c.b16 %v5019, %v5015
    %v5356 = vpack.c.b16 %v5020, %v5016
    %v5357 = vpack.c.b16 %v5021, %v5017
    %v5358 = vpack.c.b16 %v5026, %v5022
    %v5359 = vpack.c.b16 %v5027, %v5023
    %v5360 = vpack.c.b16 %v5028, %v5024
    %v5361 = vpack.c.b16 %v5029, %v5025
    %v5362 = vpack.c.b16 %v5034, %v5030
    %v5363 = vpack.c.b16 %v5035, %v5031
    %v5364 = vpack.c.b16 %v5036, %v5032
    %v5365 = vpack.c.b16 %v5037, %v5033
    %v5366 = vpack.c.b16 %v5042, %v5038
    %v5367 = vpack.c.b16 %v5043, %v5039
    %v5368 = vpack.c.b16 %v5044, %v5040
    %v5369 = vpack.c.b16 %v5045, %v5041
    %v5370 = vpack.c.b16 %v5050, %v5046
    %v5371 = vpack.c.b16 %v5051, %v5047
    %v5372 = vpack.c.b16 %v5052, %v5048
    %v5373 = vpack.c.b16 %v5053, %v5049
    %v5374 = vpack.c.b16 %v5058, %v5054
    %v5375 = vpack.c.b16 %v5059, %v5055
    %v5376 = vpack.c.b16 %v5060, %v5056
    %v5377 = vpack.c.b16 %v5061, %v5057
    %v5378 = vpack.c.b16 %v5066, %v5062
    %v5379 = vpack.c.b16 %v5067, %v5063
    %v5380 = vpack.c.b16 %v5068, %v5064
    %v5381 = vpack.c.b16 %v5069, %v5065
    %v5382 = vpack.c.b16 %v5074, %v5070
    %v5383 = vpack.c.b16 %v5075, %v5071
    %v5384 = vpack.c.b16 %v5076, %v5072
    %v5385 = vpack.c.b16 %v5077, %v5073
    %v5386 = vpack.c.b16 %v5082, %v5078
    %v5387 = vpack.c.b16 %v5083, %v5079
    %v5388 = vpack.c.b16 %v5084, %v5080
    %v5389 = vpack.c.b16 %v5085, %v5081
    %v5390 = vpack.c.b16 %v5090, %v5086
    %v5391 = vpack.c.b16 %v5091, %v5087
    %v5392 = vpack.c.b16 %v5092, %v5088
    %v5393 = vpack.c.b16 %v5093, %v5089
    %v5394 = vpack.c.b16 %v5098, %v5094
    %v5395 = vpack.c.b16 %v5099, %v5095
    %v5396 = vpack.c.b16 %v5100, %v5096
    %v5397 = vpack.c.b16 %v5101, %v5097
    %v5398 = vpack.c.b16 %v5106, %v5102
    %v5399 = vpack.c.b16 %v5107, %v5103
    %v5400 = vpack.c.b16 %v5108, %v5104
    %v5401 = vpack.c.b16 %v5109, %v5105
    %v5402 = vpack.c.b16 %v5114, %v5110
    %v5403 = vpack.c.b16 %v5115, %v5111
    %v5404 = vpack.c.b16 %v5116, %v5112
    %v5405 = vpack.c.b16 %v5117, %v5113
    %v5406 = vpack.c.b16 %v5122, %v5118
    %v5407 = vpack.c.b16 %v5123, %v5119
    %v5408 = vpack.c.b16 %v5124, %v5120
    %v5409 = vpack.c.b16 %v5125, %v5121
    %v5410 = vpack.c.b16 %v5130, %v5126
    %v5411 = vpack.c.b16 %v5131, %v5127
    %v5412 = vpack.c.b16 %v5132, %v5128
    %v5413 = vpack.c.b16 %v5133, %v5129
    %v5414 = vpack.c.b16 %v5138, %v5134
    %v5415 = vpack.c.b16 %v5139, %v5135
    %v5416 = vpack.c.b16 %v5140, %v5136
    %v5417 = vpack.c.b16 %v5141, %v5137
    %v5418 = vpack.c.b16 %v5146, %v5142
    %v5419 = vpack.c.b16 %v5147, %v5143
    %v5420 = vpack.c.b16 %v5148, %v5144
    %v5421 = vpack.c.b16 %v5149, %v5145
    %v5422 = vpack.c.b16 %v5154, %v5150
    %v5423 = vpack.c.b16 %v5155, %v5151
    %v5424 = vpack.c.b16 %v5156, %v5152
    %v5425 = vpack.c.b16 %v5157, %v5153
    %v5426 = vpack.c.b16 %v5162, %v5158
    %v5427 = vpack.c.b16 %v5163, %v5159
    %v5428 = vpack.c.b16 %v5164, %v5160
    %v5429 = vpack.c.b16 %v5165, %v5161
    %v5430 = vpack.c.b16 %v5170, %v5166
    %v5431 = vpack.c.b16 %v5171, %v5167
    %v5432 = vpack.c.b16 %v5172, %v5168
    %v5433 = vpack.c.b16 %v5173, %v5169
    %v5434 = vpack.c.b16 %v5178, %v5174
    %v5435 = vpack.c.b16 %v5179, %v5175
    %v5436 = vpack.c.b16 %v5180, %v5176
    %v5437 = vpack.c.b16 %v5181, %v5177
    %5694 = vmatpush.bf16.msra.mxu0 %v5210
    %5695 = vmatpush.bf16.msra.mxu0 %v5206
    %5696 = vmatpush.bf16.msra.mxu0 %v5202
    %5697 = vmatpush.bf16.msra.mxu0 %v5198
    %5698 = vmatpush.bf16.msra.mxu0 %v5194
    %5699 = vmatpush.bf16.msra.mxu0 %v5190
    %5700 = vmatpush.bf16.msra.mxu0 %v5186
    %5701 = vmatpush.bf16.msra.mxu0 %v5182
    %5702 = vmatmul.bf16.gmra.mxu0 %v4140
    %v5703 = vpop.f32.mrf.mxu0
    %v5704 = vadd.f32 %v4406, %v5703
    %v5705 = vpop.f32.mrf.mxu0
    %5706 = vdwg.mxu0
    %5707 = vmatpush.bf16.msra.mxu0 %v5242
    %5708 = vmatpush.bf16.msra.mxu0 %v5238
    %5709 = vmatpush.bf16.msra.mxu0 %v5234
    %5710 = vmatpush.bf16.msra.mxu0 %v5230
    %5711 = vmatpush.bf16.msra.mxu0 %v5226
    %5712 = vmatpush.bf16.msra.mxu0 %v5222
    %5713 = vmatpush.bf16.msra.mxu0 %v5218
    %5714 = vmatpush.bf16.msra.mxu0 %v5214
    %5715 = vmatmul.bf16.gmra.mxu0 %v4141
    %v5716 = vpop.f32.mrf.mxu0
    %v5717 = vadd.f32 %v5704, %v5716
    %v5718 = vpop.f32.mrf.mxu0
    %5719 = vdwg.mxu0
    %5720 = vmatpush.bf16.msra.mxu0 %v5274
    %5721 = vmatpush.bf16.msra.mxu0 %v5270
    %5722 = vmatpush.bf16.msra.mxu0 %v5266
    %5723 = vmatpush.bf16.msra.mxu0 %v5262
    %5724 = vmatpush.bf16.msra.mxu0 %v5258
    %5725 = vmatpush.bf16.msra.mxu0 %v5254
    %5726 = vmatpush.bf16.msra.mxu0 %v5250
    %5727 = vmatpush.bf16.msra.mxu0 %v5246
    %5728 = vmatmul.bf16.gmra.mxu0 %v4142
    %v5729 = vpop.f32.mrf.mxu0
    %v5730 = vadd.f32 %v5717, %v5729
    %v5731 = vpop.f32.mrf.mxu0
    %5732 = vdwg.mxu0
    %5733 = vmatpush.bf16.msra.mxu0 %v5306
    %5734 = vmatpush.bf16.msra.mxu0 %v5302
    %5735 = vmatpush.bf16.msra.mxu0 %v5298
    %5736 = vmatpush.bf16.msra.mxu0 %v5294
    %5737 = vmatpush.bf16.msra.mxu0 %v5290
    %5738 = vmatpush.bf16.msra.mxu0 %v5286
    %5739 = vmatpush.bf16.msra.mxu0 %v5282
    %5740 = vmatpush.bf16.msra.mxu0 %v5278
    %5741 = vmatmul.bf16.gmra.mxu0 %v4143
    %v5742 = vpop.f32.mrf.mxu0
    %v5743 = vadd.f32 %v5730, %v5742
    %v5744 = vpop.f32.mrf.mxu0
    %5745 = vdwg.mxu0
    %5746 = vmatpush.bf16.msra.mxu0 %v5338
    %5747 = vmatpush.bf16.msra.mxu0 %v5334
    %5748 = vmatpush.bf16.msra.mxu0 %v5330
    %5749 = vmatpush.bf16.msra.mxu0 %v5326
    %5750 = vmatpush.bf16.msra.mxu0 %v5322
    %5751 = vmatpush.bf16.msra.mxu0 %v5318
    %5752 = vmatpush.bf16.msra.mxu0 %v5314
    %5753 = vmatpush.bf16.msra.mxu0 %v5310
    %5754 = vmatmul.bf16.gmra.mxu0 %v4144
    %v5755 = vpop.f32.mrf.mxu0
    %v5756 = vadd.f32 %v5743, %v5755
    %v5757 = vpop.f32.mrf.mxu0
    %5758 = vdwg.mxu0
    %5759 = vmatpush.bf16.msra.mxu0 %v5370
    %5760 = vmatpush.bf16.msra.mxu0 %v5366
    %5761 = vmatpush.bf16.msra.mxu0 %v5362
    %5762 = vmatpush.bf16.msra.mxu0 %v5358
    %5763 = vmatpush.bf16.msra.mxu0 %v5354
    %5764 = vmatpush.bf16.msra.mxu0 %v5350
    %5765 = vmatpush.bf16.msra.mxu0 %v5346
    %5766 = vmatpush.bf16.msra.mxu0 %v5342
    %5767 = vmatmul.bf16.gmra.mxu0 %v4145
    %v5768 = vpop.f32.mrf.mxu0
    %v5769 = vadd.f32 %v5756, %v5768
    %v5770 = vpop.f32.mrf.mxu0
    %5771 = vdwg.mxu0
    %5772 = vmatpush.bf16.msra.mxu0 %v5402
    %5773 = vmatpush.bf16.msra.mxu0 %v5398
    %5774 = vmatpush.bf16.msra.mxu0 %v5394
    %5775 = vmatpush.bf16.msra.mxu0 %v5390
    %5776 = vmatpush.bf16.msra.mxu0 %v5386
    %5777 = vmatpush.bf16.msra.mxu0 %v5382
    %5778 = vmatpush.bf16.msra.mxu0 %v5378
    %5779 = vmatpush.bf16.msra.mxu0 %v5374
    %5780 = vmatmul.bf16.gmra.mxu0 %v4146
    %v5781 = vpop.f32.mrf.mxu0
    %v5782 = vadd.f32 %v5769, %v5781
    %v5783 = vpop.f32.mrf.mxu0
    %5784 = vdwg.mxu0
    %5785 = vmatpush.bf16.msra.mxu0 %v5434
    %5786 = vmatpush.bf16.msra.mxu0 %v5430
    %5787 = vmatpush.bf16.msra.mxu0 %v5426
    %5788 = vmatpush.bf16.msra.mxu0 %v5422
    %5789 = vmatpush.bf16.msra.mxu0 %v5418
    %5790 = vmatpush.bf16.msra.mxu0 %v5414
    %5791 = vmatpush.bf16.msra.mxu0 %v5410
    %5792 = vmatpush.bf16.msra.mxu0 %v5406
    %5793 = vmatmul.bf16.gmra.mxu0 %v4147
    %v5794 = vpop.f32.mrf.mxu0
    %v5795 = vadd.f32 %v5782, %v5794
    %v5796 = vpop.f32.mrf.mxu0
    %5797 = vdwg.mxu0
    %5798 = vmatpush.bf16.msra.mxu0 %v5211
    %5799 = vmatpush.bf16.msra.mxu0 %v5207
    %5800 = vmatpush.bf16.msra.mxu0 %v5203
    %5801 = vmatpush.bf16.msra.mxu0 %v5199
    %5802 = vmatpush.bf16.msra.mxu0 %v5195
    %5803 = vmatpush.bf16.msra.mxu0 %v5191
    %5804 = vmatpush.bf16.msra.mxu0 %v5187
    %5805 = vmatpush.bf16.msra.mxu0 %v5183
    %5806 = vmatmul.bf16.gmra.mxu0 %v4140
    %v5807 = vpop.f32.mrf.mxu0
    %v5808 = vadd.f32 %v4407, %v5807
    %v5809 = vpop.f32.mrf.mxu0
    %5810 = vdwg.mxu0
    %5811 = vmatpush.bf16.msra.mxu0 %v5243
    %5812 = vmatpush.bf16.msra.mxu0 %v5239
    %5813 = vmatpush.bf16.msra.mxu0 %v5235
    %5814 = vmatpush.bf16.msra.mxu0 %v5231
    %5815 = vmatpush.bf16.msra.mxu0 %v5227
    %5816 = vmatpush.bf16.msra.mxu0 %v5223
    %5817 = vmatpush.bf16.msra.mxu0 %v5219
    %5818 = vmatpush.bf16.msra.mxu0 %v5215
    %5819 = vmatmul.bf16.gmra.mxu0 %v4141
    %v5820 = vpop.f32.mrf.mxu0
    %v5821 = vadd.f32 %v5808, %v5820
    %v5822 = vpop.f32.mrf.mxu0
    %5823 = vdwg.mxu0
    %5824 = vmatpush.bf16.msra.mxu0 %v5275
    %5825 = vmatpush.bf16.msra.mxu0 %v5271
    %5826 = vmatpush.bf16.msra.mxu0 %v5267
    %5827 = vmatpush.bf16.msra.mxu0 %v5263
    %5828 = vmatpush.bf16.msra.mxu0 %v5259
    %5829 = vmatpush.bf16.msra.mxu0 %v5255
    %5830 = vmatpush.bf16.msra.mxu0 %v5251
    %5831 = vmatpush.bf16.msra.mxu0 %v5247
    %5832 = vmatmul.bf16.gmra.mxu0 %v4142
    %v5833 = vpop.f32.mrf.mxu0
    %v5834 = vadd.f32 %v5821, %v5833
    %v5835 = vpop.f32.mrf.mxu0
    %5836 = vdwg.mxu0
    %5837 = vmatpush.bf16.msra.mxu0 %v5307
    %5838 = vmatpush.bf16.msra.mxu0 %v5303
    %5839 = vmatpush.bf16.msra.mxu0 %v5299
    %5840 = vmatpush.bf16.msra.mxu0 %v5295
    %5841 = vmatpush.bf16.msra.mxu0 %v5291
    %5842 = vmatpush.bf16.msra.mxu0 %v5287
    %5843 = vmatpush.bf16.msra.mxu0 %v5283
    %5844 = vmatpush.bf16.msra.mxu0 %v5279
    %5845 = vmatmul.bf16.gmra.mxu0 %v4143
    %v5846 = vpop.f32.mrf.mxu0
    %v5847 = vadd.f32 %v5834, %v5846
    %v5848 = vpop.f32.mrf.mxu0
    %5849 = vdwg.mxu0
    %5850 = vmatpush.bf16.msra.mxu0 %v5339
    %5851 = vmatpush.bf16.msra.mxu0 %v5335
    %5852 = vmatpush.bf16.msra.mxu0 %v5331
    %5853 = vmatpush.bf16.msra.mxu0 %v5327
    %5854 = vmatpush.bf16.msra.mxu0 %v5323
    %5855 = vmatpush.bf16.msra.mxu0 %v5319
    %5856 = vmatpush.bf16.msra.mxu0 %v5315
    %5857 = vmatpush.bf16.msra.mxu0 %v5311
    %5858 = vmatmul.bf16.gmra.mxu0 %v4144
    %v5859 = vpop.f32.mrf.mxu0
    %v5860 = vadd.f32 %v5847, %v5859
    %v5861 = vpop.f32.mrf.mxu0
    %5862 = vdwg.mxu0
    %5863 = vmatpush.bf16.msra.mxu0 %v5371
    %5864 = vmatpush.bf16.msra.mxu0 %v5367
    %5865 = vmatpush.bf16.msra.mxu0 %v5363
    %5866 = vmatpush.bf16.msra.mxu0 %v5359
    %5867 = vmatpush.bf16.msra.mxu0 %v5355
    %5868 = vmatpush.bf16.msra.mxu0 %v5351
    %5869 = vmatpush.bf16.msra.mxu0 %v5347
    %5870 = vmatpush.bf16.msra.mxu0 %v5343
    %5871 = vmatmul.bf16.gmra.mxu0 %v4145
    %v5872 = vpop.f32.mrf.mxu0
    %v5873 = vadd.f32 %v5860, %v5872
    %v5874 = vpop.f32.mrf.mxu0
    %5875 = vdwg.mxu0
    %5876 = vmatpush.bf16.msra.mxu0 %v5403
    %5877 = vmatpush.bf16.msra.mxu0 %v5399
    %5878 = vmatpush.bf16.msra.mxu0 %v5395
    %5879 = vmatpush.bf16.msra.mxu0 %v5391
    %5880 = vmatpush.bf16.msra.mxu0 %v5387
    %5881 = vmatpush.bf16.msra.mxu0 %v5383
    %5882 = vmatpush.bf16.msra.mxu0 %v5379
    %5883 = vmatpush.bf16.msra.mxu0 %v5375
    %5884 = vmatmul.bf16.gmra.mxu0 %v4146
    %v5885 = vpop.f32.mrf.mxu0
    %v5886 = vadd.f32 %v5873, %v5885
    %v5887 = vpop.f32.mrf.mxu0
    %5888 = vdwg.mxu0
    %5889 = vmatpush.bf16.msra.mxu0 %v5435
    %5890 = vmatpush.bf16.msra.mxu0 %v5431
    %5891 = vmatpush.bf16.msra.mxu0 %v5427
    %5892 = vmatpush.bf16.msra.mxu0 %v5423
    %5893 = vmatpush.bf16.msra.mxu0 %v5419
    %5894 = vmatpush.bf16.msra.mxu0 %v5415
    %5895 = vmatpush.bf16.msra.mxu0 %v5411
    %5896 = vmatpush.bf16.msra.mxu0 %v5407
    %5897 = vmatmul.bf16.gmra.mxu0 %v4147
    %v5898 = vpop.f32.mrf.mxu0
    %v5899 = vadd.f32 %v5886, %v5898
    %v5900 = vpop.f32.mrf.mxu0
    %5901 = vdwg.mxu0
    %5902 = vmatpush.bf16.msra.mxu0 %v5212
    %5903 = vmatpush.bf16.msra.mxu0 %v5208
    %5904 = vmatpush.bf16.msra.mxu0 %v5204
    %5905 = vmatpush.bf16.msra.mxu0 %v5200
    %5906 = vmatpush.bf16.msra.mxu0 %v5196
    %5907 = vmatpush.bf16.msra.mxu0 %v5192
    %5908 = vmatpush.bf16.msra.mxu0 %v5188
    %5909 = vmatpush.bf16.msra.mxu0 %v5184
    %5910 = vmatmul.bf16.gmra.mxu0 %v4140
    %v5911 = vpop.f32.mrf.mxu0
    %v5912 = vadd.f32 %v4408, %v5911
    %v5913 = vpop.f32.mrf.mxu0
    %5914 = vdwg.mxu0
    %5915 = vmatpush.bf16.msra.mxu0 %v5244
    %5916 = vmatpush.bf16.msra.mxu0 %v5240
    %5917 = vmatpush.bf16.msra.mxu0 %v5236
    %5918 = vmatpush.bf16.msra.mxu0 %v5232
    %5919 = vmatpush.bf16.msra.mxu0 %v5228
    %5920 = vmatpush.bf16.msra.mxu0 %v5224
    %5921 = vmatpush.bf16.msra.mxu0 %v5220
    %5922 = vmatpush.bf16.msra.mxu0 %v5216
    %5923 = vmatmul.bf16.gmra.mxu0 %v4141
    %v5924 = vpop.f32.mrf.mxu0
    %v5925 = vadd.f32 %v5912, %v5924
    %v5926 = vpop.f32.mrf.mxu0
    %5927 = vdwg.mxu0
    %5928 = vmatpush.bf16.msra.mxu0 %v5276
    %5929 = vmatpush.bf16.msra.mxu0 %v5272
    %5930 = vmatpush.bf16.msra.mxu0 %v5268
    %5931 = vmatpush.bf16.msra.mxu0 %v5264
    %5932 = vmatpush.bf16.msra.mxu0 %v5260
    %5933 = vmatpush.bf16.msra.mxu0 %v5256
    %5934 = vmatpush.bf16.msra.mxu0 %v5252
    %5935 = vmatpush.bf16.msra.mxu0 %v5248
    %5936 = vmatmul.bf16.gmra.mxu0 %v4142
    %v5937 = vpop.f32.mrf.mxu0
    %v5938 = vadd.f32 %v5925, %v5937
    %v5939 = vpop.f32.mrf.mxu0
    %5940 = vdwg.mxu0
    %5941 = vmatpush.bf16.msra.mxu0 %v5308
    %5942 = vmatpush.bf16.msra.mxu0 %v5304
    %5943 = vmatpush.bf16.msra.mxu0 %v5300
    %5944 = vmatpush.bf16.msra.mxu0 %v5296
    %5945 = vmatpush.bf16.msra.mxu0 %v5292
    %5946 = vmatpush.bf16.msra.mxu0 %v5288
    %5947 = vmatpush.bf16.msra.mxu0 %v5284
    %5948 = vmatpush.bf16.msra.mxu0 %v5280
    %5949 = vmatmul.bf16.gmra.mxu0 %v4143
    %v5950 = vpop.f32.mrf.mxu0
    %v5951 = vadd.f32 %v5938, %v5950
    %v5952 = vpop.f32.mrf.mxu0
    %5953 = vdwg.mxu0
    %5954 = vmatpush.bf16.msra.mxu0 %v5340
    %5955 = vmatpush.bf16.msra.mxu0 %v5336
    %5956 = vmatpush.bf16.msra.mxu0 %v5332
    %5957 = vmatpush.bf16.msra.mxu0 %v5328
    %5958 = vmatpush.bf16.msra.mxu0 %v5324
    %5959 = vmatpush.bf16.msra.mxu0 %v5320
    %5960 = vmatpush.bf16.msra.mxu0 %v5316
    %5961 = vmatpush.bf16.msra.mxu0 %v5312
    %5962 = vmatmul.bf16.gmra.mxu0 %v4144
    %v5963 = vpop.f32.mrf.mxu0
    %v5964 = vadd.f32 %v5951, %v5963
    %v5965 = vpop.f32.mrf.mxu0
    %5966 = vdwg.mxu0
    %5967 = vmatpush.bf16.msra.mxu0 %v5372
    %5968 = vmatpush.bf16.msra.mxu0 %v5368
    %5969 = vmatpush.bf16.msra.mxu0 %v5364
    %5970 = vmatpush.bf16.msra.mxu0 %v5360
    %5971 = vmatpush.bf16.msra.mxu0 %v5356
    %5972 = vmatpush.bf16.msra.mxu0 %v5352
    %5973 = vmatpush.bf16.msra.mxu0 %v5348
    %5974 = vmatpush.bf16.msra.mxu0 %v5344
    %5975 = vmatmul.bf16.gmra.mxu0 %v4145
    %v5976 = vpop.f32.mrf.mxu0
    %v5977 = vadd.f32 %v5964, %v5976
    %v5978 = vpop.f32.mrf.mxu0
    %5979 = vdwg.mxu0
    %5980 = vmatpush.bf16.msra.mxu0 %v5404
    %5981 = vmatpush.bf16.msra.mxu0 %v5400
    %5982 = vmatpush.bf16.msra.mxu0 %v5396
    %5983 = vmatpush.bf16.msra.mxu0 %v5392
    %5984 = vmatpush.bf16.msra.mxu0 %v5388
    %5985 = vmatpush.bf16.msra.mxu0 %v5384
    %5986 = vmatpush.bf16.msra.mxu0 %v5380
    %5987 = vmatpush.bf16.msra.mxu0 %v5376
    %5988 = vmatmul.bf16.gmra.mxu0 %v4146
    %v5989 = vpop.f32.mrf.mxu0
    %v5990 = vadd.f32 %v5977, %v5989
    %v5991 = vpop.f32.mrf.mxu0
    %5992 = vdwg.mxu0
    %5993 = vmatpush.bf16.msra.mxu0 %v5436
    %5994 = vmatpush.bf16.msra.mxu0 %v5432
    %5995 = vmatpush.bf16.msra.mxu0 %v5428
    %5996 = vmatpush.bf16.msra.mxu0 %v5424
    %5997 = vmatpush.bf16.msra.mxu0 %v5420
    %5998 = vmatpush.bf16.msra.mxu0 %v5416
    %5999 = vmatpush.bf16.msra.mxu0 %v5412
    %6000 = vmatpush.bf16.msra.mxu0 %v5408
    %6001 = vmatmul.bf16.gmra.mxu0 %v4147
    %v6002 = vpop.f32.mrf.mxu0
    %v6003 = vadd.f32 %v5990, %v6002
    %v6004 = vpop.f32.mrf.mxu0
    %6005 = vdwg.mxu0
    %6006 = vmatpush.bf16.msra.mxu0 %v5213
    %6007 = vmatpush.bf16.msra.mxu0 %v5209
    %6008 = vmatpush.bf16.msra.mxu0 %v5205
    %6009 = vmatpush.bf16.msra.mxu0 %v5201
    %6010 = vmatpush.bf16.msra.mxu0 %v5197
    %6011 = vmatpush.bf16.msra.mxu0 %v5193
    %6012 = vmatpush.bf16.msra.mxu0 %v5189
    %6013 = vmatpush.bf16.msra.mxu0 %v5185
    %6014 = vmatmul.bf16.gmra.mxu0 %v4140
    %v6015 = vpop.f32.mrf.mxu0
    %v6016 = vadd.f32 %v4409, %v6015
    %v6017 = vpop.f32.mrf.mxu0
    %6018 = vdwg.mxu0
    %6019 = vmatpush.bf16.msra.mxu0 %v5245
    %6020 = vmatpush.bf16.msra.mxu0 %v5241
    %6021 = vmatpush.bf16.msra.mxu0 %v5237
    %6022 = vmatpush.bf16.msra.mxu0 %v5233
    %6023 = vmatpush.bf16.msra.mxu0 %v5229
    %6024 = vmatpush.bf16.msra.mxu0 %v5225
    %6025 = vmatpush.bf16.msra.mxu0 %v5221
    %6026 = vmatpush.bf16.msra.mxu0 %v5217
    %6027 = vmatmul.bf16.gmra.mxu0 %v4141
    %v6028 = vpop.f32.mrf.mxu0
    %v6029 = vadd.f32 %v6016, %v6028
    %v6030 = vpop.f32.mrf.mxu0
    %6031 = vdwg.mxu0
    %6032 = vmatpush.bf16.msra.mxu0 %v5277
    %6033 = vmatpush.bf16.msra.mxu0 %v5273
    %6034 = vmatpush.bf16.msra.mxu0 %v5269
    %6035 = vmatpush.bf16.msra.mxu0 %v5265
    %6036 = vmatpush.bf16.msra.mxu0 %v5261
    %6037 = vmatpush.bf16.msra.mxu0 %v5257
    %6038 = vmatpush.bf16.msra.mxu0 %v5253
    %6039 = vmatpush.bf16.msra.mxu0 %v5249
    %6040 = vmatmul.bf16.gmra.mxu0 %v4142
    %v6041 = vpop.f32.mrf.mxu0
    %v6042 = vadd.f32 %v6029, %v6041
    %v6043 = vpop.f32.mrf.mxu0
    %6044 = vdwg.mxu0
    %6045 = vmatpush.bf16.msra.mxu0 %v5309
    %6046 = vmatpush.bf16.msra.mxu0 %v5305
    %6047 = vmatpush.bf16.msra.mxu0 %v5301
    %6048 = vmatpush.bf16.msra.mxu0 %v5297
    %6049 = vmatpush.bf16.msra.mxu0 %v5293
    %6050 = vmatpush.bf16.msra.mxu0 %v5289
    %6051 = vmatpush.bf16.msra.mxu0 %v5285
    %6052 = vmatpush.bf16.msra.mxu0 %v5281
    %6053 = vmatmul.bf16.gmra.mxu0 %v4143
    %v6054 = vpop.f32.mrf.mxu0
    %v6055 = vadd.f32 %v6042, %v6054
    %v6056 = vpop.f32.mrf.mxu0
    %6057 = vdwg.mxu0
    %6058 = vmatpush.bf16.msra.mxu0 %v5341
    %6059 = vmatpush.bf16.msra.mxu0 %v5337
    %6060 = vmatpush.bf16.msra.mxu0 %v5333
    %6061 = vmatpush.bf16.msra.mxu0 %v5329
    %6062 = vmatpush.bf16.msra.mxu0 %v5325
    %6063 = vmatpush.bf16.msra.mxu0 %v5321
    %6064 = vmatpush.bf16.msra.mxu0 %v5317
    %6065 = vmatpush.bf16.msra.mxu0 %v5313
    %6066 = vmatmul.bf16.gmra.mxu0 %v4144
    %v6067 = vpop.f32.mrf.mxu0
    %v6068 = vadd.f32 %v6055, %v6067
    %v6069 = vpop.f32.mrf.mxu0
    %6070 = vdwg.mxu0
    %6071 = vmatpush.bf16.msra.mxu0 %v5373
    %6072 = vmatpush.bf16.msra.mxu0 %v5369
    %6073 = vmatpush.bf16.msra.mxu0 %v5365
    %6074 = vmatpush.bf16.msra.mxu0 %v5361
    %6075 = vmatpush.bf16.msra.mxu0 %v5357
    %6076 = vmatpush.bf16.msra.mxu0 %v5353
    %6077 = vmatpush.bf16.msra.mxu0 %v5349
    %6078 = vmatpush.bf16.msra.mxu0 %v5345
    %6079 = vmatmul.bf16.gmra.mxu0 %v4145
    %v6080 = vpop.f32.mrf.mxu0
    %v6081 = vadd.f32 %v6068, %v6080
    %v6082 = vpop.f32.mrf.mxu0
    %6083 = vdwg.mxu0
    %6084 = vmatpush.bf16.msra.mxu0 %v5405
    %6085 = vmatpush.bf16.msra.mxu0 %v5401
    %6086 = vmatpush.bf16.msra.mxu0 %v5397
    %6087 = vmatpush.bf16.msra.mxu0 %v5393
    %6088 = vmatpush.bf16.msra.mxu0 %v5389
    %6089 = vmatpush.bf16.msra.mxu0 %v5385
    %6090 = vmatpush.bf16.msra.mxu0 %v5381
    %6091 = vmatpush.bf16.msra.mxu0 %v5377
    %6092 = vmatmul.bf16.gmra.mxu0 %v4146
    %v6093 = vpop.f32.mrf.mxu0
    %v6094 = vadd.f32 %v6081, %v6093
    %v6095 = vpop.f32.mrf.mxu0
    %6096 = vdwg.mxu0
    %6097 = vmatpush.bf16.msra.mxu0 %v5437
    %6098 = vmatpush.bf16.msra.mxu0 %v5433
    %6099 = vmatpush.bf16.msra.mxu0 %v5429
    %6100 = vmatpush.bf16.msra.mxu0 %v5425
    %6101 = vmatpush.bf16.msra.mxu0 %v5421
    %6102 = vmatpush.bf16.msra.mxu0 %v5417
    %6103 = vmatpush.bf16.msra.mxu0 %v5413
    %6104 = vmatpush.bf16.msra.mxu0 %v5409
    %6105 = vmatmul.bf16.gmra.mxu0 %v4147
    %v6106 = vpop.f32.mrf.mxu0
    %v6107 = vadd.f32 %v6094, %v6106
    %v6108 = vpop.f32.mrf.mxu0
    %6109 = vdwg.mxu0
    %vm6110 = vcmp.gt.f32.partialorder %v5795, 0.0
    %vm6111 = vcmp.gt.f32.partialorder %v5899, 0.0
    %vm6112 = vcmp.gt.f32.partialorder %v6003, 0.0
    %vm6113 = vcmp.gt.f32.partialorder %v6107, 0.0
    %v6114 = vmul.f32 %v5795, 0.2
    %v6115 = vmul.f32 %v5899, 0.2
    %v6116 = vmul.f32 %v6003, 0.2
    %v6117 = vmul.f32 %v6107, 0.2
    %v6118 = vsel %vm6110, %v5795, %v6114
    %v6119 = vsel %vm6111, %v5899, %v6115
    %v6120 = vsel %vm6112, %v6003, %v6116
    %v6121 = vsel %vm6113, %v6107, %v6117
    %v6122 = vpack.c.bf16 %v6118, %v6118
    %v6123 = vpack.c.bf16 %v6119, %v6119
    %v6124 = vpack.c.bf16 %v6120, %v6120
    %v6125 = vpack.c.bf16 %v6121, %v6121
    %v6126 = vld [vmem:[#allocation11] sm:$0xff]
    %v6127 = vld [vmem:[#allocation11 + $0x8] sm:$0xff]
    %v6128 = vld [vmem:[#allocation11 + $0x10] sm:$0xff]
    %v6129 = vld [vmem:[#allocation11 + $0x18] sm:$0xff]
    %v6130 = vld [vmem:[#allocation11 + $0x20] sm:$0xff]
    %v6131 = vld [vmem:[#allocation11 + $0x28] sm:$0xff]
    %v6132 = vld [vmem:[#allocation11 + $0x30] sm:$0xff]
    %v6133 = vld [vmem:[#allocation11 + $0x38] sm:$0xff]
    %v6134 = vld [vmem:[#allocation11 + $0x40] sm:$0xff]
    %v6135 = vld [vmem:[#allocation11 + $0x48] sm:$0xff]
    %v6136 = vld [vmem:[#allocation11 + $0x50] sm:$0xff]
    %v6137 = vld [vmem:[#allocation11 + $0x58] sm:$0xff]
    %v6138 = vld [vmem:[#allocation11 + $0x60] sm:$0xff]
    %v6139 = vld [vmem:[#allocation11 + $0x68] sm:$0xff]
    %v6140 = vld [vmem:[#allocation11 + $0x70] sm:$0xff]
    %v6141 = vld [vmem:[#allocation11 + $0x78] sm:$0xff]
    %v6142 = vld [vmem:[#allocation11 + $0x80] sm:$0xff]
    %v6143 = vld [vmem:[#allocation11 + $0x88] sm:$0xff]
    %v6144 = vld [vmem:[#allocation11 + $0x90] sm:$0xff]
    %v6145 = vld [vmem:[#allocation11 + $0x98] sm:$0xff]
    %v6146 = vld [vmem:[#allocation11 + $0xa0] sm:$0xff]
    %v6147 = vld [vmem:[#allocation11 + $0xa8] sm:$0xff]
    %v6148 = vld [vmem:[#allocation11 + $0xb0] sm:$0xff]
    %v6149 = vld [vmem:[#allocation11 + $0xb8] sm:$0xff]
    %v6150 = vld [vmem:[#allocation11 + $0xc0] sm:$0xff]
    %v6151 = vld [vmem:[#allocation11 + $0xc8] sm:$0xff]
    %v6152 = vld [vmem:[#allocation11 + $0xd0] sm:$0xff]
    %v6153 = vld [vmem:[#allocation11 + $0xd8] sm:$0xff]
    %v6154 = vld [vmem:[#allocation11 + $0xe0] sm:$0xff]
    %v6155 = vld [vmem:[#allocation11 + $0xe8] sm:$0xff]
    %v6156 = vld [vmem:[#allocation11 + $0xf0] sm:$0xff]
    %v6157 = vld [vmem:[#allocation11 + $0xf8] sm:$0xff]
    %v6158 = vld [vmem:[#allocation11 + $0x100] sm:$0xff]
    %v6159 = vld [vmem:[#allocation11 + $0x108] sm:$0xff]
    %v6160 = vld [vmem:[#allocation11 + $0x110] sm:$0xff]
    %v6161 = vld [vmem:[#allocation11 + $0x118] sm:$0xff]
    %v6162 = vld [vmem:[#allocation11 + $0x120] sm:$0xff]
    %v6163 = vld [vmem:[#allocation11 + $0x128] sm:$0xff]
    %v6164 = vld [vmem:[#allocation11 + $0x130] sm:$0xff]
    %v6165 = vld [vmem:[#allocation11 + $0x138] sm:$0xff]
    %v6166 = vld [vmem:[#allocation11 + $0x140] sm:$0xff]
    %v6167 = vld [vmem:[#allocation11 + $0x148] sm:$0xff]
    %v6168 = vld [vmem:[#allocation11 + $0x150] sm:$0xff]
    %v6169 = vld [vmem:[#allocation11 + $0x158] sm:$0xff]
    %v6170 = vld [vmem:[#allocation11 + $0x160] sm:$0xff]
    %v6171 = vld [vmem:[#allocation11 + $0x168] sm:$0xff]
    %v6172 = vld [vmem:[#allocation11 + $0x170] sm:$0xff]
    %v6173 = vld [vmem:[#allocation11 + $0x178] sm:$0xff]
    %v6174 = vld [vmem:[#allocation11 + $0x180] sm:$0xff]
    %v6175 = vld [vmem:[#allocation11 + $0x188] sm:$0xff]
    %v6176 = vld [vmem:[#allocation11 + $0x190] sm:$0xff]
    %v6177 = vld [vmem:[#allocation11 + $0x198] sm:$0xff]
    %v6178 = vld [vmem:[#allocation11 + $0x1a0] sm:$0xff]
    %v6179 = vld [vmem:[#allocation11 + $0x1a8] sm:$0xff]
    %v6180 = vld [vmem:[#allocation11 + $0x1b0] sm:$0xff]
    %v6181 = vld [vmem:[#allocation11 + $0x1b8] sm:$0xff]
    %v6182 = vld [vmem:[#allocation11 + $0x1c0] sm:$0xff]
    %v6183 = vld [vmem:[#allocation11 + $0x1c8] sm:$0xff]
    %v6184 = vld [vmem:[#allocation11 + $0x1d0] sm:$0xff]
    %v6185 = vld [vmem:[#allocation11 + $0x1d8] sm:$0xff]
    %v6186 = vld [vmem:[#allocation11 + $0x1e0] sm:$0xff]
    %v6187 = vld [vmem:[#allocation11 + $0x1e8] sm:$0xff]
    %v6188 = vld [vmem:[#allocation11 + $0x1f0] sm:$0xff]
    %v6189 = vld [vmem:[#allocation11 + $0x1f8] sm:$0xff]
    %v6190 = vld [vmem:[#allocation13] sm:$0x3]
    %v6192 = vperm.slane %v6190, 0
    %v6193 = vperm.slane %v6190, 1
    %v6260 = vunpack.c.l.b16 %v6126
    %v6261 = vunpack.c.h.b16 %v6126
    %v6262 = vunpack.c.l.b16 %v6127
    %v6263 = vunpack.c.h.b16 %v6127
    %v6264 = vunpack.c.l.b16 %v6128
    %v6265 = vunpack.c.h.b16 %v6128
    %v6266 = vunpack.c.l.b16 %v6129
    %v6267 = vunpack.c.h.b16 %v6129
    %v6268 = vunpack.c.l.b16 %v6130
    %v6269 = vunpack.c.h.b16 %v6130
    %v6270 = vunpack.c.l.b16 %v6131
    %v6271 = vunpack.c.h.b16 %v6131
    %v6272 = vunpack.c.l.b16 %v6132
    %v6273 = vunpack.c.h.b16 %v6132
    %v6274 = vunpack.c.l.b16 %v6133
    %v6275 = vunpack.c.h.b16 %v6133
    %v6276 = vunpack.c.l.b16 %v6134
    %v6277 = vunpack.c.h.b16 %v6134
    %v6278 = vunpack.c.l.b16 %v6135
    %v6279 = vunpack.c.h.b16 %v6135
    %v6280 = vunpack.c.l.b16 %v6136
    %v6281 = vunpack.c.h.b16 %v6136
    %v6282 = vunpack.c.l.b16 %v6137
    %v6283 = vunpack.c.h.b16 %v6137
    %v6284 = vunpack.c.l.b16 %v6138
    %v6285 = vunpack.c.h.b16 %v6138
    %v6286 = vunpack.c.l.b16 %v6139
    %v6287 = vunpack.c.h.b16 %v6139
    %v6288 = vunpack.c.l.b16 %v6140
    %v6289 = vunpack.c.h.b16 %v6140
    %v6290 = vunpack.c.l.b16 %v6141
    %v6291 = vunpack.c.h.b16 %v6141
    %v6292 = vunpack.c.l.b16 %v6142
    %v6293 = vunpack.c.h.b16 %v6142
    %v6294 = vunpack.c.l.b16 %v6143
    %v6295 = vunpack.c.h.b16 %v6143
    %v6296 = vunpack.c.l.b16 %v6144
    %v6297 = vunpack.c.h.b16 %v6144
    %v6298 = vunpack.c.l.b16 %v6145
    %v6299 = vunpack.c.h.b16 %v6145
    %v6300 = vunpack.c.l.b16 %v6146
    %v6301 = vunpack.c.h.b16 %v6146
    %v6302 = vunpack.c.l.b16 %v6147
    %v6303 = vunpack.c.h.b16 %v6147
    %v6304 = vunpack.c.l.b16 %v6148
    %v6305 = vunpack.c.h.b16 %v6148
    %v6306 = vunpack.c.l.b16 %v6149
    %v6307 = vunpack.c.h.b16 %v6149
    %v6308 = vunpack.c.l.b16 %v6150
    %v6309 = vunpack.c.h.b16 %v6150
    %v6310 = vunpack.c.l.b16 %v6151
    %v6311 = vunpack.c.h.b16 %v6151
    %v6312 = vunpack.c.l.b16 %v6152
    %v6313 = vunpack.c.h.b16 %v6152
    %v6314 = vunpack.c.l.b16 %v6153
    %v6315 = vunpack.c.h.b16 %v6153
    %v6316 = vunpack.c.l.b16 %v6154
    %v6317 = vunpack.c.h.b16 %v6154
    %v6318 = vunpack.c.l.b16 %v6155
    %v6319 = vunpack.c.h.b16 %v6155
    %v6320 = vunpack.c.l.b16 %v6156
    %v6321 = vunpack.c.h.b16 %v6156
    %v6322 = vunpack.c.l.b16 %v6157
    %v6323 = vunpack.c.h.b16 %v6157
    %v6324 = vunpack.c.l.b16 %v6158
    %v6325 = vunpack.c.h.b16 %v6158
    %v6326 = vunpack.c.l.b16 %v6159
    %v6327 = vunpack.c.h.b16 %v6159
    %v6328 = vunpack.c.l.b16 %v6160
    %v6329 = vunpack.c.h.b16 %v6160
    %v6330 = vunpack.c.l.b16 %v6161
    %v6331 = vunpack.c.h.b16 %v6161
    %v6332 = vunpack.c.l.b16 %v6162
    %v6333 = vunpack.c.h.b16 %v6162
    %v6334 = vunpack.c.l.b16 %v6163
    %v6335 = vunpack.c.h.b16 %v6163
    %v6336 = vunpack.c.l.b16 %v6164
    %v6337 = vunpack.c.h.b16 %v6164
    %v6338 = vunpack.c.l.b16 %v6165
    %v6339 = vunpack.c.h.b16 %v6165
    %v6340 = vunpack.c.l.b16 %v6166
    %v6341 = vunpack.c.h.b16 %v6166
    %v6342 = vunpack.c.l.b16 %v6167
    %v6343 = vunpack.c.h.b16 %v6167
    %v6344 = vunpack.c.l.b16 %v6168
    %v6345 = vunpack.c.h.b16 %v6168
    %v6346 = vunpack.c.l.b16 %v6169
    %v6347 = vunpack.c.h.b16 %v6169
    %v6348 = vunpack.c.l.b16 %v6170
    %v6349 = vunpack.c.h.b16 %v6170
    %v6350 = vunpack.c.l.b16 %v6171
    %v6351 = vunpack.c.h.b16 %v6171
    %v6352 = vunpack.c.l.b16 %v6172
    %v6353 = vunpack.c.h.b16 %v6172
    %v6354 = vunpack.c.l.b16 %v6173
    %v6355 = vunpack.c.h.b16 %v6173
    %v6356 = vunpack.c.l.b16 %v6174
    %v6357 = vunpack.c.h.b16 %v6174
    %v6358 = vunpack.c.l.b16 %v6175
    %v6359 = vunpack.c.h.b16 %v6175
    %v6360 = vunpack.c.l.b16 %v6176
    %v6361 = vunpack.c.h.b16 %v6176
    %v6362 = vunpack.c.l.b16 %v6177
    %v6363 = vunpack.c.h.b16 %v6177
    %v6364 = vunpack.c.l.b16 %v6178
    %v6365 = vunpack.c.h.b16 %v6178
    %v6366 = vunpack.c.l.b16 %v6179
    %v6367 = vunpack.c.h.b16 %v6179
    %v6368 = vunpack.c.l.b16 %v6180
    %v6369 = vunpack.c.h.b16 %v6180
    %v6370 = vunpack.c.l.b16 %v6181
    %v6371 = vunpack.c.h.b16 %v6181
    %v6372 = vunpack.c.l.b16 %v6182
    %v6373 = vunpack.c.h.b16 %v6182
    %v6374 = vunpack.c.l.b16 %v6183
    %v6375 = vunpack.c.h.b16 %v6183
    %v6376 = vunpack.c.l.b16 %v6184
    %v6377 = vunpack.c.h.b16 %v6184
    %v6378 = vunpack.c.l.b16 %v6185
    %v6379 = vunpack.c.h.b16 %v6185
    %v6380 = vunpack.c.l.b16 %v6186
    %v6381 = vunpack.c.h.b16 %v6186
    %v6382 = vunpack.c.l.b16 %v6187
    %v6383 = vunpack.c.h.b16 %v6187
    %v6384 = vunpack.c.l.b16 %v6188
    %v6385 = vunpack.c.h.b16 %v6188
    %v6386 = vunpack.c.l.b16 %v6189
    %v6387 = vunpack.c.h.b16 %v6189
    %v6388 = vpack.c.b16 %v6262, %v6260
    %v6389 = vpack.c.b16 %v6263, %v6261
    %v6390 = vpack.c.b16 %v6266, %v6264
    %v6391 = vpack.c.b16 %v6267, %v6265
    %v6392 = vpack.c.b16 %v6270, %v6268
    %v6393 = vpack.c.b16 %v6271, %v6269
    %v6394 = vpack.c.b16 %v6274, %v6272
    %v6395 = vpack.c.b16 %v6275, %v6273
    %v6396 = vpack.c.b16 %v6278, %v6276
    %v6397 = vpack.c.b16 %v6279, %v6277
    %v6398 = vpack.c.b16 %v6282, %v6280
    %v6399 = vpack.c.b16 %v6283, %v6281
    %v6400 = vpack.c.b16 %v6286, %v6284
    %v6401 = vpack.c.b16 %v6287, %v6285
    %v6402 = vpack.c.b16 %v6290, %v6288
    %v6403 = vpack.c.b16 %v6291, %v6289
    %v6404 = vpack.c.b16 %v6294, %v6292
    %v6405 = vpack.c.b16 %v6295, %v6293
    %v6406 = vpack.c.b16 %v6298, %v6296
    %v6407 = vpack.c.b16 %v6299, %v6297
    %v6408 = vpack.c.b16 %v6302, %v6300
    %v6409 = vpack.c.b16 %v6303, %v6301
    %v6410 = vpack.c.b16 %v6306, %v6304
    %v6411 = vpack.c.b16 %v6307, %v6305
    %v6412 = vpack.c.b16 %v6310, %v6308
    %v6413 = vpack.c.b16 %v6311, %v6309
    %v6414 = vpack.c.b16 %v6314, %v6312
    %v6415 = vpack.c.b16 %v6315, %v6313
    %v6416 = vpack.c.b16 %v6318, %v6316
    %v6417 = vpack.c.b16 %v6319, %v6317
    %v6418 = vpack.c.b16 %v6322, %v6320
    %v6419 = vpack.c.b16 %v6323, %v6321
    %v6420 = vpack.c.b16 %v6326, %v6324
    %v6421 = vpack.c.b16 %v6327, %v6325
    %v6422 = vpack.c.b16 %v6330, %v6328
    %v6423 = vpack.c.b16 %v6331, %v6329
    %v6424 = vpack.c.b16 %v6334, %v6332
    %v6425 = vpack.c.b16 %v6335, %v6333
    %v6426 = vpack.c.b16 %v6338, %v6336
    %v6427 = vpack.c.b16 %v6339, %v6337
    %v6428 = vpack.c.b16 %v6342, %v6340
    %v6429 = vpack.c.b16 %v6343, %v6341
    %v6430 = vpack.c.b16 %v6346, %v6344
    %v6431 = vpack.c.b16 %v6347, %v6345
    %v6432 = vpack.c.b16 %v6350, %v6348
    %v6433 = vpack.c.b16 %v6351, %v6349
    %v6434 = vpack.c.b16 %v6354, %v6352
    %v6435 = vpack.c.b16 %v6355, %v6353
    %v6436 = vpack.c.b16 %v6358, %v6356
    %v6437 = vpack.c.b16 %v6359, %v6357
    %v6438 = vpack.c.b16 %v6362, %v6360
    %v6439 = vpack.c.b16 %v6363, %v6361
    %v6440 = vpack.c.b16 %v6366, %v6364
    %v6441 = vpack.c.b16 %v6367, %v6365
    %v6442 = vpack.c.b16 %v6370, %v6368
    %v6443 = vpack.c.b16 %v6371, %v6369
    %v6444 = vpack.c.b16 %v6374, %v6372
    %v6445 = vpack.c.b16 %v6375, %v6373
    %v6446 = vpack.c.b16 %v6378, %v6376
    %v6447 = vpack.c.b16 %v6379, %v6377
    %v6448 = vpack.c.b16 %v6382, %v6380
    %v6449 = vpack.c.b16 %v6383, %v6381
    %v6450 = vpack.c.b16 %v6386, %v6384
    %v6451 = vpack.c.b16 %v6387, %v6385
    %6516 = vmatpush.bf16.msra.mxu0 %v6402
    %6517 = vmatpush.bf16.msra.mxu0 %v6400
    %6518 = vmatpush.bf16.msra.mxu0 %v6398
    %6519 = vmatpush.bf16.msra.mxu0 %v6396
    %6520 = vmatpush.bf16.msra.mxu0 %v6394
    %6521 = vmatpush.bf16.msra.mxu0 %v6392
    %6522 = vmatpush.bf16.msra.mxu0 %v6390
    %6523 = vmatpush.bf16.msra.mxu0 %v6388
    %6524 = vmatmul.bf16.gmra.mxu0 %v6122
    %v6525 = vpop.f32.mrf.mxu0
    %v6526 = vadd.f32 %v6192, %v6525
    %v6527 = vpop.f32.mrf.mxu0
    %6528 = vdwg.mxu0
    %6529 = vmatpush.bf16.msra.mxu0 %v6418
    %6530 = vmatpush.bf16.msra.mxu0 %v6416
    %6531 = vmatpush.bf16.msra.mxu0 %v6414
    %6532 = vmatpush.bf16.msra.mxu0 %v6412
    %6533 = vmatpush.bf16.msra.mxu0 %v6410
    %6534 = vmatpush.bf16.msra.mxu0 %v6408
    %6535 = vmatpush.bf16.msra.mxu0 %v6406
    %6536 = vmatpush.bf16.msra.mxu0 %v6404
    %6537 = vmatmul.bf16.gmra.mxu0 %v6123
    %v6538 = vpop.f32.mrf.mxu0
    %v6539 = vadd.f32 %v6526, %v6538
    %v6540 = vpop.f32.mrf.mxu0
    %6541 = vdwg.mxu0
    %6542 = vmatpush.bf16.msra.mxu0 %v6434
    %6543 = vmatpush.bf16.msra.mxu0 %v6432
    %6544 = vmatpush.bf16.msra.mxu0 %v6430
    %6545 = vmatpush.bf16.msra.mxu0 %v6428
    %6546 = vmatpush.bf16.msra.mxu0 %v6426
    %6547 = vmatpush.bf16.msra.mxu0 %v6424
    %6548 = vmatpush.bf16.msra.mxu0 %v6422
    %6549 = vmatpush.bf16.msra.mxu0 %v6420
    %6550 = vmatmul.bf16.gmra.mxu0 %v6124
    %v6551 = vpop.f32.mrf.mxu0
    %v6552 = vadd.f32 %v6539, %v6551
    %v6553 = vpop.f32.mrf.mxu0
    %6554 = vdwg.mxu0
    %6555 = vmatpush.bf16.msra.mxu0 %v6450
    %6556 = vmatpush.bf16.msra.mxu0 %v6448
    %6557 = vmatpush.bf16.msra.mxu0 %v6446
    %6558 = vmatpush.bf16.msra.mxu0 %v6444
    %6559 = vmatpush.bf16.msra.mxu0 %v6442
    %6560 = vmatpush.bf16.msra.mxu0 %v6440
    %6561 = vmatpush.bf16.msra.mxu0 %v6438
    %6562 = vmatpush.bf16.msra.mxu0 %v6436
    %6563 = vmatmul.bf16.gmra.mxu0 %v6125
    %v6564 = vpop.f32.mrf.mxu0
    %v6565 = vadd.f32 %v6552, %v6564
    %v6566 = vpop.f32.mrf.mxu0
    %6567 = vdwg.mxu0
    %6568 = vmatpush.bf16.msra.mxu0 %v6403
    %6569 = vmatpush.bf16.msra.mxu0 %v6401
    %6570 = vmatpush.bf16.msra.mxu0 %v6399
    %6571 = vmatpush.bf16.msra.mxu0 %v6397
    %6572 = vmatpush.bf16.msra.mxu0 %v6395
    %6573 = vmatpush.bf16.msra.mxu0 %v6393
    %6574 = vmatpush.bf16.msra.mxu0 %v6391
    %6575 = vmatpush.bf16.msra.mxu0 %v6389
    %6576 = vmatmul.bf16.gmra.mxu0 %v6122
    %v6577 = vpop.f32.mrf.mxu0
    %v6578 = vadd.f32 %v6193, %v6577
    %v6579 = vpop.f32.mrf.mxu0
    %6580 = vdwg.mxu0
    %6581 = vmatpush.bf16.msra.mxu0 %v6419
    %6582 = vmatpush.bf16.msra.mxu0 %v6417
    %6583 = vmatpush.bf16.msra.mxu0 %v6415
    %6584 = vmatpush.bf16.msra.mxu0 %v6413
    %6585 = vmatpush.bf16.msra.mxu0 %v6411
    %6586 = vmatpush.bf16.msra.mxu0 %v6409
    %6587 = vmatpush.bf16.msra.mxu0 %v6407
    %6588 = vmatpush.bf16.msra.mxu0 %v6405
    %6589 = vmatmul.bf16.gmra.mxu0 %v6123
    %v6590 = vpop.f32.mrf.mxu0
    %v6591 = vadd.f32 %v6578, %v6590
    %v6592 = vpop.f32.mrf.mxu0
    %6593 = vdwg.mxu0
    %6594 = vmatpush.bf16.msra.mxu0 %v6435
    %6595 = vmatpush.bf16.msra.mxu0 %v6433
    %6596 = vmatpush.bf16.msra.mxu0 %v6431
    %6597 = vmatpush.bf16.msra.mxu0 %v6429
    %6598 = vmatpush.bf16.msra.mxu0 %v6427
    %6599 = vmatpush.bf16.msra.mxu0 %v6425
    %6600 = vmatpush.bf16.msra.mxu0 %v6423
    %6601 = vmatpush.bf16.msra.mxu0 %v6421
    %6602 = vmatmul.bf16.gmra.mxu0 %v6124
    %v6603 = vpop.f32.mrf.mxu0
    %v6604 = vadd.f32 %v6591, %v6603
    %v6605 = vpop.f32.mrf.mxu0
    %6606 = vdwg.mxu0
    %6607 = vmatpush.bf16.msra.mxu0 %v6451
    %6608 = vmatpush.bf16.msra.mxu0 %v6449
    %6609 = vmatpush.bf16.msra.mxu0 %v6447
    %6610 = vmatpush.bf16.msra.mxu0 %v6445
    %6611 = vmatpush.bf16.msra.mxu0 %v6443
    %6612 = vmatpush.bf16.msra.mxu0 %v6441
    %6613 = vmatpush.bf16.msra.mxu0 %v6439
    %6614 = vmatpush.bf16.msra.mxu0 %v6437
    %6615 = vmatmul.bf16.gmra.mxu0 %v6125
    %v6616 = vpop.f32.mrf.mxu0
    %v6617 = vadd.f32 %v6604, %v6616
    %v6618 = vpop.f32.mrf.mxu0
    %6619 = vdwg.mxu0
    %vm6620 = vcmp.gt.f32.partialorder %v6565, 0.0
    %vm6621 = vcmp.gt.f32.partialorder %v6617, 0.0
    %v6622 = vmul.f32 %v6565, 0.2
    %v6623 = vmul.f32 %v6617, 0.2
    %v6624 = vsel %vm6620, %v6565, %v6622
    %v6625 = vsel %vm6621, %v6617, %v6623
    %v6626 = vpack.c.bf16 %v6624, %v6624
    %v6627 = vpack.c.bf16 %v6625, %v6625
    %v6628 = vld [vmem:[#allocation14] sm:$0xf]
    %v6629 = vld [vmem:[#allocation14 + $0x4] sm:$0xf]
    %v6630 = vld [vmem:[#allocation14 + $0x8] sm:$0xf]
    %v6631 = vld [vmem:[#allocation14 + $0xc] sm:$0xf]
    %v6632 = vld [vmem:[#allocation14 + $0x10] sm:$0xf]
    %v6633 = vld [vmem:[#allocation14 + $0x14] sm:$0xf]
    %v6634 = vld [vmem:[#allocation14 + $0x18] sm:$0xf]
    %v6635 = vld [vmem:[#allocation14 + $0x1c] sm:$0xf]
    %v6636 = vld [vmem:[#allocation14 + $0x20] sm:$0xf]
    %v6637 = vld [vmem:[#allocation14 + $0x24] sm:$0xf]
    %v6638 = vld [vmem:[#allocation14 + $0x28] sm:$0xf]
    %v6639 = vld [vmem:[#allocation14 + $0x2c] sm:$0xf]
    %v6640 = vld [vmem:[#allocation14 + $0x30] sm:$0xf]
    %v6641 = vld [vmem:[#allocation14 + $0x34] sm:$0xf]
    %v6642 = vld [vmem:[#allocation14 + $0x38] sm:$0xf]
    %v6643 = vld [vmem:[#allocation14 + $0x3c] sm:$0xf]
    %v6644 = vld [vmem:[#allocation14 + $0x40] sm:$0xf]
    %v6645 = vld [vmem:[#allocation14 + $0x44] sm:$0xf]
    %v6646 = vld [vmem:[#allocation14 + $0x48] sm:$0xf]
    %v6647 = vld [vmem:[#allocation14 + $0x4c] sm:$0xf]
    %v6648 = vld [vmem:[#allocation14 + $0x50] sm:$0xf]
    %v6649 = vld [vmem:[#allocation14 + $0x54] sm:$0xf]
    %v6650 = vld [vmem:[#allocation14 + $0x58] sm:$0xf]
    %v6651 = vld [vmem:[#allocation14 + $0x5c] sm:$0xf]
    %v6652 = vld [vmem:[#allocation14 + $0x60] sm:$0xf]
    %v6653 = vld [vmem:[#allocation14 + $0x64] sm:$0xf]
    %v6654 = vld [vmem:[#allocation14 + $0x68] sm:$0xf]
    %v6655 = vld [vmem:[#allocation14 + $0x6c] sm:$0xf]
    %v6656 = vld [vmem:[#allocation14 + $0x70] sm:$0xf]
    %v6657 = vld [vmem:[#allocation14 + $0x74] sm:$0xf]
    %v6658 = vld [vmem:[#allocation14 + $0x78] sm:$0xf]
    %v6659 = vld [vmem:[#allocation14 + $0x7c] sm:$0xf]
    %v6660 = vld [vmem:[#allocation16] sm:$0x1]
    %v6662 = vperm.slane %v6660, 0
    %v6696 = vunpack.c.l.b16 %v6628
    %v6697 = vunpack.c.l.b16 %v6629
    %v6698 = vunpack.c.l.b16 %v6630
    %v6699 = vunpack.c.l.b16 %v6631
    %v6700 = vunpack.c.l.b16 %v6632
    %v6701 = vunpack.c.l.b16 %v6633
    %v6702 = vunpack.c.l.b16 %v6634
    %v6703 = vunpack.c.l.b16 %v6635
    %v6704 = vunpack.c.l.b16 %v6636
    %v6705 = vunpack.c.l.b16 %v6637
    %v6706 = vunpack.c.l.b16 %v6638
    %v6707 = vunpack.c.l.b16 %v6639
    %v6708 = vunpack.c.l.b16 %v6640
    %v6709 = vunpack.c.l.b16 %v6641
    %v6710 = vunpack.c.l.b16 %v6642
    %v6711 = vunpack.c.l.b16 %v6643
    %v6712 = vunpack.c.l.b16 %v6644
    %v6713 = vunpack.c.l.b16 %v6645
    %v6714 = vunpack.c.l.b16 %v6646
    %v6715 = vunpack.c.l.b16 %v6647
    %v6716 = vunpack.c.l.b16 %v6648
    %v6717 = vunpack.c.l.b16 %v6649
    %v6718 = vunpack.c.l.b16 %v6650
    %v6719 = vunpack.c.l.b16 %v6651
    %v6720 = vunpack.c.l.b16 %v6652
    %v6721 = vunpack.c.l.b16 %v6653
    %v6722 = vunpack.c.l.b16 %v6654
    %v6723 = vunpack.c.l.b16 %v6655
    %v6724 = vunpack.c.l.b16 %v6656
    %v6725 = vunpack.c.l.b16 %v6657
    %v6726 = vunpack.c.l.b16 %v6658
    %v6727 = vunpack.c.l.b16 %v6659
    %v6728 = vpack.c.b16 %v6697, %v6696
    %v6729 = vpack.c.b16 %v6699, %v6698
    %v6730 = vpack.c.b16 %v6701, %v6700
    %v6731 = vpack.c.b16 %v6703, %v6702
    %v6732 = vpack.c.b16 %v6705, %v6704
    %v6733 = vpack.c.b16 %v6707, %v6706
    %v6734 = vpack.c.b16 %v6709, %v6708
    %v6735 = vpack.c.b16 %v6711, %v6710
    %v6736 = vpack.c.b16 %v6713, %v6712
    %v6737 = vpack.c.b16 %v6715, %v6714
    %v6738 = vpack.c.b16 %v6717, %v6716
    %v6739 = vpack.c.b16 %v6719, %v6718
    %v6740 = vpack.c.b16 %v6721, %v6720
    %v6741 = vpack.c.b16 %v6723, %v6722
    %v6742 = vpack.c.b16 %v6725, %v6724
    %v6743 = vpack.c.b16 %v6727, %v6726
    %6760 = vmatpush.bf16.msra.mxu0 %v6735
    %6761 = vmatpush.bf16.msra.mxu0 %v6734
    %6762 = vmatpush.bf16.msra.mxu0 %v6733
    %6763 = vmatpush.bf16.msra.mxu0 %v6732
    %6764 = vmatpush.bf16.msra.mxu0 %v6731
    %6765 = vmatpush.bf16.msra.mxu0 %v6730
    %6766 = vmatpush.bf16.msra.mxu0 %v6729
    %6767 = vmatpush.bf16.msra.mxu0 %v6728
    %6768 = vmatmul.bf16.gmra.mxu0 %v6626
    %v6769 = vpop.f32.mrf.mxu0
    %v6770 = vadd.f32 %v6662, %v6769
    %v6771 = vpop.f32.mrf.mxu0
    %6772 = vdwg.mxu0
    %6773 = vmatpush.bf16.msra.mxu0 %v6743
    %6774 = vmatpush.bf16.msra.mxu0 %v6742
    %6775 = vmatpush.bf16.msra.mxu0 %v6741
    %6776 = vmatpush.bf16.msra.mxu0 %v6740
    %6777 = vmatpush.bf16.msra.mxu0 %v6739
    %6778 = vmatpush.bf16.msra.mxu0 %v6738
    %6779 = vmatpush.bf16.msra.mxu0 %v6737
    %6780 = vmatpush.bf16.msra.mxu0 %v6736
    %6781 = vmatmul.bf16.gmra.mxu0 %v6627
    %v6782 = vpop.f32.mrf.mxu0
    %v6783 = vadd.f32 %v6770, %v6782
    %v6784 = vpop.f32.mrf.mxu0
    %6785 = vdwg.mxu0
    %v6786 = vsub.f32 0.0, %v6783
    %v6787 = vmul.f32 %v6786, 1.442695
    %v6788 = vpow.pop %v6787
    %v6789 = vadd.f32 %v6788, 1.0
    %v6790 = vrcp.pop %v6789
    %v6791 = vpack.c.bf16 %v6790, %v6790
    %6792 = vst [vmem:[#allocation17] sm:$0x1] %v6791
    // Predicated region
    $region74: #{tpu_custom_call.1} parent=1 // pred_check
      _
    $region75: #{tpu_custom_call.1} parent=1 // pred_check_branch
      %6794 = sbr.rel (0) target = $region77
    $region76: #{tpu_custom_call.1} parent=1 // pred_region
      %6796 = vsyncadd [#allocation4], 0
      %s6798 = sshll.u32 [#allocation17], 4
      %s6799 = int_to_ptr.vmem [resolvable:$true] %s6798
      %s6800 = sshll.u32 %s9, 4
      %s6801 = int_to_ptr.hbm [resolvable:$true] %s6800
      %6803 = dma.vmem_to_hbm [thread:$0]  %s6799, 16, %s6801, [#allocation4]
    $region77: #{tpu_custom_call.1} parent=1 // pred_fallthru
      _
    // Predicated region
    $region78: #{tpu_custom_call.1} parent=1 // pred_check
      _
    $region79: #{tpu_custom_call.1} parent=1 // pred_check_branch
      %6805 = sbr.rel (0) target = $region81
    $region80: #{tpu_custom_call.1} parent=1 // pred_region
      %6807 = dma.done [#allocation4], 16
    $region81: #{tpu_custom_call.1} parent=1 // pred_fallthru
      _
    %6808 = vsyncpa [#allocation3], 1
    %6809 = vsyncpa [#allocation6], 1
    %6810 = vsyncpa [#allocation9], 1
    %6811 = vsyncpa [#allocation12], 1
    %6812 = vsyncpa [#allocation15], 1
    %6813 = vsyncpa [#allocation4], 1

</llo_original>
